<compile_context>
chip_gen: v7x
topology: tpu7x:2x2x1
jax: 0.10.0
libtpu: 0.0.40
codegen_flags: <defaults>
</compile_context>

<pallas_src>
import functools

import jax
import jax.numpy as jnp
from jax.experimental import pallas as pl
from jax.experimental.pallas import tpu as pltpu


def _round_up(x, m):
    return ((x + m - 1) // m) * m


def _full(shape):
    """Full-array BlockSpec for a grid=(1,) kernel."""
    zeros = (0,) * len(shape)
    return pl.BlockSpec(shape, lambda i, z=zeros: z)


def _sigmoid(x):
    # sigmoid(x) = 0.5*(1 + tanh(x/2)): one EUP tanh pass + VPU fixups (never lowers
    # to exp + full-precision divide).
    return 0.5 * jnp.tanh(0.5 * x) + 0.5


# ------------------------------ fused kernel ------------------------------

def vae_kernel(tok_ref, enc_embwih_ref, enc_whh_ref, enc_b_ref,
               wm_ref, bm_ref, wv_ref, bv_ref, eps_ref,
               dec_wih_ref, dec_embwih_ref, dec_whh_ref, dec_b_ref,
               wout_ref, bout_ref,
               out_ref, zmean_ref, zlogvar_ref,
               xw_ref):
    f32 = jnp.float32
    bf16 = jnp.bfloat16
    TB = tok_ref.shape[0]                      # T * B (time-major rows)
    V = enc_embwih_ref.shape[0]                # vocab
    Hp = enc_whh_ref.shape[0]                  # padded hidden width (multiple of 128)
    H4 = enc_whh_ref.shape[1]                  # 4 * Hp
    B, L = eps_ref.shape                       # batch, latent dim
    T = TB // B
    max_len = out_ref.shape[1] // V

    # ---------------- encoder ----------------
    # Token gather + input projection for ALL T steps in one bf16 matmul against the
    # precomputed emb@W_ih table; bias folded once.  Result parked in VMEM scratch so
    # the unrolled recurrence only streams 8-row slices (bounds vreg pressure).
    tok = tok_ref[...]                                                   # (T*B, 1) int32
    vocab_iota = jax.lax.broadcasted_iota(jnp.int32, (TB, V), 1)
    onehot_all = (vocab_iota == tok).astype(bf16)                        # (T*B, V)
    xw_ref[...] = (jnp.dot(onehot_all, enc_embwih_ref[...],
                           preferred_element_type=f32)
                   + enc_b_ref[...])                                     # (T*B, 4Hp) f32

    enc_whh = enc_whh_ref[...]                                           # (Hp, 4Hp) bf16
    h = jnp.zeros((B, Hp), f32)
    c = jnp.zeros((B, Hp), f32)
    for t in range(T):                                                   # unrolled
        gates = xw_ref[t * B:(t + 1) * B, :] + jnp.dot(
            h.astype(bf16), enc_whh, preferred_element_type=f32)
        # lane-aligned 128-wide gate slices, PyTorch order [i, f, g, o]
        gi = _sigmoid(gates[:, 0 * Hp:1 * Hp])
        gf = _sigmoid(gates[:, 1 * Hp:2 * Hp])
        gg = jnp.tanh(gates[:, 2 * Hp:3 * Hp])
        go = _sigmoid(gates[:, 3 * Hp:4 * Hp])
        c = gf * c + gi * gg
        h = go * jnp.tanh(c)

    # ---------------- latent projection + reparameterize ----------------
    hb = h.astype(bf16)
    z_mean = jnp.dot(hb, wm_ref[...], preferred_element_type=f32) + bm_ref[...]
    z_logvar = jnp.dot(hb, wv_ref[...], preferred_element_type=f32) + bv_ref[...]
    zmean_ref[...] = z_mean
    zlogvar_ref[...] = z_logvar
    z = z_mean + eps_ref[...] * jnp.exp(0.5 * z_logvar)

    # ---------------- greedy decoder ----------------
    dec_embwih = dec_embwih_ref[...]                          # (V, 4Hp) bf16, emb@W_ih folded
    dec_whh = dec_whh_ref[...]                                # (Hp, 4Hp) bf16
    dec_b = jnp.broadcast_to(dec_b_ref[...], (B, H4))         # bias broadcast hoisted
    wout = wout_ref[...]                                      # (Hp, V) bf16
    bout = jnp.broadcast_to(bout_ref[...], (B, V))            # bias broadcast hoisted

    # t == 0 input projection comes from z directly.
    inp_gates = jnp.dot(z.astype(bf16), dec_wih_ref[...], preferred_element_type=f32)
    h = jnp.zeros((B, Hp), f32)
    c = jnp.zeros((B, Hp), f32)
    for t in range(max_len):                                             # unrolled
        gates = inp_gates + jnp.dot(h.astype(bf16), dec_whh,
                                    preferred_element_type=f32) + dec_b
        gi = _sigmoid(gates[:, 0 * Hp:1 * Hp])
        gf = _sigmoid(gates[:, 1 * Hp:2 * Hp])
        gg = jnp.tanh(gates[:, 2 * Hp:3 * Hp])
        go = _sigmoid(gates[:, 3 * Hp:4 * Hp])
        c = gf * c + gi * gg
        h = go * jnp.tanh(c)
        logits = jnp.dot(h.astype(bf16), wout, preferred_element_type=f32) + bout
        out_ref[:, t * V:(t + 1) * V] = logits                # lane-aligned 128-wide store

        if t + 1 < max_len:
            # Greedy feedback: one cross-lane max + compare; the embedding lookup AND
            # the next step's input projection are fused into a single matmul against
            # the precomputed emb@W_ih table, so next step's h@W_hh (above) is
            # independent of this chain and can overlap with it.
            mx = jnp.max(logits, axis=1, keepdims=True)
            onehot = (logits == mx).astype(bf16)
            # TODO(synk): on an exact fp tie this is multi-hot (sum of tied rows),
            # unlike torch.max's first-index tie-break; measure-zero for fp32 logits.
            inp_gates = jnp.dot(onehot, dec_embwih, preferred_element_type=f32)


# ------------------------------ parameters ------------------------------

def init_params(key, vocab_size, embedding_dim, hidden_dim, latent_dim):
    assert embedding_dim == latent_dim, "decoder feedback requires E == latent_dim"
    ks = jax.random.split(key, 16)
    u = lambda k, shp, bound: jax.random.uniform(k, shp, jnp.float32, -bound, bound)
    bh = 1.0 / jnp.sqrt(hidden_dim)
    return {
        "embedding": jax.random.normal(ks[0], (vocab_size, embedding_dim), jnp.float32),
        # encoder LSTM (PyTorch weight_ih: (4H, E), weight_hh: (4H, H)); stored transposed
        "enc_wih_t": u(ks[1], (embedding_dim, 4 * hidden_dim), bh),
        "enc_whh_t": u(ks[2], (hidden_dim, 4 * hidden_dim), bh),
        "enc_b": u(ks[3], (1, 4 * hidden_dim), bh) + u(ks[4], (1, 4 * hidden_dim), bh),
        # mean / logvar linears (stored transposed: (H, L))
        "wm_t": u(ks[5], (hidden_dim, latent_dim), bh),
        "bm": u(ks[6], (1, latent_dim), bh),
        "wv_t": u(ks[7], (hidden_dim, latent_dim), bh),
        "bv": u(ks[8], (1, latent_dim), bh),
        # decoder LSTMCell (input_size = latent_dim)
        "dec_wih_t": u(ks[9], (latent_dim, 4 * hidden_dim), bh),
        "dec_whh_t": u(ks[10], (hidden_dim, 4 * hidden_dim), bh),
        "dec_b": u(ks[11], (1, 4 * hidden_dim), bh) + u(ks[12], (1, 4 * hidden_dim), bh),
        # output linear (stored transposed: (H, V))
        "wout_t": u(ks[13], (hidden_dim, vocab_size), bh),
        "bout": u(ks[14], (1, vocab_size), bh),
    }


def prepare_params(params):
    """Pad/fold/cast logical params into the layout the kernel expects (done once).

    * Hidden width padded to Hp (multiple of 128) per gate; padded weight/bias
      columns are zero so padded LSTM state provably stays zero (bf16 preserves 0).
    * Embedding table is folded into both LSTM input projections: emb @ W_ih, so
      in-kernel one-hot gathers directly yield x_t @ W_ih rows (exact row selection).
    * MXU weight operands cast to bf16; biases stay f32 (added after f32 accumulate).
    """
    E, _ = params["enc_wih_t"].shape
    H = params["enc_whh_t"].shape[0]
    L = params["wm_t"].shape[1]
    Hp = _round_up(H, 128)
    f32, bf16 = jnp.float32, jnp.bfloat16

    def pad_gate_cols(w):   # (rows, 4H) -> (rows, 4Hp); gate g real part in [g*Hp, g*Hp+H)
        rows = w.shape[0]
        w4 = w.reshape(rows, 4, H)
        out = jnp.zeros((rows, 4, Hp), f32).at[:, :, :H].set(w4)
        return out.reshape(rows, 4 * Hp)

    def pad_rows(w, rp):
        return jnp.zeros((rp, w.shape[1]), f32).at[:w.shape[0], :].set(w)

    emb = params["embedding"]
    enc_embwih = pad_gate_cols(emb @ params["enc_wih_t"])     # (V, 4Hp)
    dec_embwih = pad_gate_cols(emb @ params["dec_wih_t"])     # (V, 4Hp)

    kp = {
        "enc_embwih": enc_embwih.astype(bf16),                                   # (V, 4Hp)
        "enc_whh_t": pad_rows(pad_gate_cols(params["enc_whh_t"]), Hp).astype(bf16),  # (Hp, 4Hp)
        "enc_b": pad_gate_cols(params["enc_b"]),                                 # (1, 4Hp) f32
        "wm_t": pad_rows(params["wm_t"], Hp).astype(bf16),                       # (Hp, L)
        "bm": params["bm"],
        "wv_t": pad_rows(params["wv_t"], Hp).astype(bf16),
        "bv": params["bv"],
        "dec_wih_t": pad_gate_cols(params["dec_wih_t"]).astype(bf16),            # (L, 4Hp)
        "dec_embwih": dec_embwih.astype(bf16),                                   # (V, 4Hp)
        "dec_whh_t": pad_rows(pad_gate_cols(params["dec_whh_t"]), Hp).astype(bf16),
        "dec_b": pad_gate_cols(params["dec_b"]),                                 # (1, 4Hp) f32
        "wout_t": pad_rows(params["wout_t"], Hp).astype(bf16),                   # (Hp, V)
        "bout": params["bout"],                                                  # (1, V) f32
    }

    # Invariant: padded gate columns must be exactly zero (else sigmoid(0)=0.5 leaks
    # into padded c/h).  Cheap one-time check, survives the bf16 cast.
    for name in ("enc_b", "dec_b", "enc_whh_t", "dec_whh_t", "enc_embwih", "dec_embwih"):
        w4 = jnp.asarray(kp[name], f32).reshape(kp[name].shape[0], 4, Hp)
        assert bool(jnp.all(w4[:, :, H:] == 0.0)), f"nonzero gate padding in {name}"
    return kp


# ------------------------------ forward ------------------------------

def text_vae_forward(kp, tokens, eps, *, max_len):
    B, T = tokens.shape
    V = kp["enc_embwih"].shape[0]
    L = kp["wm_t"].shape[1]
    H4 = kp["enc_whh_t"].shape[1]

    # Time-major flat token ids (T*B, 1); only glue op left outside the kernel.
    tokens_flat = tokens.T.reshape(T * B, 1).astype(jnp.int32)

    args = (tokens_flat, kp["enc_embwih"], kp["enc_whh_t"], kp["enc_b"],
            kp["wm_t"], kp["bm"], kp["wv_t"], kp["bv"], eps,
            kp["dec_wih_t"], kp["dec_embwih"], kp["dec_whh_t"], kp["dec_b"],
            kp["wout_t"], kp["bout"])

    out_shapes = (jax.ShapeDtypeStruct((B, max_len * V), jnp.float32),   # logits slab
                  jax.ShapeDtypeStruct((B, L), jnp.float32),             # z_mean
                  jax.ShapeDtypeStruct((B, L), jnp.float32))             # z_logvar

    out_flat, z_mean, z_logvar = pl.pallas_call(
        vae_kernel,
        out_shape=out_shapes,
        grid_spec=pltpu.PrefetchScalarGridSpec(
            num_scalar_prefetch=0,
            grid=(1,),
            in_specs=[_full(a.shape) for a in args],
            out_specs=[_full(s.shape) for s in out_shapes],
            scratch_shapes=[pltpu.VMEM((T * B, H4), jnp.float32)],       # encoder xw slab
        ),
        compiler_params=pltpu.CompilerParams(dimension_semantics=("arbitrary",)),
    )(*args)

    # Contiguous reshape (free) to PyTorch batch_first layout (B, max_len, V).
    outputs = out_flat.reshape(B, max_len, V)
    return outputs, z_mean, z_logvar


# ------------------------------ main ------------------------------

if __name__ == "__main__":
    vocab_size, embedding_dim, hidden_dim, latent_dim = 128, 32, 64, 32
    B, T, max_len = 8, 8, 8

    key = jax.random.PRNGKey(0)
    k_param, k_tok, k_eps = jax.random.split(key, 3)

    params = init_params(k_param, vocab_size, embedding_dim, hidden_dim, latent_dim)
    kparams = prepare_params(params)   # pad/fold/cast once, outside jit
    tokens = jax.random.randint(k_tok, (B, T), 0, vocab_size, dtype=jnp.int32)
    eps = jax.random.normal(k_eps, (B, latent_dim), jnp.float32)

    fwd = jax.jit(functools.partial(text_vae_forward, max_len=max_len))
    outputs, z_mean, z_logvar = fwd(kparams, tokens, eps)
    jax.block_until_ready((outputs, z_mean, z_logvar))

    assert outputs.shape == (B, max_len, vocab_size)
    assert z_mean.shape == (B, latent_dim) and z_logvar.shape == (B, latent_dim)
    print("KERNEL_OK")
</pallas_src>

<mosaic_0001>
module attributes {stable_mosaic.version = 11 : i64} {
  func.func @vae_kernel(%arg0: i32, %arg1: memref<64x1xi32, #tpu.memory_space<vmem>>, %arg2: memref<128x512xbf16, #tpu.memory_space<vmem>>, %arg3: memref<128x512xbf16, #tpu.memory_space<vmem>>, %arg4: memref<1x512xf32, #tpu.memory_space<vmem>>, %arg5: memref<128x32xbf16, #tpu.memory_space<vmem>>, %arg6: memref<1x32xf32, #tpu.memory_space<vmem>>, %arg7: memref<128x32xbf16, #tpu.memory_space<vmem>>, %arg8: memref<1x32xf32, #tpu.memory_space<vmem>>, %arg9: memref<8x32xf32, #tpu.memory_space<vmem>>, %arg10: memref<32x512xbf16, #tpu.memory_space<vmem>>, %arg11: memref<128x512xbf16, #tpu.memory_space<vmem>>, %arg12: memref<128x512xbf16, #tpu.memory_space<vmem>>, %arg13: memref<1x512xf32, #tpu.memory_space<vmem>>, %arg14: memref<128x128xbf16, #tpu.memory_space<vmem>>, %arg15: memref<1x128xf32, #tpu.memory_space<vmem>>, %arg16: memref<8x1024xf32, #tpu.memory_space<vmem>>, %arg17: memref<8x32xf32, #tpu.memory_space<vmem>>, %arg18: memref<8x32xf32, #tpu.memory_space<vmem>>, %arg19: memref<64x512xf32, #tpu.memory_space<vmem>>) attributes {dimension_semantics = [#tpu.dimension_semantics<arbitrary>], iteration_bounds = array<i64: 1>, scalar_prefetch = 0 : i64, scratch_operands = 1 : i64, tpu.core_type = #tpu.core_type<tc>, window_params = [{pipeline_mode = #tpu.pipeline_mode<synchronous>, transform_indices = @transform_0, window_bounds = array<i64: 64, 1>}, {pipeline_mode = #tpu.pipeline_mode<synchronous>, transform_indices = @transform_1, window_bounds = array<i64: 128, 512>}, {pipeline_mode = #tpu.pipeline_mode<synchronous>, transform_indices = @transform_2, window_bounds = array<i64: 128, 512>}, {pipeline_mode = #tpu.pipeline_mode<synchronous>, transform_indices = @transform_3, window_bounds = array<i64: 1, 512>}, {pipeline_mode = #tpu.pipeline_mode<synchronous>, transform_indices = @transform_4, window_bounds = array<i64: 128, 32>}, {pipeline_mode = #tpu.pipeline_mode<synchronous>, transform_indices = @transform_5, window_bounds = array<i64: 1, 32>}, {pipeline_mode = #tpu.pipeline_mode<synchronous>, transform_indices = @transform_6, window_bounds = array<i64: 128, 32>}, {pipeline_mode = #tpu.pipeline_mode<synchronous>, transform_indices = @transform_7, window_bounds = array<i64: 1, 32>}, {pipeline_mode = #tpu.pipeline_mode<synchronous>, transform_indices = @transform_8, window_bounds = array<i64: 8, 32>}, {pipeline_mode = #tpu.pipeline_mode<synchronous>, transform_indices = @transform_9, window_bounds = array<i64: 32, 512>}, {pipeline_mode = #tpu.pipeline_mode<synchronous>, transform_indices = @transform_10, window_bounds = array<i64: 128, 512>}, {pipeline_mode = #tpu.pipeline_mode<synchronous>, transform_indices = @transform_11, window_bounds = array<i64: 128, 512>}, {pipeline_mode = #tpu.pipeline_mode<synchronous>, transform_indices = @transform_12, window_bounds = array<i64: 1, 512>}, {pipeline_mode = #tpu.pipeline_mode<synchronous>, transform_indices = @transform_13, window_bounds = array<i64: 128, 128>}, {pipeline_mode = #tpu.pipeline_mode<synchronous>, transform_indices = @transform_14, window_bounds = array<i64: 1, 128>}, {pipeline_mode = #tpu.pipeline_mode<synchronous>, transform_indices = @transform_15, window_bounds = array<i64: 8, 1024>}, {pipeline_mode = #tpu.pipeline_mode<synchronous>, transform_indices = @transform_16, window_bounds = array<i64: 8, 32>}, {pipeline_mode = #tpu.pipeline_mode<synchronous>, transform_indices = @transform_17, window_bounds = array<i64: 8, 32>}]} {
    %c0 = arith.constant 0 : index
    %c0_0 = arith.constant 0 : index
    %0 = vector.load %arg1[%c0, %c0_0] : memref<64x1xi32, #tpu.memory_space<vmem>>, vector<64x1xi32>
    %1 = tpu.iota {dimensions = array<i32: 1>} : vector<64x128xi32>
    %2 = vector.broadcast %0 : vector<64x1xi32> to vector<64x128xi32>
    %3 = arith.cmpi eq, %1, %2 : vector<64x128xi32>
    %4 = arith.extui %3 : vector<64x128xi1> to vector<64x128xi32>
    %5 = arith.sitofp %4 : vector<64x128xi32> to vector<64x128xf32>
    %6 = arith.truncf %5 : vector<64x128xf32> to vector<64x128xbf16>
    %c0_1 = arith.constant 0 : index
    %c0_2 = arith.constant 0 : index
    %7 = vector.load %arg2[%c0_1, %c0_2] : memref<128x512xbf16, #tpu.memory_space<vmem>>, vector<128x512xbf16>
    %cst = arith.constant dense<0.000000e+00> : vector<64x512xf32>
    %8 = tpu.matmul %6, %7, %cst {dimension_numbers = #tpu.dot_dimension_numbers<[1], [0], [0], [1], [0, 0, 1, 1], [], []>} : vector<64x128xbf16>, vector<128x512xbf16>, vector<64x512xf32> -> vector<64x512xf32>
    %c0_3 = arith.constant 0 : index
    %c0_4 = arith.constant 0 : index
    %9 = vector.load %arg4[%c0_3, %c0_4] : memref<1x512xf32, #tpu.memory_space<vmem>>, vector<1x512xf32>
    %10 = vector.broadcast %9 : vector<1x512xf32> to vector<64x512xf32>
    %11 = arith.addf %8, %10 : vector<64x512xf32>
    %c0_5 = arith.constant 0 : index
    %c0_6 = arith.constant 0 : index
    %12 = vector.load %arg19[%c0_5, %c0_6] : memref<64x512xf32, #tpu.memory_space<vmem>>, vector<64x512xf32>
    tpu.vector_store %arg19[%c0_5, %c0_6], %11 {strides = array<i32>} : memref<64x512xf32, #tpu.memory_space<vmem>>, vector<64x512xf32>,
    %c0_7 = arith.constant 0 : index
    %c0_8 = arith.constant 0 : index
    %13 = vector.load %arg3[%c0_7, %c0_8] : memref<128x512xbf16, #tpu.memory_space<vmem>>, vector<128x512xbf16>
    %cst_9 = arith.constant 0.000000e+00 : f32
    %14 = vector.broadcast %cst_9 : f32 to vector<8x128xf32>
    %cst_10 = arith.constant 0.000000e+00 : f32
    %15 = vector.broadcast %cst_10 : f32 to vector<8x128xf32>
    %c0_11 = arith.constant 0 : index
    %c0_12 = arith.constant 0 : index
    %16 = vector.load %arg19[%c0_11, %c0_12] : memref<64x512xf32, #tpu.memory_space<vmem>>, vector<8x512xf32>
    %17 = arith.truncf %14 : vector<8x128xf32> to vector<8x128xbf16>
    %cst_13 = arith.constant dense<0.000000e+00> : vector<8x512xf32>
    %18 = tpu.matmul %17, %13, %cst_13 {dimension_numbers = #tpu.dot_dimension_numbers<[1], [0], [0], [1], [0, 0, 1, 1], [], []>} : vector<8x128xbf16>, vector<128x512xbf16>, vector<8x512xf32> -> vector<8x512xf32>
    %19 = arith.addf %16, %18 : vector<8x512xf32>
    %20 = vector.extract_strided_slice %19 {offsets = [0, 0], sizes = [8, 128], strides = [1, 1]} : vector<8x512xf32> to vector<8x128xf32>
    %cst_14 = arith.constant 5.000000e-01 : f32
    %21 = vector.broadcast %cst_14 : f32 to vector<8x128xf32>
    %22 = arith.mulf %21, %20 : vector<8x128xf32>
    %23 = math.tanh %22 : vector<8x128xf32>
    %cst_15 = arith.constant 5.000000e-01 : f32
    %24 = vector.broadcast %cst_15 : f32 to vector<8x128xf32>
    %25 = arith.mulf %24, %23 : vector<8x128xf32>
    %cst_16 = arith.constant 5.000000e-01 : f32
    %26 = vector.broadcast %cst_16 : f32 to vector<8x128xf32>
    %27 = arith.addf %25, %26 : vector<8x128xf32>
    %28 = vector.extract_strided_slice %19 {offsets = [0, 128], sizes = [8, 128], strides = [1, 1]} : vector<8x512xf32> to vector<8x128xf32>
    %cst_17 = arith.constant 5.000000e-01 : f32
    %29 = vector.broadcast %cst_17 : f32 to vector<8x128xf32>
    %30 = arith.mulf %29, %28 : vector<8x128xf32>
    %31 = math.tanh %30 : vector<8x128xf32>
    %cst_18 = arith.constant 5.000000e-01 : f32
    %32 = vector.broadcast %cst_18 : f32 to vector<8x128xf32>
    %33 = arith.mulf %32, %31 : vector<8x128xf32>
    %cst_19 = arith.constant 5.000000e-01 : f32
    %34 = vector.broadcast %cst_19 : f32 to vector<8x128xf32>
    %35 = arith.addf %33, %34 : vector<8x128xf32>
    %36 = vector.extract_strided_slice %19 {offsets = [0, 256], sizes = [8, 128], strides = [1, 1]} : vector<8x512xf32> to vector<8x128xf32>
    %37 = math.tanh %36 : vector<8x128xf32>
    %38 = vector.extract_strided_slice %19 {offsets = [0, 384], sizes = [8, 128], strides = [1, 1]} : vector<8x512xf32> to vector<8x128xf32>
    %cst_20 = arith.constant 5.000000e-01 : f32
    %39 = vector.broadcast %cst_20 : f32 to vector<8x128xf32>
    %40 = arith.mulf %39, %38 : vector<8x128xf32>
    %41 = math.tanh %40 : vector<8x128xf32>
    %cst_21 = arith.constant 5.000000e-01 : f32
    %42 = vector.broadcast %cst_21 : f32 to vector<8x128xf32>
    %43 = arith.mulf %42, %41 : vector<8x128xf32>
    %cst_22 = arith.constant 5.000000e-01 : f32
    %44 = vector.broadcast %cst_22 : f32 to vector<8x128xf32>
    %45 = arith.addf %43, %44 : vector<8x128xf32>
    %46 = arith.mulf %35, %15 : vector<8x128xf32>
    %47 = arith.mulf %27, %37 : vector<8x128xf32>
    %48 = arith.addf %46, %47 : vector<8x128xf32>
    %49 = math.tanh %48 : vector<8x128xf32>
    %50 = arith.mulf %45, %49 : vector<8x128xf32>
    %c8 = arith.constant 8 : index
    %c0_23 = arith.constant 0 : index
    %51 = vector.load %arg19[%c8, %c0_23] : memref<64x512xf32, #tpu.memory_space<vmem>>, vector<8x512xf32>
    %52 = arith.truncf %50 : vector<8x128xf32> to vector<8x128xbf16>
    %cst_24 = arith.constant dense<0.000000e+00> : vector<8x512xf32>
    %53 = tpu.matmul %52, %13, %cst_24 {dimension_numbers = #tpu.dot_dimension_numbers<[1], [0], [0], [1], [0, 0, 1, 1], [], []>} : vector<8x128xbf16>, vector<128x512xbf16>, vector<8x512xf32> -> vector<8x512xf32>
    %54 = arith.addf %51, %53 : vector<8x512xf32>
    %55 = vector.extract_strided_slice %54 {offsets = [0, 0], sizes = [8, 128], strides = [1, 1]} : vector<8x512xf32> to vector<8x128xf32>
    %cst_25 = arith.constant 5.000000e-01 : f32
    %56 = vector.broadcast %cst_25 : f32 to vector<8x128xf32>
    %57 = arith.mulf %56, %55 : vector<8x128xf32>
    %58 = math.tanh %57 : vector<8x128xf32>
    %cst_26 = arith.constant 5.000000e-01 : f32
    %59 = vector.broadcast %cst_26 : f32 to vector<8x128xf32>
    %60 = arith.mulf %59, %58 : vector<8x128xf32>
    %cst_27 = arith.constant 5.000000e-01 : f32
    %61 = vector.broadcast %cst_27 : f32 to vector<8x128xf32>
    %62 = arith.addf %60, %61 : vector<8x128xf32>
    %63 = vector.extract_strided_slice %54 {offsets = [0, 128], sizes = [8, 128], strides = [1, 1]} : vector<8x512xf32> to vector<8x128xf32>
    %cst_28 = arith.constant 5.000000e-01 : f32
    %64 = vector.broadcast %cst_28 : f32 to vector<8x128xf32>
    %65 = arith.mulf %64, %63 : vector<8x128xf32>
    %66 = math.tanh %65 : vector<8x128xf32>
    %cst_29 = arith.constant 5.000000e-01 : f32
    %67 = vector.broadcast %cst_29 : f32 to vector<8x128xf32>
    %68 = arith.mulf %67, %66 : vector<8x128xf32>
    %cst_30 = arith.constant 5.000000e-01 : f32
    %69 = vector.broadcast %cst_30 : f32 to vector<8x128xf32>
    %70 = arith.addf %68, %69 : vector<8x128xf32>
    %71 = vector.extract_strided_slice %54 {offsets = [0, 256], sizes = [8, 128], strides = [1, 1]} : vector<8x512xf32> to vector<8x128xf32>
    %72 = math.tanh %71 : vector<8x128xf32>
    %73 = vector.extract_strided_slice %54 {offsets = [0, 384], sizes = [8, 128], strides = [1, 1]} : vector<8x512xf32> to vector<8x128xf32>
    %cst_31 = arith.constant 5.000000e-01 : f32
    %74 = vector.broadcast %cst_31 : f32 to vector<8x128xf32>
    %75 = arith.mulf %74, %73 : vector<8x128xf32>
    %76 = math.tanh %75 : vector<8x128xf32>
    %cst_32 = arith.constant 5.000000e-01 : f32
    %77 = vector.broadcast %cst_32 : f32 to vector<8x128xf32>
    %78 = arith.mulf %77, %76 : vector<8x128xf32>
    %cst_33 = arith.constant 5.000000e-01 : f32
    %79 = vector.broadcast %cst_33 : f32 to vector<8x128xf32>
    %80 = arith.addf %78, %79 : vector<8x128xf32>
    %81 = arith.mulf %70, %48 : vector<8x128xf32>
    %82 = arith.mulf %62, %72 : vector<8x128xf32>
    %83 = arith.addf %81, %82 : vector<8x128xf32>
    %84 = math.tanh %83 : vector<8x128xf32>
    %85 = arith.mulf %80, %84 : vector<8x128xf32>
    %c16 = arith.constant 16 : index
    %c0_34 = arith.constant 0 : index
    %86 = vector.load %arg19[%c16, %c0_34] : memref<64x512xf32, #tpu.memory_space<vmem>>, vector<8x512xf32>
    %87 = arith.truncf %85 : vector<8x128xf32> to vector<8x128xbf16>
    %cst_35 = arith.constant dense<0.000000e+00> : vector<8x512xf32>
    %88 = tpu.matmul %87, %13, %cst_35 {dimension_numbers = #tpu.dot_dimension_numbers<[1], [0], [0], [1], [0, 0, 1, 1], [], []>} : vector<8x128xbf16>, vector<128x512xbf16>, vector<8x512xf32> -> vector<8x512xf32>
    %89 = arith.addf %86, %88 : vector<8x512xf32>
    %90 = vector.extract_strided_slice %89 {offsets = [0, 0], sizes = [8, 128], strides = [1, 1]} : vector<8x512xf32> to vector<8x128xf32>
    %cst_36 = arith.constant 5.000000e-01 : f32
    %91 = vector.broadcast %cst_36 : f32 to vector<8x128xf32>
    %92 = arith.mulf %91, %90 : vector<8x128xf32>
    %93 = math.tanh %92 : vector<8x128xf32>
    %cst_37 = arith.constant 5.000000e-01 : f32
    %94 = vector.broadcast %cst_37 : f32 to vector<8x128xf32>
    %95 = arith.mulf %94, %93 : vector<8x128xf32>
    %cst_38 = arith.constant 5.000000e-01 : f32
    %96 = vector.broadcast %cst_38 : f32 to vector<8x128xf32>
    %97 = arith.addf %95, %96 : vector<8x128xf32>
    %98 = vector.extract_strided_slice %89 {offsets = [0, 128], sizes = [8, 128], strides = [1, 1]} : vector<8x512xf32> to vector<8x128xf32>
    %cst_39 = arith.constant 5.000000e-01 : f32
    %99 = vector.broadcast %cst_39 : f32 to vector<8x128xf32>
    %100 = arith.mulf %99, %98 : vector<8x128xf32>
    %101 = math.tanh %100 : vector<8x128xf32>
    %cst_40 = arith.constant 5.000000e-01 : f32
    %102 = vector.broadcast %cst_40 : f32 to vector<8x128xf32>
    %103 = arith.mulf %102, %101 : vector<8x128xf32>
    %cst_41 = arith.constant 5.000000e-01 : f32
    %104 = vector.broadcast %cst_41 : f32 to vector<8x128xf32>
    %105 = arith.addf %103, %104 : vector<8x128xf32>
    %106 = vector.extract_strided_slice %89 {offsets = [0, 256], sizes = [8, 128], strides = [1, 1]} : vector<8x512xf32> to vector<8x128xf32>
    %107 = math.tanh %106 : vector<8x128xf32>
    %108 = vector.extract_strided_slice %89 {offsets = [0, 384], sizes = [8, 128], strides = [1, 1]} : vector<8x512xf32> to vector<8x128xf32>
    %cst_42 = arith.constant 5.000000e-01 : f32
    %109 = vector.broadcast %cst_42 : f32 to vector<8x128xf32>
    %110 = arith.mulf %109, %108 : vector<8x128xf32>
    %111 = math.tanh %110 : vector<8x128xf32>
    %cst_43 = arith.constant 5.000000e-01 : f32
    %112 = vector.broadcast %cst_43 : f32 to vector<8x128xf32>
    %113 = arith.mulf %112, %111 : vector<8x128xf32>
    %cst_44 = arith.constant 5.000000e-01 : f32
    %114 = vector.broadcast %cst_44 : f32 to vector<8x128xf32>
    %115 = arith.addf %113, %114 : vector<8x128xf32>
    %116 = arith.mulf %105, %83 : vector<8x128xf32>
    %117 = arith.mulf %97, %107 : vector<8x128xf32>
    %118 = arith.addf %116, %117 : vector<8x128xf32>
    %119 = math.tanh %118 : vector<8x128xf32>
    %120 = arith.mulf %115, %119 : vector<8x128xf32>
    %c24 = arith.constant 24 : index
    %c0_45 = arith.constant 0 : index
    %121 = vector.load %arg19[%c24, %c0_45] : memref<64x512xf32, #tpu.memory_space<vmem>>, vector<8x512xf32>
    %122 = arith.truncf %120 : vector<8x128xf32> to vector<8x128xbf16>
    %cst_46 = arith.constant dense<0.000000e+00> : vector<8x512xf32>
    %123 = tpu.matmul %122, %13, %cst_46 {dimension_numbers = #tpu.dot_dimension_numbers<[1], [0], [0], [1], [0, 0, 1, 1], [], []>} : vector<8x128xbf16>, vector<128x512xbf16>, vector<8x512xf32> -> vector<8x512xf32>
    %124 = arith.addf %121, %123 : vector<8x512xf32>
    %125 = vector.extract_strided_slice %124 {offsets = [0, 0], sizes = [8, 128], strides = [1, 1]} : vector<8x512xf32> to vector<8x128xf32>
    %cst_47 = arith.constant 5.000000e-01 : f32
    %126 = vector.broadcast %cst_47 : f32 to vector<8x128xf32>
    %127 = arith.mulf %126, %125 : vector<8x128xf32>
    %128 = math.tanh %127 : vector<8x128xf32>
    %cst_48 = arith.constant 5.000000e-01 : f32
    %129 = vector.broadcast %cst_48 : f32 to vector<8x128xf32>
    %130 = arith.mulf %129, %128 : vector<8x128xf32>
    %cst_49 = arith.constant 5.000000e-01 : f32
    %131 = vector.broadcast %cst_49 : f32 to vector<8x128xf32>
    %132 = arith.addf %130, %131 : vector<8x128xf32>
    %133 = vector.extract_strided_slice %124 {offsets = [0, 128], sizes = [8, 128], strides = [1, 1]} : vector<8x512xf32> to vector<8x128xf32>
    %cst_50 = arith.constant 5.000000e-01 : f32
    %134 = vector.broadcast %cst_50 : f32 to vector<8x128xf32>
    %135 = arith.mulf %134, %133 : vector<8x128xf32>
    %136 = math.tanh %135 : vector<8x128xf32>
    %cst_51 = arith.constant 5.000000e-01 : f32
    %137 = vector.broadcast %cst_51 : f32 to vector<8x128xf32>
    %138 = arith.mulf %137, %136 : vector<8x128xf32>
    %cst_52 = arith.constant 5.000000e-01 : f32
    %139 = vector.broadcast %cst_52 : f32 to vector<8x128xf32>
    %140 = arith.addf %138, %139 : vector<8x128xf32>
    %141 = vector.extract_strided_slice %124 {offsets = [0, 256], sizes = [8, 128], strides = [1, 1]} : vector<8x512xf32> to vector<8x128xf32>
    %142 = math.tanh %141 : vector<8x128xf32>
    %143 = vector.extract_strided_slice %124 {offsets = [0, 384], sizes = [8, 128], strides = [1, 1]} : vector<8x512xf32> to vector<8x128xf32>
    %cst_53 = arith.constant 5.000000e-01 : f32
    %144 = vector.broadcast %cst_53 : f32 to vector<8x128xf32>
    %145 = arith.mulf %144, %143 : vector<8x128xf32>
    %146 = math.tanh %145 : vector<8x128xf32>
    %cst_54 = arith.constant 5.000000e-01 : f32
    %147 = vector.broadcast %cst_54 : f32 to vector<8x128xf32>
    %148 = arith.mulf %147, %146 : vector<8x128xf32>
    %cst_55 = arith.constant 5.000000e-01 : f32
    %149 = vector.broadcast %cst_55 : f32 to vector<8x128xf32>
    %150 = arith.addf %148, %149 : vector<8x128xf32>
    %151 = arith.mulf %140, %118 : vector<8x128xf32>
    %152 = arith.mulf %132, %142 : vector<8x128xf32>
    %153 = arith.addf %151, %152 : vector<8x128xf32>
    %154 = math.tanh %153 : vector<8x128xf32>
    %155 = arith.mulf %150, %154 : vector<8x128xf32>
    %c32 = arith.constant 32 : index
    %c0_56 = arith.constant 0 : index
    %156 = vector.load %arg19[%c32, %c0_56] : memref<64x512xf32, #tpu.memory_space<vmem>>, vector<8x512xf32>
    %157 = arith.truncf %155 : vector<8x128xf32> to vector<8x128xbf16>
    %cst_57 = arith.constant dense<0.000000e+00> : vector<8x512xf32>
    %158 = tpu.matmul %157, %13, %cst_57 {dimension_numbers = #tpu.dot_dimension_numbers<[1], [0], [0], [1], [0, 0, 1, 1], [], []>} : vector<8x128xbf16>, vector<128x512xbf16>, vector<8x512xf32> -> vector<8x512xf32>
    %159 = arith.addf %156, %158 : vector<8x512xf32>
    %160 = vector.extract_strided_slice %159 {offsets = [0, 0], sizes = [8, 128], strides = [1, 1]} : vector<8x512xf32> to vector<8x128xf32>
    %cst_58 = arith.constant 5.000000e-01 : f32
    %161 = vector.broadcast %cst_58 : f32 to vector<8x128xf32>
    %162 = arith.mulf %161, %160 : vector<8x128xf32>
    %163 = math.tanh %162 : vector<8x128xf32>
    %cst_59 = arith.constant 5.000000e-01 : f32
    %164 = vector.broadcast %cst_59 : f32 to vector<8x128xf32>
    %165 = arith.mulf %164, %163 : vector<8x128xf32>
    %cst_60 = arith.constant 5.000000e-01 : f32
    %166 = vector.broadcast %cst_60 : f32 to vector<8x128xf32>
    %167 = arith.addf %165, %166 : vector<8x128xf32>
    %168 = vector.extract_strided_slice %159 {offsets = [0, 128], sizes = [8, 128], strides = [1, 1]} : vector<8x512xf32> to vector<8x128xf32>
    %cst_61 = arith.constant 5.000000e-01 : f32
    %169 = vector.broadcast %cst_61 : f32 to vector<8x128xf32>
    %170 = arith.mulf %169, %168 : vector<8x128xf32>
    %171 = math.tanh %170 : vector<8x128xf32>
    %cst_62 = arith.constant 5.000000e-01 : f32
    %172 = vector.broadcast %cst_62 : f32 to vector<8x128xf32>
    %173 = arith.mulf %172, %171 : vector<8x128xf32>
    %cst_63 = arith.constant 5.000000e-01 : f32
    %174 = vector.broadcast %cst_63 : f32 to vector<8x128xf32>
    %175 = arith.addf %173, %174 : vector<8x128xf32>
    %176 = vector.extract_strided_slice %159 {offsets = [0, 256], sizes = [8, 128], strides = [1, 1]} : vector<8x512xf32> to vector<8x128xf32>
    %177 = math.tanh %176 : vector<8x128xf32>
    %178 = vector.extract_strided_slice %159 {offsets = [0, 384], sizes = [8, 128], strides = [1, 1]} : vector<8x512xf32> to vector<8x128xf32>
    %cst_64 = arith.constant 5.000000e-01 : f32
    %179 = vector.broadcast %cst_64 : f32 to vector<8x128xf32>
    %180 = arith.mulf %179, %178 : vector<8x128xf32>
    %181 = math.tanh %180 : vector<8x128xf32>
    %cst_65 = arith.constant 5.000000e-01 : f32
    %182 = vector.broadcast %cst_65 : f32 to vector<8x128xf32>
    %183 = arith.mulf %182, %181 : vector<8x128xf32>
    %cst_66 = arith.constant 5.000000e-01 : f32
    %184 = vector.broadcast %cst_66 : f32 to vector<8x128xf32>
    %185 = arith.addf %183, %184 : vector<8x128xf32>
    %186 = arith.mulf %175, %153 : vector<8x128xf32>
    %187 = arith.mulf %167, %177 : vector<8x128xf32>
    %188 = arith.addf %186, %187 : vector<8x128xf32>
    %189 = math.tanh %188 : vector<8x128xf32>
    %190 = arith.mulf %185, %189 : vector<8x128xf32>
    %c40 = arith.constant 40 : index
    %c0_67 = arith.constant 0 : index
    %191 = vector.load %arg19[%c40, %c0_67] : memref<64x512xf32, #tpu.memory_space<vmem>>, vector<8x512xf32>
    %192 = arith.truncf %190 : vector<8x128xf32> to vector<8x128xbf16>
    %cst_68 = arith.constant dense<0.000000e+00> : vector<8x512xf32>
    %193 = tpu.matmul %192, %13, %cst_68 {dimension_numbers = #tpu.dot_dimension_numbers<[1], [0], [0], [1], [0, 0, 1, 1], [], []>} : vector<8x128xbf16>, vector<128x512xbf16>, vector<8x512xf32> -> vector<8x512xf32>
    %194 = arith.addf %191, %193 : vector<8x512xf32>
    %195 = vector.extract_strided_slice %194 {offsets = [0, 0], sizes = [8, 128], strides = [1, 1]} : vector<8x512xf32> to vector<8x128xf32>
    %cst_69 = arith.constant 5.000000e-01 : f32
    %196 = vector.broadcast %cst_69 : f32 to vector<8x128xf32>
    %197 = arith.mulf %196, %195 : vector<8x128xf32>
    %198 = math.tanh %197 : vector<8x128xf32>
    %cst_70 = arith.constant 5.000000e-01 : f32
    %199 = vector.broadcast %cst_70 : f32 to vector<8x128xf32>
    %200 = arith.mulf %199, %198 : vector<8x128xf32>
    %cst_71 = arith.constant 5.000000e-01 : f32
    %201 = vector.broadcast %cst_71 : f32 to vector<8x128xf32>
    %202 = arith.addf %200, %201 : vector<8x128xf32>
    %203 = vector.extract_strided_slice %194 {offsets = [0, 128], sizes = [8, 128], strides = [1, 1]} : vector<8x512xf32> to vector<8x128xf32>
    %cst_72 = arith.constant 5.000000e-01 : f32
    %204 = vector.broadcast %cst_72 : f32 to vector<8x128xf32>
    %205 = arith.mulf %204, %203 : vector<8x128xf32>
    %206 = math.tanh %205 : vector<8x128xf32>
    %cst_73 = arith.constant 5.000000e-01 : f32
    %207 = vector.broadcast %cst_73 : f32 to vector<8x128xf32>
    %208 = arith.mulf %207, %206 : vector<8x128xf32>
    %cst_74 = arith.constant 5.000000e-01 : f32
    %209 = vector.broadcast %cst_74 : f32 to vector<8x128xf32>
    %210 = arith.addf %208, %209 : vector<8x128xf32>
    %211 = vector.extract_strided_slice %194 {offsets = [0, 256], sizes = [8, 128], strides = [1, 1]} : vector<8x512xf32> to vector<8x128xf32>
    %212 = math.tanh %211 : vector<8x128xf32>
    %213 = vector.extract_strided_slice %194 {offsets = [0, 384], sizes = [8, 128], strides = [1, 1]} : vector<8x512xf32> to vector<8x128xf32>
    %cst_75 = arith.constant 5.000000e-01 : f32
    %214 = vector.broadcast %cst_75 : f32 to vector<8x128xf32>
    %215 = arith.mulf %214, %213 : vector<8x128xf32>
    %216 = math.tanh %215 : vector<8x128xf32>
    %cst_76 = arith.constant 5.000000e-01 : f32
    %217 = vector.broadcast %cst_76 : f32 to vector<8x128xf32>
    %218 = arith.mulf %217, %216 : vector<8x128xf32>
    %cst_77 = arith.constant 5.000000e-01 : f32
    %219 = vector.broadcast %cst_77 : f32 to vector<8x128xf32>
    %220 = arith.addf %218, %219 : vector<8x128xf32>
    %221 = arith.mulf %210, %188 : vector<8x128xf32>
    %222 = arith.mulf %202, %212 : vector<8x128xf32>
    %223 = arith.addf %221, %222 : vector<8x128xf32>
    %224 = math.tanh %223 : vector<8x128xf32>
    %225 = arith.mulf %220, %224 : vector<8x128xf32>
    %c48 = arith.constant 48 : index
    %c0_78 = arith.constant 0 : index
    %226 = vector.load %arg19[%c48, %c0_78] : memref<64x512xf32, #tpu.memory_space<vmem>>, vector<8x512xf32>
    %227 = arith.truncf %225 : vector<8x128xf32> to vector<8x128xbf16>
    %cst_79 = arith.constant dense<0.000000e+00> : vector<8x512xf32>
    %228 = tpu.matmul %227, %13, %cst_79 {dimension_numbers = #tpu.dot_dimension_numbers<[1], [0], [0], [1], [0, 0, 1, 1], [], []>} : vector<8x128xbf16>, vector<128x512xbf16>, vector<8x512xf32> -> vector<8x512xf32>
    %229 = arith.addf %226, %228 : vector<8x512xf32>
    %230 = vector.extract_strided_slice %229 {offsets = [0, 0], sizes = [8, 128], strides = [1, 1]} : vector<8x512xf32> to vector<8x128xf32>
    %cst_80 = arith.constant 5.000000e-01 : f32
    %231 = vector.broadcast %cst_80 : f32 to vector<8x128xf32>
    %232 = arith.mulf %231, %230 : vector<8x128xf32>
    %233 = math.tanh %232 : vector<8x128xf32>
    %cst_81 = arith.constant 5.000000e-01 : f32
    %234 = vector.broadcast %cst_81 : f32 to vector<8x128xf32>
    %235 = arith.mulf %234, %233 : vector<8x128xf32>
    %cst_82 = arith.constant 5.000000e-01 : f32
    %236 = vector.broadcast %cst_82 : f32 to vector<8x128xf32>
    %237 = arith.addf %235, %236 : vector<8x128xf32>
    %238 = vector.extract_strided_slice %229 {offsets = [0, 128], sizes = [8, 128], strides = [1, 1]} : vector<8x512xf32> to vector<8x128xf32>
    %cst_83 = arith.constant 5.000000e-01 : f32
    %239 = vector.broadcast %cst_83 : f32 to vector<8x128xf32>
    %240 = arith.mulf %239, %238 : vector<8x128xf32>
    %241 = math.tanh %240 : vector<8x128xf32>
    %cst_84 = arith.constant 5.000000e-01 : f32
    %242 = vector.broadcast %cst_84 : f32 to vector<8x128xf32>
    %243 = arith.mulf %242, %241 : vector<8x128xf32>
    %cst_85 = arith.constant 5.000000e-01 : f32
    %244 = vector.broadcast %cst_85 : f32 to vector<8x128xf32>
    %245 = arith.addf %243, %244 : vector<8x128xf32>
    %246 = vector.extract_strided_slice %229 {offsets = [0, 256], sizes = [8, 128], strides = [1, 1]} : vector<8x512xf32> to vector<8x128xf32>
    %247 = math.tanh %246 : vector<8x128xf32>
    %248 = vector.extract_strided_slice %229 {offsets = [0, 384], sizes = [8, 128], strides = [1, 1]} : vector<8x512xf32> to vector<8x128xf32>
    %cst_86 = arith.constant 5.000000e-01 : f32
    %249 = vector.broadcast %cst_86 : f32 to vector<8x128xf32>
    %250 = arith.mulf %249, %248 : vector<8x128xf32>
    %251 = math.tanh %250 : vector<8x128xf32>
    %cst_87 = arith.constant 5.000000e-01 : f32
    %252 = vector.broadcast %cst_87 : f32 to vector<8x128xf32>
    %253 = arith.mulf %252, %251 : vector<8x128xf32>
    %cst_88 = arith.constant 5.000000e-01 : f32
    %254 = vector.broadcast %cst_88 : f32 to vector<8x128xf32>
    %255 = arith.addf %253, %254 : vector<8x128xf32>
    %256 = arith.mulf %245, %223 : vector<8x128xf32>
    %257 = arith.mulf %237, %247 : vector<8x128xf32>
    %258 = arith.addf %256, %257 : vector<8x128xf32>
    %259 = math.tanh %258 : vector<8x128xf32>
    %260 = arith.mulf %255, %259 : vector<8x128xf32>
    %c56 = arith.constant 56 : index
    %c0_89 = arith.constant 0 : index
    %261 = vector.load %arg19[%c56, %c0_89] : memref<64x512xf32, #tpu.memory_space<vmem>>, vector<8x512xf32>
    %262 = arith.truncf %260 : vector<8x128xf32> to vector<8x128xbf16>
    %cst_90 = arith.constant dense<0.000000e+00> : vector<8x512xf32>
    %263 = tpu.matmul %262, %13, %cst_90 {dimension_numbers = #tpu.dot_dimension_numbers<[1], [0], [0], [1], [0, 0, 1, 1], [], []>} : vector<8x128xbf16>, vector<128x512xbf16>, vector<8x512xf32> -> vector<8x512xf32>
    %264 = arith.addf %261, %263 : vector<8x512xf32>
    %265 = vector.extract_strided_slice %264 {offsets = [0, 0], sizes = [8, 128], strides = [1, 1]} : vector<8x512xf32> to vector<8x128xf32>
    %cst_91 = arith.constant 5.000000e-01 : f32
    %266 = vector.broadcast %cst_91 : f32 to vector<8x128xf32>
    %267 = arith.mulf %266, %265 : vector<8x128xf32>
    %268 = math.tanh %267 : vector<8x128xf32>
    %cst_92 = arith.constant 5.000000e-01 : f32
    %269 = vector.broadcast %cst_92 : f32 to vector<8x128xf32>
    %270 = arith.mulf %269, %268 : vector<8x128xf32>
    %cst_93 = arith.constant 5.000000e-01 : f32
    %271 = vector.broadcast %cst_93 : f32 to vector<8x128xf32>
    %272 = arith.addf %270, %271 : vector<8x128xf32>
    %273 = vector.extract_strided_slice %264 {offsets = [0, 128], sizes = [8, 128], strides = [1, 1]} : vector<8x512xf32> to vector<8x128xf32>
    %cst_94 = arith.constant 5.000000e-01 : f32
    %274 = vector.broadcast %cst_94 : f32 to vector<8x128xf32>
    %275 = arith.mulf %274, %273 : vector<8x128xf32>
    %276 = math.tanh %275 : vector<8x128xf32>
    %cst_95 = arith.constant 5.000000e-01 : f32
    %277 = vector.broadcast %cst_95 : f32 to vector<8x128xf32>
    %278 = arith.mulf %277, %276 : vector<8x128xf32>
    %cst_96 = arith.constant 5.000000e-01 : f32
    %279 = vector.broadcast %cst_96 : f32 to vector<8x128xf32>
    %280 = arith.addf %278, %279 : vector<8x128xf32>
    %281 = vector.extract_strided_slice %264 {offsets = [0, 256], sizes = [8, 128], strides = [1, 1]} : vector<8x512xf32> to vector<8x128xf32>
    %282 = math.tanh %281 : vector<8x128xf32>
    %283 = vector.extract_strided_slice %264 {offsets = [0, 384], sizes = [8, 128], strides = [1, 1]} : vector<8x512xf32> to vector<8x128xf32>
    %cst_97 = arith.constant 5.000000e-01 : f32
    %284 = vector.broadcast %cst_97 : f32 to vector<8x128xf32>
    %285 = arith.mulf %284, %283 : vector<8x128xf32>
    %286 = math.tanh %285 : vector<8x128xf32>
    %cst_98 = arith.constant 5.000000e-01 : f32
    %287 = vector.broadcast %cst_98 : f32 to vector<8x128xf32>
    %288 = arith.mulf %287, %286 : vector<8x128xf32>
    %cst_99 = arith.constant 5.000000e-01 : f32
    %289 = vector.broadcast %cst_99 : f32 to vector<8x128xf32>
    %290 = arith.addf %288, %289 : vector<8x128xf32>
    %291 = arith.mulf %280, %258 : vector<8x128xf32>
    %292 = arith.mulf %272, %282 : vector<8x128xf32>
    %293 = arith.addf %291, %292 : vector<8x128xf32>
    %294 = math.tanh %293 : vector<8x128xf32>
    %295 = arith.mulf %290, %294 : vector<8x128xf32>
    %296 = arith.truncf %295 : vector<8x128xf32> to vector<8x128xbf16>
    %c0_100 = arith.constant 0 : index
    %c0_101 = arith.constant 0 : index
    %297 = vector.load %arg5[%c0_100, %c0_101] : memref<128x32xbf16, #tpu.memory_space<vmem>>, vector<128x32xbf16>
    %cst_102 = arith.constant dense<0.000000e+00> : vector<8x32xf32>
    %298 = tpu.matmul %296, %297, %cst_102 {dimension_numbers = #tpu.dot_dimension_numbers<[1], [0], [0], [1], [0, 0, 1, 1], [], []>} : vector<8x128xbf16>, vector<128x32xbf16>, vector<8x32xf32> -> vector<8x32xf32>
    %c0_103 = arith.constant 0 : index
    %c0_104 = arith.constant 0 : index
    %299 = vector.load %arg6[%c0_103, %c0_104] : memref<1x32xf32, #tpu.memory_space<vmem>>, vector<1x32xf32>
    %300 = vector.broadcast %299 : vector<1x32xf32> to vector<8x32xf32>
    %301 = arith.addf %298, %300 : vector<8x32xf32>
    %c0_105 = arith.constant 0 : index
    %c0_106 = arith.constant 0 : index
    %302 = vector.load %arg7[%c0_105, %c0_106] : memref<128x32xbf16, #tpu.memory_space<vmem>>, vector<128x32xbf16>
    %cst_107 = arith.constant dense<0.000000e+00> : vector<8x32xf32>
    %303 = tpu.matmul %296, %302, %cst_107 {dimension_numbers = #tpu.dot_dimension_numbers<[1], [0], [0], [1], [0, 0, 1, 1], [], []>} : vector<8x128xbf16>, vector<128x32xbf16>, vector<8x32xf32> -> vector<8x32xf32>
    %c0_108 = arith.constant 0 : index
    %c0_109 = arith.constant 0 : index
    %304 = vector.load %arg8[%c0_108, %c0_109] : memref<1x32xf32, #tpu.memory_space<vmem>>, vector<1x32xf32>
    %305 = vector.broadcast %304 : vector<1x32xf32> to vector<8x32xf32>
    %306 = arith.addf %303, %305 : vector<8x32xf32>
    %c0_110 = arith.constant 0 : index
    %c0_111 = arith.constant 0 : index
    %307 = vector.load %arg17[%c0_110, %c0_111] : memref<8x32xf32, #tpu.memory_space<vmem>>, vector<8x32xf32>
    tpu.vector_store %arg17[%c0_110, %c0_111], %301 {strides = array<i32>} : memref<8x32xf32, #tpu.memory_space<vmem>>, vector<8x32xf32>,
    %c0_112 = arith.constant 0 : index
    %c0_113 = arith.constant 0 : index
    %308 = vector.load %arg18[%c0_112, %c0_113] : memref<8x32xf32, #tpu.memory_space<vmem>>, vector<8x32xf32>
    tpu.vector_store %arg18[%c0_112, %c0_113], %306 {strides = array<i32>} : memref<8x32xf32, #tpu.memory_space<vmem>>, vector<8x32xf32>,
    %c0_114 = arith.constant 0 : index
    %c0_115 = arith.constant 0 : index
    %309 = vector.load %arg9[%c0_114, %c0_115] : memref<8x32xf32, #tpu.memory_space<vmem>>, vector<8x32xf32>
    %cst_116 = arith.constant 5.000000e-01 : f32
    %310 = vector.broadcast %cst_116 : f32 to vector<8x32xf32>
    %311 = arith.mulf %310, %306 : vector<8x32xf32>
    %312 = math.exp %311 : vector<8x32xf32>
    %313 = arith.mulf %309, %312 : vector<8x32xf32>
    %314 = arith.addf %301, %313 : vector<8x32xf32>
    %c0_117 = arith.constant 0 : index
    %c0_118 = arith.constant 0 : index
    %315 = vector.load %arg11[%c0_117, %c0_118] : memref<128x512xbf16, #tpu.memory_space<vmem>>, vector<128x512xbf16>
    %c0_119 = arith.constant 0 : index
    %c0_120 = arith.constant 0 : index
    %316 = vector.load %arg12[%c0_119, %c0_120] : memref<128x512xbf16, #tpu.memory_space<vmem>>, vector<128x512xbf16>
    %c0_121 = arith.constant 0 : index
    %c0_122 = arith.constant 0 : index
    %317 = vector.load %arg13[%c0_121, %c0_122] : memref<1x512xf32, #tpu.memory_space<vmem>>, vector<1x512xf32>
    %318 = vector.shape_cast %317 : vector<1x512xf32> to vector<1x512xf32>
    %319 = vector.broadcast %318 : vector<1x512xf32> to vector<8x512xf32>
    %c0_123 = arith.constant 0 : index
    %c0_124 = arith.constant 0 : index
    %320 = vector.load %arg14[%c0_123, %c0_124] : memref<128x128xbf16, #tpu.memory_space<vmem>>, vector<128x128xbf16>
    %c0_125 = arith.constant 0 : index
    %c0_126 = arith.constant 0 : index
    %321 = vector.load %arg15[%c0_125, %c0_126] : memref<1x128xf32, #tpu.memory_space<vmem>>, vector<1x128xf32>
    %322 = vector.shape_cast %321 : vector<1x128xf32> to vector<1x128xf32>
    %323 = vector.broadcast %322 : vector<1x128xf32> to vector<8x128xf32>
    %324 = arith.truncf %314 : vector<8x32xf32> to vector<8x32xbf16>
    %c0_127 = arith.constant 0 : index
    %c0_128 = arith.constant 0 : index
    %325 = vector.load %arg10[%c0_127, %c0_128] : memref<32x512xbf16, #tpu.memory_space<vmem>>, vector<32x512xbf16>
    %cst_129 = arith.constant dense<0.000000e+00> : vector<8x512xf32>
    %326 = tpu.matmul %324, %325, %cst_129 {dimension_numbers = #tpu.dot_dimension_numbers<[1], [0], [0], [1], [0, 0, 1, 1], [], []>} : vector<8x32xbf16>, vector<32x512xbf16>, vector<8x512xf32> -> vector<8x512xf32>
    %cst_130 = arith.constant 0.000000e+00 : f32
    %327 = vector.broadcast %cst_130 : f32 to vector<8x128xf32>
    %cst_131 = arith.constant 0.000000e+00 : f32
    %328 = vector.broadcast %cst_131 : f32 to vector<8x128xf32>
    %329 = arith.truncf %327 : vector<8x128xf32> to vector<8x128xbf16>
    %cst_132 = arith.constant dense<0.000000e+00> : vector<8x512xf32>
    %330 = tpu.matmul %329, %316, %cst_132 {dimension_numbers = #tpu.dot_dimension_numbers<[1], [0], [0], [1], [0, 0, 1, 1], [], []>} : vector<8x128xbf16>, vector<128x512xbf16>, vector<8x512xf32> -> vector<8x512xf32>
    %331 = arith.addf %326, %330 : vector<8x512xf32>
    %332 = arith.addf %331, %319 : vector<8x512xf32>
    %333 = vector.extract_strided_slice %332 {offsets = [0, 0], sizes = [8, 128], strides = [1, 1]} : vector<8x512xf32> to vector<8x128xf32>
    %cst_133 = arith.constant 5.000000e-01 : f32
    %334 = vector.broadcast %cst_133 : f32 to vector<8x128xf32>
    %335 = arith.mulf %334, %333 : vector<8x128xf32>
    %336 = math.tanh %335 : vector<8x128xf32>
    %cst_134 = arith.constant 5.000000e-01 : f32
    %337 = vector.broadcast %cst_134 : f32 to vector<8x128xf32>
    %338 = arith.mulf %337, %336 : vector<8x128xf32>
    %cst_135 = arith.constant 5.000000e-01 : f32
    %339 = vector.broadcast %cst_135 : f32 to vector<8x128xf32>
    %340 = arith.addf %338, %339 : vector<8x128xf32>
    %341 = vector.extract_strided_slice %332 {offsets = [0, 128], sizes = [8, 128], strides = [1, 1]} : vector<8x512xf32> to vector<8x128xf32>
    %cst_136 = arith.constant 5.000000e-01 : f32
    %342 = vector.broadcast %cst_136 : f32 to vector<8x128xf32>
    %343 = arith.mulf %342, %341 : vector<8x128xf32>
    %344 = math.tanh %343 : vector<8x128xf32>
    %cst_137 = arith.constant 5.000000e-01 : f32
    %345 = vector.broadcast %cst_137 : f32 to vector<8x128xf32>
    %346 = arith.mulf %345, %344 : vector<8x128xf32>
    %cst_138 = arith.constant 5.000000e-01 : f32
    %347 = vector.broadcast %cst_138 : f32 to vector<8x128xf32>
    %348 = arith.addf %346, %347 : vector<8x128xf32>
    %349 = vector.extract_strided_slice %332 {offsets = [0, 256], sizes = [8, 128], strides = [1, 1]} : vector<8x512xf32> to vector<8x128xf32>
    %350 = math.tanh %349 : vector<8x128xf32>
    %351 = vector.extract_strided_slice %332 {offsets = [0, 384], sizes = [8, 128], strides = [1, 1]} : vector<8x512xf32> to vector<8x128xf32>
    %cst_139 = arith.constant 5.000000e-01 : f32
    %352 = vector.broadcast %cst_139 : f32 to vector<8x128xf32>
    %353 = arith.mulf %352, %351 : vector<8x128xf32>
    %354 = math.tanh %353 : vector<8x128xf32>
    %cst_140 = arith.constant 5.000000e-01 : f32
    %355 = vector.broadcast %cst_140 : f32 to vector<8x128xf32>
    %356 = arith.mulf %355, %354 : vector<8x128xf32>
    %cst_141 = arith.constant 5.000000e-01 : f32
    %357 = vector.broadcast %cst_141 : f32 to vector<8x128xf32>
    %358 = arith.addf %356, %357 : vector<8x128xf32>
    %359 = arith.mulf %348, %328 : vector<8x128xf32>
    %360 = arith.mulf %340, %350 : vector<8x128xf32>
    %361 = arith.addf %359, %360 : vector<8x128xf32>
    %362 = math.tanh %361 : vector<8x128xf32>
    %363 = arith.mulf %358, %362 : vector<8x128xf32>
    %364 = arith.truncf %363 : vector<8x128xf32> to vector<8x128xbf16>
    %cst_142 = arith.constant dense<0.000000e+00> : vector<8x128xf32>
    %365 = tpu.matmul %364, %320, %cst_142 {dimension_numbers = #tpu.dot_dimension_numbers<[1], [0], [0], [1], [0, 0, 1, 1], [], []>} : vector<8x128xbf16>, vector<128x128xbf16>, vector<8x128xf32> -> vector<8x128xf32>
    %366 = arith.addf %365, %323 : vector<8x128xf32>
    %c0_143 = arith.constant 0 : index
    %c0_144 = arith.constant 0 : index
    %367 = vector.load %arg16[%c0_143, %c0_144] : memref<8x1024xf32, #tpu.memory_space<vmem>>, vector<8x128xf32>
    tpu.vector_store %arg16[%c0_143, %c0_144], %366 {strides = array<i32>} : memref<8x1024xf32, #tpu.memory_space<vmem>>, vector<8x128xf32>,
    %cst_145 = arith.constant dense<0xFF800000> : vector<8xf32>
    %368 = vector.multi_reduction <maximumf>, %366, %cst_145 [1] : vector<8x128xf32> to vector<8xf32>
    %369 = vector.shape_cast %368 : vector<8xf32> to vector<8x1xf32>
    %370 = vector.broadcast %369 : vector<8x1xf32> to vector<8x128xf32>
    %371 = arith.cmpf oeq, %366, %370 : vector<8x128xf32>
    %372 = arith.extui %371 : vector<8x128xi1> to vector<8x128xi32>
    %373 = arith.sitofp %372 : vector<8x128xi32> to vector<8x128xf32>
    %374 = arith.truncf %373 : vector<8x128xf32> to vector<8x128xbf16>
    %cst_146 = arith.constant dense<0.000000e+00> : vector<8x512xf32>
    %375 = tpu.matmul %374, %315, %cst_146 {dimension_numbers = #tpu.dot_dimension_numbers<[1], [0], [0], [1], [0, 0, 1, 1], [], []>} : vector<8x128xbf16>, vector<128x512xbf16>, vector<8x512xf32> -> vector<8x512xf32>
    %376 = arith.truncf %363 : vector<8x128xf32> to vector<8x128xbf16>
    %cst_147 = arith.constant dense<0.000000e+00> : vector<8x512xf32>
    %377 = tpu.matmul %376, %316, %cst_147 {dimension_numbers = #tpu.dot_dimension_numbers<[1], [0], [0], [1], [0, 0, 1, 1], [], []>} : vector<8x128xbf16>, vector<128x512xbf16>, vector<8x512xf32> -> vector<8x512xf32>
    %378 = arith.addf %375, %377 : vector<8x512xf32>
    %379 = arith.addf %378, %319 : vector<8x512xf32>
    %380 = vector.extract_strided_slice %379 {offsets = [0, 0], sizes = [8, 128], strides = [1, 1]} : vector<8x512xf32> to vector<8x128xf32>
    %cst_148 = arith.constant 5.000000e-01 : f32
    %381 = vector.broadcast %cst_148 : f32 to vector<8x128xf32>
    %382 = arith.mulf %381, %380 : vector<8x128xf32>
    %383 = math.tanh %382 : vector<8x128xf32>
    %cst_149 = arith.constant 5.000000e-01 : f32
    %384 = vector.broadcast %cst_149 : f32 to vector<8x128xf32>
    %385 = arith.mulf %384, %383 : vector<8x128xf32>
    %cst_150 = arith.constant 5.000000e-01 : f32
    %386 = vector.broadcast %cst_150 : f32 to vector<8x128xf32>
    %387 = arith.addf %385, %386 : vector<8x128xf32>
    %388 = vector.extract_strided_slice %379 {offsets = [0, 128], sizes = [8, 128], strides = [1, 1]} : vector<8x512xf32> to vector<8x128xf32>
    %cst_151 = arith.constant 5.000000e-01 : f32
    %389 = vector.broadcast %cst_151 : f32 to vector<8x128xf32>
    %390 = arith.mulf %389, %388 : vector<8x128xf32>
    %391 = math.tanh %390 : vector<8x128xf32>
    %cst_152 = arith.constant 5.000000e-01 : f32
    %392 = vector.broadcast %cst_152 : f32 to vector<8x128xf32>
    %393 = arith.mulf %392, %391 : vector<8x128xf32>
    %cst_153 = arith.constant 5.000000e-01 : f32
    %394 = vector.broadcast %cst_153 : f32 to vector<8x128xf32>
    %395 = arith.addf %393, %394 : vector<8x128xf32>
    %396 = vector.extract_strided_slice %379 {offsets = [0, 256], sizes = [8, 128], strides = [1, 1]} : vector<8x512xf32> to vector<8x128xf32>
    %397 = math.tanh %396 : vector<8x128xf32>
    %398 = vector.extract_strided_slice %379 {offsets = [0, 384], sizes = [8, 128], strides = [1, 1]} : vector<8x512xf32> to vector<8x128xf32>
    %cst_154 = arith.constant 5.000000e-01 : f32
    %399 = vector.broadcast %cst_154 : f32 to vector<8x128xf32>
    %400 = arith.mulf %399, %398 : vector<8x128xf32>
    %401 = math.tanh %400 : vector<8x128xf32>
    %cst_155 = arith.constant 5.000000e-01 : f32
    %402 = vector.broadcast %cst_155 : f32 to vector<8x128xf32>
    %403 = arith.mulf %402, %401 : vector<8x128xf32>
    %cst_156 = arith.constant 5.000000e-01 : f32
    %404 = vector.broadcast %cst_156 : f32 to vector<8x128xf32>
    %405 = arith.addf %403, %404 : vector<8x128xf32>
    %406 = arith.mulf %395, %361 : vector<8x128xf32>
    %407 = arith.mulf %387, %397 : vector<8x128xf32>
    %408 = arith.addf %406, %407 : vector<8x128xf32>
    %409 = math.tanh %408 : vector<8x128xf32>
    %410 = arith.mulf %405, %409 : vector<8x128xf32>
    %411 = arith.truncf %410 : vector<8x128xf32> to vector<8x128xbf16>
    %cst_157 = arith.constant dense<0.000000e+00> : vector<8x128xf32>
    %412 = tpu.matmul %411, %320, %cst_157 {dimension_numbers = #tpu.dot_dimension_numbers<[1], [0], [0], [1], [0, 0, 1, 1], [], []>} : vector<8x128xbf16>, vector<128x128xbf16>, vector<8x128xf32> -> vector<8x128xf32>
    %413 = arith.addf %412, %323 : vector<8x128xf32>
    %c0_158 = arith.constant 0 : index
    %c128 = arith.constant 128 : index
    %414 = vector.load %arg16[%c0_158, %c128] : memref<8x1024xf32, #tpu.memory_space<vmem>>, vector<8x128xf32>
    tpu.vector_store %arg16[%c0_158, %c128], %413 {strides = array<i32>} : memref<8x1024xf32, #tpu.memory_space<vmem>>, vector<8x128xf32>,
    %cst_159 = arith.constant dense<0xFF800000> : vector<8xf32>
    %415 = vector.multi_reduction <maximumf>, %413, %cst_159 [1] : vector<8x128xf32> to vector<8xf32>
    %416 = vector.shape_cast %415 : vector<8xf32> to vector<8x1xf32>
    %417 = vector.broadcast %416 : vector<8x1xf32> to vector<8x128xf32>
    %418 = arith.cmpf oeq, %413, %417 : vector<8x128xf32>
    %419 = arith.extui %418 : vector<8x128xi1> to vector<8x128xi32>
    %420 = arith.sitofp %419 : vector<8x128xi32> to vector<8x128xf32>
    %421 = arith.truncf %420 : vector<8x128xf32> to vector<8x128xbf16>
    %cst_160 = arith.constant dense<0.000000e+00> : vector<8x512xf32>
    %422 = tpu.matmul %421, %315, %cst_160 {dimension_numbers = #tpu.dot_dimension_numbers<[1], [0], [0], [1], [0, 0, 1, 1], [], []>} : vector<8x128xbf16>, vector<128x512xbf16>, vector<8x512xf32> -> vector<8x512xf32>
    %423 = arith.truncf %410 : vector<8x128xf32> to vector<8x128xbf16>
    %cst_161 = arith.constant dense<0.000000e+00> : vector<8x512xf32>
    %424 = tpu.matmul %423, %316, %cst_161 {dimension_numbers = #tpu.dot_dimension_numbers<[1], [0], [0], [1], [0, 0, 1, 1], [], []>} : vector<8x128xbf16>, vector<128x512xbf16>, vector<8x512xf32> -> vector<8x512xf32>
    %425 = arith.addf %422, %424 : vector<8x512xf32>
    %426 = arith.addf %425, %319 : vector<8x512xf32>
    %427 = vector.extract_strided_slice %426 {offsets = [0, 0], sizes = [8, 128], strides = [1, 1]} : vector<8x512xf32> to vector<8x128xf32>
    %cst_162 = arith.constant 5.000000e-01 : f32
    %428 = vector.broadcast %cst_162 : f32 to vector<8x128xf32>
    %429 = arith.mulf %428, %427 : vector<8x128xf32>
    %430 = math.tanh %429 : vector<8x128xf32>
    %cst_163 = arith.constant 5.000000e-01 : f32
    %431 = vector.broadcast %cst_163 : f32 to vector<8x128xf32>
    %432 = arith.mulf %431, %430 : vector<8x128xf32>
    %cst_164 = arith.constant 5.000000e-01 : f32
    %433 = vector.broadcast %cst_164 : f32 to vector<8x128xf32>
    %434 = arith.addf %432, %433 : vector<8x128xf32>
    %435 = vector.extract_strided_slice %426 {offsets = [0, 128], sizes = [8, 128], strides = [1, 1]} : vector<8x512xf32> to vector<8x128xf32>
    %cst_165 = arith.constant 5.000000e-01 : f32
    %436 = vector.broadcast %cst_165 : f32 to vector<8x128xf32>
    %437 = arith.mulf %436, %435 : vector<8x128xf32>
    %438 = math.tanh %437 : vector<8x128xf32>
    %cst_166 = arith.constant 5.000000e-01 : f32
    %439 = vector.broadcast %cst_166 : f32 to vector<8x128xf32>
    %440 = arith.mulf %439, %438 : vector<8x128xf32>
    %cst_167 = arith.constant 5.000000e-01 : f32
    %441 = vector.broadcast %cst_167 : f32 to vector<8x128xf32>
    %442 = arith.addf %440, %441 : vector<8x128xf32>
    %443 = vector.extract_strided_slice %426 {offsets = [0, 256], sizes = [8, 128], strides = [1, 1]} : vector<8x512xf32> to vector<8x128xf32>
    %444 = math.tanh %443 : vector<8x128xf32>
    %445 = vector.extract_strided_slice %426 {offsets = [0, 384], sizes = [8, 128], strides = [1, 1]} : vector<8x512xf32> to vector<8x128xf32>
    %cst_168 = arith.constant 5.000000e-01 : f32
    %446 = vector.broadcast %cst_168 : f32 to vector<8x128xf32>
    %447 = arith.mulf %446, %445 : vector<8x128xf32>
    %448 = math.tanh %447 : vector<8x128xf32>
    %cst_169 = arith.constant 5.000000e-01 : f32
    %449 = vector.broadcast %cst_169 : f32 to vector<8x128xf32>
    %450 = arith.mulf %449, %448 : vector<8x128xf32>
    %cst_170 = arith.constant 5.000000e-01 : f32
    %451 = vector.broadcast %cst_170 : f32 to vector<8x128xf32>
    %452 = arith.addf %450, %451 : vector<8x128xf32>
    %453 = arith.mulf %442, %408 : vector<8x128xf32>
    %454 = arith.mulf %434, %444 : vector<8x128xf32>
    %455 = arith.addf %453, %454 : vector<8x128xf32>
    %456 = math.tanh %455 : vector<8x128xf32>
    %457 = arith.mulf %452, %456 : vector<8x128xf32>
    %458 = arith.truncf %457 : vector<8x128xf32> to vector<8x128xbf16>
    %cst_171 = arith.constant dense<0.000000e+00> : vector<8x128xf32>
    %459 = tpu.matmul %458, %320, %cst_171 {dimension_numbers = #tpu.dot_dimension_numbers<[1], [0], [0], [1], [0, 0, 1, 1], [], []>} : vector<8x128xbf16>, vector<128x128xbf16>, vector<8x128xf32> -> vector<8x128xf32>
    %460 = arith.addf %459, %323 : vector<8x128xf32>
    %c0_172 = arith.constant 0 : index
    %c256 = arith.constant 256 : index
    %461 = vector.load %arg16[%c0_172, %c256] : memref<8x1024xf32, #tpu.memory_space<vmem>>, vector<8x128xf32>
    tpu.vector_store %arg16[%c0_172, %c256], %460 {strides = array<i32>} : memref<8x1024xf32, #tpu.memory_space<vmem>>, vector<8x128xf32>,
    %cst_173 = arith.constant dense<0xFF800000> : vector<8xf32>
    %462 = vector.multi_reduction <maximumf>, %460, %cst_173 [1] : vector<8x128xf32> to vector<8xf32>
    %463 = vector.shape_cast %462 : vector<8xf32> to vector<8x1xf32>
    %464 = vector.broadcast %463 : vector<8x1xf32> to vector<8x128xf32>
    %465 = arith.cmpf oeq, %460, %464 : vector<8x128xf32>
    %466 = arith.extui %465 : vector<8x128xi1> to vector<8x128xi32>
    %467 = arith.sitofp %466 : vector<8x128xi32> to vector<8x128xf32>
    %468 = arith.truncf %467 : vector<8x128xf32> to vector<8x128xbf16>
    %cst_174 = arith.constant dense<0.000000e+00> : vector<8x512xf32>
    %469 = tpu.matmul %468, %315, %cst_174 {dimension_numbers = #tpu.dot_dimension_numbers<[1], [0], [0], [1], [0, 0, 1, 1], [], []>} : vector<8x128xbf16>, vector<128x512xbf16>, vector<8x512xf32> -> vector<8x512xf32>
    %470 = arith.truncf %457 : vector<8x128xf32> to vector<8x128xbf16>
    %cst_175 = arith.constant dense<0.000000e+00> : vector<8x512xf32>
    %471 = tpu.matmul %470, %316, %cst_175 {dimension_numbers = #tpu.dot_dimension_numbers<[1], [0], [0], [1], [0, 0, 1, 1], [], []>} : vector<8x128xbf16>, vector<128x512xbf16>, vector<8x512xf32> -> vector<8x512xf32>
    %472 = arith.addf %469, %471 : vector<8x512xf32>
    %473 = arith.addf %472, %319 : vector<8x512xf32>
    %474 = vector.extract_strided_slice %473 {offsets = [0, 0], sizes = [8, 128], strides = [1, 1]} : vector<8x512xf32> to vector<8x128xf32>
    %cst_176 = arith.constant 5.000000e-01 : f32
    %475 = vector.broadcast %cst_176 : f32 to vector<8x128xf32>
    %476 = arith.mulf %475, %474 : vector<8x128xf32>
    %477 = math.tanh %476 : vector<8x128xf32>
    %cst_177 = arith.constant 5.000000e-01 : f32
    %478 = vector.broadcast %cst_177 : f32 to vector<8x128xf32>
    %479 = arith.mulf %478, %477 : vector<8x128xf32>
    %cst_178 = arith.constant 5.000000e-01 : f32
    %480 = vector.broadcast %cst_178 : f32 to vector<8x128xf32>
    %481 = arith.addf %479, %480 : vector<8x128xf32>
    %482 = vector.extract_strided_slice %473 {offsets = [0, 128], sizes = [8, 128], strides = [1, 1]} : vector<8x512xf32> to vector<8x128xf32>
    %cst_179 = arith.constant 5.000000e-01 : f32
    %483 = vector.broadcast %cst_179 : f32 to vector<8x128xf32>
    %484 = arith.mulf %483, %482 : vector<8x128xf32>
    %485 = math.tanh %484 : vector<8x128xf32>
    %cst_180 = arith.constant 5.000000e-01 : f32
    %486 = vector.broadcast %cst_180 : f32 to vector<8x128xf32>
    %487 = arith.mulf %486, %485 : vector<8x128xf32>
    %cst_181 = arith.constant 5.000000e-01 : f32
    %488 = vector.broadcast %cst_181 : f32 to vector<8x128xf32>
    %489 = arith.addf %487, %488 : vector<8x128xf32>
    %490 = vector.extract_strided_slice %473 {offsets = [0, 256], sizes = [8, 128], strides = [1, 1]} : vector<8x512xf32> to vector<8x128xf32>
    %491 = math.tanh %490 : vector<8x128xf32>
    %492 = vector.extract_strided_slice %473 {offsets = [0, 384], sizes = [8, 128], strides = [1, 1]} : vector<8x512xf32> to vector<8x128xf32>
    %cst_182 = arith.constant 5.000000e-01 : f32
    %493 = vector.broadcast %cst_182 : f32 to vector<8x128xf32>
    %494 = arith.mulf %493, %492 : vector<8x128xf32>
    %495 = math.tanh %494 : vector<8x128xf32>
    %cst_183 = arith.constant 5.000000e-01 : f32
    %496 = vector.broadcast %cst_183 : f32 to vector<8x128xf32>
    %497 = arith.mulf %496, %495 : vector<8x128xf32>
    %cst_184 = arith.constant 5.000000e-01 : f32
    %498 = vector.broadcast %cst_184 : f32 to vector<8x128xf32>
    %499 = arith.addf %497, %498 : vector<8x128xf32>
    %500 = arith.mulf %489, %455 : vector<8x128xf32>
    %501 = arith.mulf %481, %491 : vector<8x128xf32>
    %502 = arith.addf %500, %501 : vector<8x128xf32>
    %503 = math.tanh %502 : vector<8x128xf32>
    %504 = arith.mulf %499, %503 : vector<8x128xf32>
    %505 = arith.truncf %504 : vector<8x128xf32> to vector<8x128xbf16>
    %cst_185 = arith.constant dense<0.000000e+00> : vector<8x128xf32>
    %506 = tpu.matmul %505, %320, %cst_185 {dimension_numbers = #tpu.dot_dimension_numbers<[1], [0], [0], [1], [0, 0, 1, 1], [], []>} : vector<8x128xbf16>, vector<128x128xbf16>, vector<8x128xf32> -> vector<8x128xf32>
    %507 = arith.addf %506, %323 : vector<8x128xf32>
    %c0_186 = arith.constant 0 : index
    %c384 = arith.constant 384 : index
    %508 = vector.load %arg16[%c0_186, %c384] : memref<8x1024xf32, #tpu.memory_space<vmem>>, vector<8x128xf32>
    tpu.vector_store %arg16[%c0_186, %c384], %507 {strides = array<i32>} : memref<8x1024xf32, #tpu.memory_space<vmem>>, vector<8x128xf32>,
    %cst_187 = arith.constant dense<0xFF800000> : vector<8xf32>
    %509 = vector.multi_reduction <maximumf>, %507, %cst_187 [1] : vector<8x128xf32> to vector<8xf32>
    %510 = vector.shape_cast %509 : vector<8xf32> to vector<8x1xf32>
    %511 = vector.broadcast %510 : vector<8x1xf32> to vector<8x128xf32>
    %512 = arith.cmpf oeq, %507, %511 : vector<8x128xf32>
    %513 = arith.extui %512 : vector<8x128xi1> to vector<8x128xi32>
    %514 = arith.sitofp %513 : vector<8x128xi32> to vector<8x128xf32>
    %515 = arith.truncf %514 : vector<8x128xf32> to vector<8x128xbf16>
    %cst_188 = arith.constant dense<0.000000e+00> : vector<8x512xf32>
    %516 = tpu.matmul %515, %315, %cst_188 {dimension_numbers = #tpu.dot_dimension_numbers<[1], [0], [0], [1], [0, 0, 1, 1], [], []>} : vector<8x128xbf16>, vector<128x512xbf16>, vector<8x512xf32> -> vector<8x512xf32>
    %517 = arith.truncf %504 : vector<8x128xf32> to vector<8x128xbf16>
    %cst_189 = arith.constant dense<0.000000e+00> : vector<8x512xf32>
    %518 = tpu.matmul %517, %316, %cst_189 {dimension_numbers = #tpu.dot_dimension_numbers<[1], [0], [0], [1], [0, 0, 1, 1], [], []>} : vector<8x128xbf16>, vector<128x512xbf16>, vector<8x512xf32> -> vector<8x512xf32>
    %519 = arith.addf %516, %518 : vector<8x512xf32>
    %520 = arith.addf %519, %319 : vector<8x512xf32>
    %521 = vector.extract_strided_slice %520 {offsets = [0, 0], sizes = [8, 128], strides = [1, 1]} : vector<8x512xf32> to vector<8x128xf32>
    %cst_190 = arith.constant 5.000000e-01 : f32
    %522 = vector.broadcast %cst_190 : f32 to vector<8x128xf32>
    %523 = arith.mulf %522, %521 : vector<8x128xf32>
    %524 = math.tanh %523 : vector<8x128xf32>
    %cst_191 = arith.constant 5.000000e-01 : f32
    %525 = vector.broadcast %cst_191 : f32 to vector<8x128xf32>
    %526 = arith.mulf %525, %524 : vector<8x128xf32>
    %cst_192 = arith.constant 5.000000e-01 : f32
    %527 = vector.broadcast %cst_192 : f32 to vector<8x128xf32>
    %528 = arith.addf %526, %527 : vector<8x128xf32>
    %529 = vector.extract_strided_slice %520 {offsets = [0, 128], sizes = [8, 128], strides = [1, 1]} : vector<8x512xf32> to vector<8x128xf32>
    %cst_193 = arith.constant 5.000000e-01 : f32
    %530 = vector.broadcast %cst_193 : f32 to vector<8x128xf32>
    %531 = arith.mulf %530, %529 : vector<8x128xf32>
    %532 = math.tanh %531 : vector<8x128xf32>
    %cst_194 = arith.constant 5.000000e-01 : f32
    %533 = vector.broadcast %cst_194 : f32 to vector<8x128xf32>
    %534 = arith.mulf %533, %532 : vector<8x128xf32>
    %cst_195 = arith.constant 5.000000e-01 : f32
    %535 = vector.broadcast %cst_195 : f32 to vector<8x128xf32>
    %536 = arith.addf %534, %535 : vector<8x128xf32>
    %537 = vector.extract_strided_slice %520 {offsets = [0, 256], sizes = [8, 128], strides = [1, 1]} : vector<8x512xf32> to vector<8x128xf32>
    %538 = math.tanh %537 : vector<8x128xf32>
    %539 = vector.extract_strided_slice %520 {offsets = [0, 384], sizes = [8, 128], strides = [1, 1]} : vector<8x512xf32> to vector<8x128xf32>
    %cst_196 = arith.constant 5.000000e-01 : f32
    %540 = vector.broadcast %cst_196 : f32 to vector<8x128xf32>
    %541 = arith.mulf %540, %539 : vector<8x128xf32>
    %542 = math.tanh %541 : vector<8x128xf32>
    %cst_197 = arith.constant 5.000000e-01 : f32
    %543 = vector.broadcast %cst_197 : f32 to vector<8x128xf32>
    %544 = arith.mulf %543, %542 : vector<8x128xf32>
    %cst_198 = arith.constant 5.000000e-01 : f32
    %545 = vector.broadcast %cst_198 : f32 to vector<8x128xf32>
    %546 = arith.addf %544, %545 : vector<8x128xf32>
    %547 = arith.mulf %536, %502 : vector<8x128xf32>
    %548 = arith.mulf %528, %538 : vector<8x128xf32>
    %549 = arith.addf %547, %548 : vector<8x128xf32>
    %550 = math.tanh %549 : vector<8x128xf32>
    %551 = arith.mulf %546, %550 : vector<8x128xf32>
    %552 = arith.truncf %551 : vector<8x128xf32> to vector<8x128xbf16>
    %cst_199 = arith.constant dense<0.000000e+00> : vector<8x128xf32>
    %553 = tpu.matmul %552, %320, %cst_199 {dimension_numbers = #tpu.dot_dimension_numbers<[1], [0], [0], [1], [0, 0, 1, 1], [], []>} : vector<8x128xbf16>, vector<128x128xbf16>, vector<8x128xf32> -> vector<8x128xf32>
    %554 = arith.addf %553, %323 : vector<8x128xf32>
    %c0_200 = arith.constant 0 : index
    %c512 = arith.constant 512 : index
    %555 = vector.load %arg16[%c0_200, %c512] : memref<8x1024xf32, #tpu.memory_space<vmem>>, vector<8x128xf32>
    tpu.vector_store %arg16[%c0_200, %c512], %554 {strides = array<i32>} : memref<8x1024xf32, #tpu.memory_space<vmem>>, vector<8x128xf32>,
    %cst_201 = arith.constant dense<0xFF800000> : vector<8xf32>
    %556 = vector.multi_reduction <maximumf>, %554, %cst_201 [1] : vector<8x128xf32> to vector<8xf32>
    %557 = vector.shape_cast %556 : vector<8xf32> to vector<8x1xf32>
    %558 = vector.broadcast %557 : vector<8x1xf32> to vector<8x128xf32>
    %559 = arith.cmpf oeq, %554, %558 : vector<8x128xf32>
    %560 = arith.extui %559 : vector<8x128xi1> to vector<8x128xi32>
    %561 = arith.sitofp %560 : vector<8x128xi32> to vector<8x128xf32>
    %562 = arith.truncf %561 : vector<8x128xf32> to vector<8x128xbf16>
    %cst_202 = arith.constant dense<0.000000e+00> : vector<8x512xf32>
    %563 = tpu.matmul %562, %315, %cst_202 {dimension_numbers = #tpu.dot_dimension_numbers<[1], [0], [0], [1], [0, 0, 1, 1], [], []>} : vector<8x128xbf16>, vector<128x512xbf16>, vector<8x512xf32> -> vector<8x512xf32>
    %564 = arith.truncf %551 : vector<8x128xf32> to vector<8x128xbf16>
    %cst_203 = arith.constant dense<0.000000e+00> : vector<8x512xf32>
    %565 = tpu.matmul %564, %316, %cst_203 {dimension_numbers = #tpu.dot_dimension_numbers<[1], [0], [0], [1], [0, 0, 1, 1], [], []>} : vector<8x128xbf16>, vector<128x512xbf16>, vector<8x512xf32> -> vector<8x512xf32>
    %566 = arith.addf %563, %565 : vector<8x512xf32>
    %567 = arith.addf %566, %319 : vector<8x512xf32>
    %568 = vector.extract_strided_slice %567 {offsets = [0, 0], sizes = [8, 128], strides = [1, 1]} : vector<8x512xf32> to vector<8x128xf32>
    %cst_204 = arith.constant 5.000000e-01 : f32
    %569 = vector.broadcast %cst_204 : f32 to vector<8x128xf32>
    %570 = arith.mulf %569, %568 : vector<8x128xf32>
    %571 = math.tanh %570 : vector<8x128xf32>
    %cst_205 = arith.constant 5.000000e-01 : f32
    %572 = vector.broadcast %cst_205 : f32 to vector<8x128xf32>
    %573 = arith.mulf %572, %571 : vector<8x128xf32>
    %cst_206 = arith.constant 5.000000e-01 : f32
    %574 = vector.broadcast %cst_206 : f32 to vector<8x128xf32>
    %575 = arith.addf %573, %574 : vector<8x128xf32>
    %576 = vector.extract_strided_slice %567 {offsets = [0, 128], sizes = [8, 128], strides = [1, 1]} : vector<8x512xf32> to vector<8x128xf32>
    %cst_207 = arith.constant 5.000000e-01 : f32
    %577 = vector.broadcast %cst_207 : f32 to vector<8x128xf32>
    %578 = arith.mulf %577, %576 : vector<8x128xf32>
    %579 = math.tanh %578 : vector<8x128xf32>
    %cst_208 = arith.constant 5.000000e-01 : f32
    %580 = vector.broadcast %cst_208 : f32 to vector<8x128xf32>
    %581 = arith.mulf %580, %579 : vector<8x128xf32>
    %cst_209 = arith.constant 5.000000e-01 : f32
    %582 = vector.broadcast %cst_209 : f32 to vector<8x128xf32>
    %583 = arith.addf %581, %582 : vector<8x128xf32>
    %584 = vector.extract_strided_slice %567 {offsets = [0, 256], sizes = [8, 128], strides = [1, 1]} : vector<8x512xf32> to vector<8x128xf32>
    %585 = math.tanh %584 : vector<8x128xf32>
    %586 = vector.extract_strided_slice %567 {offsets = [0, 384], sizes = [8, 128], strides = [1, 1]} : vector<8x512xf32> to vector<8x128xf32>
    %cst_210 = arith.constant 5.000000e-01 : f32
    %587 = vector.broadcast %cst_210 : f32 to vector<8x128xf32>
    %588 = arith.mulf %587, %586 : vector<8x128xf32>
    %589 = math.tanh %588 : vector<8x128xf32>
    %cst_211 = arith.constant 5.000000e-01 : f32
    %590 = vector.broadcast %cst_211 : f32 to vector<8x128xf32>
    %591 = arith.mulf %590, %589 : vector<8x128xf32>
    %cst_212 = arith.constant 5.000000e-01 : f32
    %592 = vector.broadcast %cst_212 : f32 to vector<8x128xf32>
    %593 = arith.addf %591, %592 : vector<8x128xf32>
    %594 = arith.mulf %583, %549 : vector<8x128xf32>
    %595 = arith.mulf %575, %585 : vector<8x128xf32>
    %596 = arith.addf %594, %595 : vector<8x128xf32>
    %597 = math.tanh %596 : vector<8x128xf32>
    %598 = arith.mulf %593, %597 : vector<8x128xf32>
    %599 = arith.truncf %598 : vector<8x128xf32> to vector<8x128xbf16>
    %cst_213 = arith.constant dense<0.000000e+00> : vector<8x128xf32>
    %600 = tpu.matmul %599, %320, %cst_213 {dimension_numbers = #tpu.dot_dimension_numbers<[1], [0], [0], [1], [0, 0, 1, 1], [], []>} : vector<8x128xbf16>, vector<128x128xbf16>, vector<8x128xf32> -> vector<8x128xf32>
    %601 = arith.addf %600, %323 : vector<8x128xf32>
    %c0_214 = arith.constant 0 : index
    %c640 = arith.constant 640 : index
    %602 = vector.load %arg16[%c0_214, %c640] : memref<8x1024xf32, #tpu.memory_space<vmem>>, vector<8x128xf32>
    tpu.vector_store %arg16[%c0_214, %c640], %601 {strides = array<i32>} : memref<8x1024xf32, #tpu.memory_space<vmem>>, vector<8x128xf32>,
    %cst_215 = arith.constant dense<0xFF800000> : vector<8xf32>
    %603 = vector.multi_reduction <maximumf>, %601, %cst_215 [1] : vector<8x128xf32> to vector<8xf32>
    %604 = vector.shape_cast %603 : vector<8xf32> to vector<8x1xf32>
    %605 = vector.broadcast %604 : vector<8x1xf32> to vector<8x128xf32>
    %606 = arith.cmpf oeq, %601, %605 : vector<8x128xf32>
    %607 = arith.extui %606 : vector<8x128xi1> to vector<8x128xi32>
    %608 = arith.sitofp %607 : vector<8x128xi32> to vector<8x128xf32>
    %609 = arith.truncf %608 : vector<8x128xf32> to vector<8x128xbf16>
    %cst_216 = arith.constant dense<0.000000e+00> : vector<8x512xf32>
    %610 = tpu.matmul %609, %315, %cst_216 {dimension_numbers = #tpu.dot_dimension_numbers<[1], [0], [0], [1], [0, 0, 1, 1], [], []>} : vector<8x128xbf16>, vector<128x512xbf16>, vector<8x512xf32> -> vector<8x512xf32>
    %611 = arith.truncf %598 : vector<8x128xf32> to vector<8x128xbf16>
    %cst_217 = arith.constant dense<0.000000e+00> : vector<8x512xf32>
    %612 = tpu.matmul %611, %316, %cst_217 {dimension_numbers = #tpu.dot_dimension_numbers<[1], [0], [0], [1], [0, 0, 1, 1], [], []>} : vector<8x128xbf16>, vector<128x512xbf16>, vector<8x512xf32> -> vector<8x512xf32>
    %613 = arith.addf %610, %612 : vector<8x512xf32>
    %614 = arith.addf %613, %319 : vector<8x512xf32>
    %615 = vector.extract_strided_slice %614 {offsets = [0, 0], sizes = [8, 128], strides = [1, 1]} : vector<8x512xf32> to vector<8x128xf32>
    %cst_218 = arith.constant 5.000000e-01 : f32
    %616 = vector.broadcast %cst_218 : f32 to vector<8x128xf32>
    %617 = arith.mulf %616, %615 : vector<8x128xf32>
    %618 = math.tanh %617 : vector<8x128xf32>
    %cst_219 = arith.constant 5.000000e-01 : f32
    %619 = vector.broadcast %cst_219 : f32 to vector<8x128xf32>
    %620 = arith.mulf %619, %618 : vector<8x128xf32>
    %cst_220 = arith.constant 5.000000e-01 : f32
    %621 = vector.broadcast %cst_220 : f32 to vector<8x128xf32>
    %622 = arith.addf %620, %621 : vector<8x128xf32>
    %623 = vector.extract_strided_slice %614 {offsets = [0, 128], sizes = [8, 128], strides = [1, 1]} : vector<8x512xf32> to vector<8x128xf32>
    %cst_221 = arith.constant 5.000000e-01 : f32
    %624 = vector.broadcast %cst_221 : f32 to vector<8x128xf32>
    %625 = arith.mulf %624, %623 : vector<8x128xf32>
    %626 = math.tanh %625 : vector<8x128xf32>
    %cst_222 = arith.constant 5.000000e-01 : f32
    %627 = vector.broadcast %cst_222 : f32 to vector<8x128xf32>
    %628 = arith.mulf %627, %626 : vector<8x128xf32>
    %cst_223 = arith.constant 5.000000e-01 : f32
    %629 = vector.broadcast %cst_223 : f32 to vector<8x128xf32>
    %630 = arith.addf %628, %629 : vector<8x128xf32>
    %631 = vector.extract_strided_slice %614 {offsets = [0, 256], sizes = [8, 128], strides = [1, 1]} : vector<8x512xf32> to vector<8x128xf32>
    %632 = math.tanh %631 : vector<8x128xf32>
    %633 = vector.extract_strided_slice %614 {offsets = [0, 384], sizes = [8, 128], strides = [1, 1]} : vector<8x512xf32> to vector<8x128xf32>
    %cst_224 = arith.constant 5.000000e-01 : f32
    %634 = vector.broadcast %cst_224 : f32 to vector<8x128xf32>
    %635 = arith.mulf %634, %633 : vector<8x128xf32>
    %636 = math.tanh %635 : vector<8x128xf32>
    %cst_225 = arith.constant 5.000000e-01 : f32
    %637 = vector.broadcast %cst_225 : f32 to vector<8x128xf32>
    %638 = arith.mulf %637, %636 : vector<8x128xf32>
    %cst_226 = arith.constant 5.000000e-01 : f32
    %639 = vector.broadcast %cst_226 : f32 to vector<8x128xf32>
    %640 = arith.addf %638, %639 : vector<8x128xf32>
    %641 = arith.mulf %630, %596 : vector<8x128xf32>
    %642 = arith.mulf %622, %632 : vector<8x128xf32>
    %643 = arith.addf %641, %642 : vector<8x128xf32>
    %644 = math.tanh %643 : vector<8x128xf32>
    %645 = arith.mulf %640, %644 : vector<8x128xf32>
    %646 = arith.truncf %645 : vector<8x128xf32> to vector<8x128xbf16>
    %cst_227 = arith.constant dense<0.000000e+00> : vector<8x128xf32>
    %647 = tpu.matmul %646, %320, %cst_227 {dimension_numbers = #tpu.dot_dimension_numbers<[1], [0], [0], [1], [0, 0, 1, 1], [], []>} : vector<8x128xbf16>, vector<128x128xbf16>, vector<8x128xf32> -> vector<8x128xf32>
    %648 = arith.addf %647, %323 : vector<8x128xf32>
    %c0_228 = arith.constant 0 : index
    %c768 = arith.constant 768 : index
    %649 = vector.load %arg16[%c0_228, %c768] : memref<8x1024xf32, #tpu.memory_space<vmem>>, vector<8x128xf32>
    tpu.vector_store %arg16[%c0_228, %c768], %648 {strides = array<i32>} : memref<8x1024xf32, #tpu.memory_space<vmem>>, vector<8x128xf32>,
    %cst_229 = arith.constant dense<0xFF800000> : vector<8xf32>
    %650 = vector.multi_reduction <maximumf>, %648, %cst_229 [1] : vector<8x128xf32> to vector<8xf32>
    %651 = vector.shape_cast %650 : vector<8xf32> to vector<8x1xf32>
    %652 = vector.broadcast %651 : vector<8x1xf32> to vector<8x128xf32>
    %653 = arith.cmpf oeq, %648, %652 : vector<8x128xf32>
    %654 = arith.extui %653 : vector<8x128xi1> to vector<8x128xi32>
    %655 = arith.sitofp %654 : vector<8x128xi32> to vector<8x128xf32>
    %656 = arith.truncf %655 : vector<8x128xf32> to vector<8x128xbf16>
    %cst_230 = arith.constant dense<0.000000e+00> : vector<8x512xf32>
    %657 = tpu.matmul %656, %315, %cst_230 {dimension_numbers = #tpu.dot_dimension_numbers<[1], [0], [0], [1], [0, 0, 1, 1], [], []>} : vector<8x128xbf16>, vector<128x512xbf16>, vector<8x512xf32> -> vector<8x512xf32>
    %658 = arith.truncf %645 : vector<8x128xf32> to vector<8x128xbf16>
    %cst_231 = arith.constant dense<0.000000e+00> : vector<8x512xf32>
    %659 = tpu.matmul %658, %316, %cst_231 {dimension_numbers = #tpu.dot_dimension_numbers<[1], [0], [0], [1], [0, 0, 1, 1], [], []>} : vector<8x128xbf16>, vector<128x512xbf16>, vector<8x512xf32> -> vector<8x512xf32>
    %660 = arith.addf %657, %659 : vector<8x512xf32>
    %661 = arith.addf %660, %319 : vector<8x512xf32>
    %662 = vector.extract_strided_slice %661 {offsets = [0, 0], sizes = [8, 128], strides = [1, 1]} : vector<8x512xf32> to vector<8x128xf32>
    %cst_232 = arith.constant 5.000000e-01 : f32
    %663 = vector.broadcast %cst_232 : f32 to vector<8x128xf32>
    %664 = arith.mulf %663, %662 : vector<8x128xf32>
    %665 = math.tanh %664 : vector<8x128xf32>
    %cst_233 = arith.constant 5.000000e-01 : f32
    %666 = vector.broadcast %cst_233 : f32 to vector<8x128xf32>
    %667 = arith.mulf %666, %665 : vector<8x128xf32>
    %cst_234 = arith.constant 5.000000e-01 : f32
    %668 = vector.broadcast %cst_234 : f32 to vector<8x128xf32>
    %669 = arith.addf %667, %668 : vector<8x128xf32>
    %670 = vector.extract_strided_slice %661 {offsets = [0, 128], sizes = [8, 128], strides = [1, 1]} : vector<8x512xf32> to vector<8x128xf32>
    %cst_235 = arith.constant 5.000000e-01 : f32
    %671 = vector.broadcast %cst_235 : f32 to vector<8x128xf32>
    %672 = arith.mulf %671, %670 : vector<8x128xf32>
    %673 = math.tanh %672 : vector<8x128xf32>
    %cst_236 = arith.constant 5.000000e-01 : f32
    %674 = vector.broadcast %cst_236 : f32 to vector<8x128xf32>
    %675 = arith.mulf %674, %673 : vector<8x128xf32>
    %cst_237 = arith.constant 5.000000e-01 : f32
    %676 = vector.broadcast %cst_237 : f32 to vector<8x128xf32>
    %677 = arith.addf %675, %676 : vector<8x128xf32>
    %678 = vector.extract_strided_slice %661 {offsets = [0, 256], sizes = [8, 128], strides = [1, 1]} : vector<8x512xf32> to vector<8x128xf32>
    %679 = math.tanh %678 : vector<8x128xf32>
    %680 = vector.extract_strided_slice %661 {offsets = [0, 384], sizes = [8, 128], strides = [1, 1]} : vector<8x512xf32> to vector<8x128xf32>
    %cst_238 = arith.constant 5.000000e-01 : f32
    %681 = vector.broadcast %cst_238 : f32 to vector<8x128xf32>
    %682 = arith.mulf %681, %680 : vector<8x128xf32>
    %683 = math.tanh %682 : vector<8x128xf32>
    %cst_239 = arith.constant 5.000000e-01 : f32
    %684 = vector.broadcast %cst_239 : f32 to vector<8x128xf32>
    %685 = arith.mulf %684, %683 : vector<8x128xf32>
    %cst_240 = arith.constant 5.000000e-01 : f32
    %686 = vector.broadcast %cst_240 : f32 to vector<8x128xf32>
    %687 = arith.addf %685, %686 : vector<8x128xf32>
    %688 = arith.mulf %677, %643 : vector<8x128xf32>
    %689 = arith.mulf %669, %679 : vector<8x128xf32>
    %690 = arith.addf %688, %689 : vector<8x128xf32>
    %691 = math.tanh %690 : vector<8x128xf32>
    %692 = arith.mulf %687, %691 : vector<8x128xf32>
    %693 = arith.truncf %692 : vector<8x128xf32> to vector<8x128xbf16>
    %cst_241 = arith.constant dense<0.000000e+00> : vector<8x128xf32>
    %694 = tpu.matmul %693, %320, %cst_241 {dimension_numbers = #tpu.dot_dimension_numbers<[1], [0], [0], [1], [0, 0, 1, 1], [], []>} : vector<8x128xbf16>, vector<128x128xbf16>, vector<8x128xf32> -> vector<8x128xf32>
    %695 = arith.addf %694, %323 : vector<8x128xf32>
    %c0_242 = arith.constant 0 : index
    %c896 = arith.constant 896 : index
    %696 = vector.load %arg16[%c0_242, %c896] : memref<8x1024xf32, #tpu.memory_space<vmem>>, vector<8x128xf32>
    tpu.vector_store %arg16[%c0_242, %c896], %695 {strides = array<i32>} : memref<8x1024xf32, #tpu.memory_space<vmem>>, vector<8x128xf32>,
    return
  }
  func.func @transform_0(%arg0: i32) -> (i32, i32) {
    %c0_i32 = arith.constant 0 : i32
    %c0_i32_0 = arith.constant 0 : i32
    %c0_i32_1 = arith.constant 0 : i32
    return %c0_i32, %c0_i32_0 : i32, i32
  }
  func.func @transform_1(%arg0: i32) -> (i32, i32) {
    %c0_i32 = arith.constant 0 : i32
    %c0_i32_0 = arith.constant 0 : i32
    %c0_i32_1 = arith.constant 0 : i32
    return %c0_i32, %c0_i32_0 : i32, i32
  }
  func.func @transform_2(%arg0: i32) -> (i32, i32) {
    %c0_i32 = arith.constant 0 : i32
    %c0_i32_0 = arith.constant 0 : i32
    %c0_i32_1 = arith.constant 0 : i32
    return %c0_i32, %c0_i32_0 : i32, i32
  }
  func.func @transform_3(%arg0: i32) -> (i32, i32) {
    %c0_i32 = arith.constant 0 : i32
    %c0_i32_0 = arith.constant 0 : i32
    %c0_i32_1 = arith.constant 0 : i32
    return %c0_i32, %c0_i32_0 : i32, i32
  }
  func.func @transform_4(%arg0: i32) -> (i32, i32) {
    %c0_i32 = arith.constant 0 : i32
    %c0_i32_0 = arith.constant 0 : i32
    %c0_i32_1 = arith.constant 0 : i32
    return %c0_i32, %c0_i32_0 : i32, i32
  }
  func.func @transform_5(%arg0: i32) -> (i32, i32) {
    %c0_i32 = arith.constant 0 : i32
    %c0_i32_0 = arith.constant 0 : i32
    %c0_i32_1 = arith.constant 0 : i32
    return %c0_i32, %c0_i32_0 : i32, i32
  }
  func.func @transform_6(%arg0: i32) -> (i32, i32) {
    %c0_i32 = arith.constant 0 : i32
    %c0_i32_0 = arith.constant 0 : i32
    %c0_i32_1 = arith.constant 0 : i32
    return %c0_i32, %c0_i32_0 : i32, i32
  }
  func.func @transform_7(%arg0: i32) -> (i32, i32) {
    %c0_i32 = arith.constant 0 : i32
    %c0_i32_0 = arith.constant 0 : i32
    %c0_i32_1 = arith.constant 0 : i32
    return %c0_i32, %c0_i32_0 : i32, i32
  }
  func.func @transform_8(%arg0: i32) -> (i32, i32) {
    %c0_i32 = arith.constant 0 : i32
    %c0_i32_0 = arith.constant 0 : i32
    %c0_i32_1 = arith.constant 0 : i32
    return %c0_i32, %c0_i32_0 : i32, i32
  }
  func.func @transform_9(%arg0: i32) -> (i32, i32) {
    %c0_i32 = arith.constant 0 : i32
    %c0_i32_0 = arith.constant 0 : i32
    %c0_i32_1 = arith.constant 0 : i32
    return %c0_i32, %c0_i32_0 : i32, i32
  }
  func.func @transform_10(%arg0: i32) -> (i32, i32) {
    %c0_i32 = arith.constant 0 : i32
    %c0_i32_0 = arith.constant 0 : i32
    %c0_i32_1 = arith.constant 0 : i32
    return %c0_i32, %c0_i32_0 : i32, i32
  }
  func.func @transform_11(%arg0: i32) -> (i32, i32) {
    %c0_i32 = arith.constant 0 : i32
    %c0_i32_0 = arith.constant 0 : i32
    %c0_i32_1 = arith.constant 0 : i32
    return %c0_i32, %c0_i32_0 : i32, i32
  }
  func.func @transform_12(%arg0: i32) -> (i32, i32) {
    %c0_i32 = arith.constant 0 : i32
    %c0_i32_0 = arith.constant 0 : i32
    %c0_i32_1 = arith.constant 0 : i32
    return %c0_i32, %c0_i32_0 : i32, i32
  }
  func.func @transform_13(%arg0: i32) -> (i32, i32) {
    %c0_i32 = arith.constant 0 : i32
    %c0_i32_0 = arith.constant 0 : i32
    %c0_i32_1 = arith.constant 0 : i32
    return %c0_i32, %c0_i32_0 : i32, i32
  }
  func.func @transform_14(%arg0: i32) -> (i32, i32) {
    %c0_i32 = arith.constant 0 : i32
    %c0_i32_0 = arith.constant 0 : i32
    %c0_i32_1 = arith.constant 0 : i32
    return %c0_i32, %c0_i32_0 : i32, i32
  }
  func.func @transform_15(%arg0: i32) -> (i32, i32) {
    %c0_i32 = arith.constant 0 : i32
    %c0_i32_0 = arith.constant 0 : i32
    %c0_i32_1 = arith.constant 0 : i32
    return %c0_i32, %c0_i32_0 : i32, i32
  }
  func.func @transform_16(%arg0: i32) -> (i32, i32) {
    %c0_i32 = arith.constant 0 : i32
    %c0_i32_0 = arith.constant 0 : i32
    %c0_i32_1 = arith.constant 0 : i32
    return %c0_i32, %c0_i32_0 : i32, i32
  }
  func.func @transform_17(%arg0: i32) -> (i32, i32) {
    %c0_i32 = arith.constant 0 : i32
    %c0_i32_0 = arith.constant 0 : i32
    %c0_i32_1 = arith.constant 0 : i32
    return %c0_i32, %c0_i32_0 : i32, i32
  }
}

</mosaic_0001>

<llo_original>
// kernel: text_vae_forward.1
$region0: #{text_vae_forward.1}
  #allocation0 [shape = 'u32[]', space=smem, size = 0x4, offset = 0x4, fixed_abs, tag = 'smem constant byte address 0x4 - core index']
  #allocation1 [shape = 'u32[144,128]{1,0:T(1,128)}', space=vmem, size = 0x12000, scoped, tag = 'internal scratch']
  #allocation2 [shape = 'f32[64,512]{1,0:T(8,128)}', space=vmem, size = 0x20000, scoped, tag = 'scratch operand']
  %s0 = inlined_call_operand.vmem [shape: s32[64,1], index: 0, kind: input, shape index: {}]
  %s1 = inlined_call_operand.vmem [shape: bf16[128,512], index: 1, kind: input, shape index: {}]
  %s2 = inlined_call_operand.hbm [shape: bf16[128,512], index: 2, kind: input, shape index: {}]
  %s3 = inlined_call_operand.hbm [shape: f32[1,512], index: 3, kind: input, shape index: {}]
  %s4 = inlined_call_operand.vmem [shape: bf16[128,32], index: 4, kind: input, shape index: {}]
  %s5 = inlined_call_operand.vmem [shape: f32[1,32], index: 5, kind: input, shape index: {}]
  %s6 = inlined_call_operand.vmem [shape: bf16[128,32], index: 6, kind: input, shape index: {}]
  %s7 = inlined_call_operand.hbm [shape: f32[1,32], index: 7, kind: input, shape index: {}]
  %s8 = inlined_call_operand.vmem [shape: f32[8,32], index: 8, kind: input, shape index: {}]
  %s9 = inlined_call_operand.hbm [shape: bf16[32,512], index: 9, kind: input, shape index: {}]
  %s10 = inlined_call_operand.hbm [shape: bf16[128,512], index: 10, kind: input, shape index: {}]
  %s11 = inlined_call_operand.hbm [shape: bf16[128,512], index: 11, kind: input, shape index: {}]
  %s12 = inlined_call_operand.hbm [shape: f32[1,512], index: 12, kind: input, shape index: {}]
  %s13 = inlined_call_operand.hbm [shape: bf16[128,128], index: 13, kind: input, shape index: {}]
  %s14 = inlined_call_operand.hbm [shape: f32[1,128], index: 14, kind: input, shape index: {}]
  %s15 = inlined_call_operand.vmem [shape: f32[8,1024], index: 15, kind: output, shape index: {0}]
  %s16 = inlined_call_operand.hbm [shape: f32[8,32], index: 16, kind: output, shape index: {1}]
  %s17 = inlined_call_operand.hbm [shape: f32[8,32], index: 17, kind: output, shape index: {2}]
  %18 = xla_tuple %s15, %s16, %s17
  %s19 = sld [smem:[#allocation0]]
  $region122: #{text_vae_forward.1} parent=0
    _
  %s21 = ssub.s32 1, %s19
  %s22 = scalar_select 0, %s21, %s19
  $region1: #{text_vae_forward.1} parent=0
    #allocation3 [shape = 'u8[131072]{0}', space=vmem, size = 0x20000, scoped, tag = 'input window, operand 2, single buffered']
    #allocation4 [shape = 's32[1]{0}', space=sflag, size = 0x4, scoped, tag = 'scoped memory for text_vae_forward.1']
    #allocation5 [shape = 's32[1]{0}', space=sflag, size = 0x4, scoped, tag = 'scoped memory for text_vae_forward.1']
    #allocation6 [shape = 'u8[2048]{0}', space=vmem, size = 0x800, scoped, tag = 'input window, operand 3, single buffered']
    #allocation7 [shape = 's32[1]{0}', space=sflag, size = 0x4, scoped, tag = 'scoped memory for text_vae_forward.1']
    #allocation8 [shape = 'u8[512]{0}', space=vmem, size = 0x400, scoped, tag = 'input window, operand 7, single buffered']
    #allocation9 [shape = 'u8[32768]{0}', space=vmem, size = 0x8000, scoped, tag = 'input window, operand 9, single buffered']
    #allocation10 [shape = 's32[1]{0}', space=sflag, size = 0x4, scoped, tag = 'scoped memory for text_vae_forward.1']
    #allocation11 [shape = 'u8[131072]{0}', space=vmem, size = 0x20000, scoped, tag = 'input window, operand 10, single buffered']
    #allocation12 [shape = 'u8[131072]{0}', space=vmem, size = 0x20000, scoped, tag = 'input window, operand 11, single buffered']
    #allocation13 [shape = 's32[1]{0}', space=sflag, size = 0x4, scoped, tag = 'scoped memory for text_vae_forward.1']
    #allocation14 [shape = 'u8[2048]{0}', space=vmem, size = 0x800, scoped, tag = 'input window, operand 12, single buffered']
    #allocation15 [shape = 'u8[32768]{0}', space=vmem, size = 0x8000, scoped, tag = 'input window, operand 13, single buffered']
    #allocation16 [shape = 's32[1]{0}', space=sflag, size = 0x4, scoped, tag = 'scoped memory for text_vae_forward.1']
    #allocation17 [shape = 'u8[512]{0}', space=vmem, size = 0x400, scoped, tag = 'input window, operand 14, single buffered']
    #allocation18 [shape = 'u8[4096]{0}', space=vmem, size = 0x1000, scoped, tag = 'output window, operand 1, single buffered']
    #allocation19 [shape = 'u8[4096]{0}', space=vmem, size = 0x1000, scoped, tag = 'output window, operand 2, single buffered']
    #allocation20 [shape = 's32[1]{0}', space=sflag, size = 0x4, scoped, tag = 'scoped memory for text_vae_forward.1']
    %23 = vsyncpa [#allocation4], 0
    %24 = vsyncpa [#allocation7], 0
    %25 = vsyncpa [#allocation10], 0
    %26 = vsyncpa [#allocation13], 0
    %27 = vsyncpa [#allocation16], 0
    %28 = vsyncpa [#allocation5], 0
    %29 = vsyncpa [#allocation20], 0
    // Predicated region
    $region2: #{text_vae_forward.1} parent=1 // pred_check
      _
    $region3: #{text_vae_forward.1} parent=1 // pred_check_branch
      %31 = sbr.rel (0) target = $region5
    $region4: #{text_vae_forward.1} parent=1 // pred_region
      _
    $region5: #{text_vae_forward.1} parent=1 // pred_fallthru
      _
    // Predicated region
    $region6: #{text_vae_forward.1} parent=1 // pred_check
      _
    $region7: #{text_vae_forward.1} parent=1 // pred_check_branch
      %33 = sbr.rel (0) target = $region9
    $region8: #{text_vae_forward.1} parent=1 // pred_region
      _
    $region9: #{text_vae_forward.1} parent=1 // pred_fallthru
      _
    // Predicated region
    $region10: #{text_vae_forward.1} parent=1 // pred_check
      _
    $region11: #{text_vae_forward.1} parent=1 // pred_check_branch
      %35 = sbr.rel (0) target = $region13
    $region12: #{text_vae_forward.1} parent=1 // pred_region
      %s37 = ssub.s32 4096, 4096
      %38 = vsyncadd [#allocation4], %s37
      %s39 = sshll.u32 [#allocation3], 4
      %s40 = int_to_ptr.vmem [resolvable:$true] %s39
      %45 = dma.hbm_to_vmem [thread:$0]  %s2, 4096, %s40, [#allocation4], 256, 256, 16
    $region13: #{text_vae_forward.1} parent=1 // pred_fallthru
      _
    // Predicated region
    $region14: #{text_vae_forward.1} parent=1 // pred_check
      _
    $region15: #{text_vae_forward.1} parent=1 // pred_check_branch
      %47 = sbr.rel (0) target = $region17
    $region16: #{text_vae_forward.1} parent=1 // pred_region
      %s49 = ssub.s32 64, 64
      %50 = vsyncadd [#allocation7], %s49
      %s52 = sshll.u32 [#allocation6], 4
      %s53 = int_to_ptr.vmem [resolvable:$true] %s52
      %55 = dma.hbm_to_vmem [thread:$0]  %s3, 64, %s53, [#allocation7]
    $region17: #{text_vae_forward.1} parent=1 // pred_fallthru
      _
    // Predicated region
    $region18: #{text_vae_forward.1} parent=1 // pred_check
      _
    $region19: #{text_vae_forward.1} parent=1 // pred_check_branch
      %57 = sbr.rel (0) target = $region21
    $region20: #{text_vae_forward.1} parent=1 // pred_region
      _
    $region21: #{text_vae_forward.1} parent=1 // pred_fallthru
      _
    // Predicated region
    $region22: #{text_vae_forward.1} parent=1 // pred_check
      _
    $region23: #{text_vae_forward.1} parent=1 // pred_check_branch
      %59 = sbr.rel (0) target = $region25
    $region24: #{text_vae_forward.1} parent=1 // pred_region
      _
    $region25: #{text_vae_forward.1} parent=1 // pred_fallthru
      _
    // Predicated region
    $region26: #{text_vae_forward.1} parent=1 // pred_check
      _
    $region27: #{text_vae_forward.1} parent=1 // pred_check_branch
      %61 = sbr.rel (0) target = $region29
    $region28: #{text_vae_forward.1} parent=1 // pred_region
      _
    $region29: #{text_vae_forward.1} parent=1 // pred_fallthru
      _
    // Predicated region
    $region30: #{text_vae_forward.1} parent=1 // pred_check
      _
    $region31: #{text_vae_forward.1} parent=1 // pred_check_branch
      %63 = sbr.rel (0) target = $region33
    $region32: #{text_vae_forward.1} parent=1 // pred_region
      %s65 = ssub.s32 16, 16
      %66 = vsyncadd [#allocation7], %s65
      %s68 = sshll.u32 [#allocation8], 4
      %s69 = int_to_ptr.vmem [resolvable:$true] %s68
      %71 = dma.hbm_to_vmem [thread:$0]  %s7, 16, %s69, [#allocation7]
    $region33: #{text_vae_forward.1} parent=1 // pred_fallthru
      _
    // Predicated region
    $region34: #{text_vae_forward.1} parent=1 // pred_check
      _
    $region35: #{text_vae_forward.1} parent=1 // pred_check_branch
      %73 = sbr.rel (0) target = $region37
    $region36: #{text_vae_forward.1} parent=1 // pred_region
      _
    $region37: #{text_vae_forward.1} parent=1 // pred_fallthru
      _
    // Predicated region
    $region38: #{text_vae_forward.1} parent=1 // pred_check
      _
    $region39: #{text_vae_forward.1} parent=1 // pred_check_branch
      %75 = sbr.rel (0) target = $region41
    $region40: #{text_vae_forward.1} parent=1 // pred_region
      %s77 = ssub.s32 1024, 1024
      %78 = vsyncadd [#allocation10], %s77
      %s79 = sshll.u32 [#allocation9], 4
      %s80 = int_to_ptr.vmem [resolvable:$true] %s79
      %85 = dma.hbm_to_vmem [thread:$0]  %s9, 1024, %s80, [#allocation10], 256, 256, 16
    $region41: #{text_vae_forward.1} parent=1 // pred_fallthru
      _
    // Predicated region
    $region42: #{text_vae_forward.1} parent=1 // pred_check
      _
    $region43: #{text_vae_forward.1} parent=1 // pred_check_branch
      %87 = sbr.rel (0) target = $region45
    $region44: #{text_vae_forward.1} parent=1 // pred_region
      %s89 = ssub.s32 4096, 4096
      %90 = vsyncadd [#allocation10], %s89
      %s91 = sshll.u32 [#allocation11], 4
      %s92 = int_to_ptr.vmem [resolvable:$true] %s91
      %97 = dma.hbm_to_vmem [thread:$0]  %s10, 4096, %s92, [#allocation10], 256, 256, 16
    $region45: #{text_vae_forward.1} parent=1 // pred_fallthru
      _
    // Predicated region
    $region46: #{text_vae_forward.1} parent=1 // pred_check
      _
    $region47: #{text_vae_forward.1} parent=1 // pred_check_branch
      %99 = sbr.rel (0) target = $region49
    $region48: #{text_vae_forward.1} parent=1 // pred_region
      %s101 = ssub.s32 4096, 4096
      %102 = vsyncadd [#allocation13], %s101
      %s103 = sshll.u32 [#allocation12], 4
      %s104 = int_to_ptr.vmem [resolvable:$true] %s103
      %109 = dma.hbm_to_vmem [thread:$0]  %s11, 4096, %s104, [#allocation13], 256, 256, 16
    $region49: #{text_vae_forward.1} parent=1 // pred_fallthru
      _
    // Predicated region
    $region50: #{text_vae_forward.1} parent=1 // pred_check
      _
    $region51: #{text_vae_forward.1} parent=1 // pred_check_branch
      %111 = sbr.rel (0) target = $region53
    $region52: #{text_vae_forward.1} parent=1 // pred_region
      %s113 = ssub.s32 64, 64
      %114 = vsyncadd [#allocation13], %s113
      %s116 = sshll.u32 [#allocation14], 4
      %s117 = int_to_ptr.vmem [resolvable:$true] %s116
      %119 = dma.hbm_to_vmem [thread:$0]  %s12, 64, %s117, [#allocation13]
    $region53: #{text_vae_forward.1} parent=1 // pred_fallthru
      _
    // Predicated region
    $region54: #{text_vae_forward.1} parent=1 // pred_check
      _
    $region55: #{text_vae_forward.1} parent=1 // pred_check_branch
      %121 = sbr.rel (0) target = $region57
    $region56: #{text_vae_forward.1} parent=1 // pred_region
      %s123 = ssub.s32 1024, 1024
      %124 = vsyncadd [#allocation16], %s123
      %s125 = sshll.u32 [#allocation15], 4
      %s126 = int_to_ptr.vmem [resolvable:$true] %s125
      %131 = dma.hbm_to_vmem [thread:$0]  %s13, 1024, %s126, [#allocation16], 64, 64, 4
    $region57: #{text_vae_forward.1} parent=1 // pred_fallthru
      _
    // Predicated region
    $region58: #{text_vae_forward.1} parent=1 // pred_check
      _
    $region59: #{text_vae_forward.1} parent=1 // pred_check_branch
      %133 = sbr.rel (0) target = $region61
    $region60: #{text_vae_forward.1} parent=1 // pred_region
      %s135 = ssub.s32 16, 16
      %136 = vsyncadd [#allocation16], %s135
      %s138 = sshll.u32 [#allocation17], 4
      %s139 = int_to_ptr.vmem [resolvable:$true] %s138
      %141 = dma.hbm_to_vmem [thread:$0]  %s14, 16, %s139, [#allocation16]
    $region61: #{text_vae_forward.1} parent=1 // pred_fallthru
      _
    // Predicated region
    $region62: #{text_vae_forward.1} parent=1 // pred_check
      _
    $region63: #{text_vae_forward.1} parent=1 // pred_check_branch
      %143 = sbr.rel (0) target = $region65
    $region64: #{text_vae_forward.1} parent=1 // pred_region
      %144 = dma.done [#allocation4], 4096
    $region65: #{text_vae_forward.1} parent=1 // pred_fallthru
      _
    // Predicated region
    $region66: #{text_vae_forward.1} parent=1 // pred_check
      _
    $region67: #{text_vae_forward.1} parent=1 // pred_check_branch
      %146 = sbr.rel (0) target = $region69
    $region68: #{text_vae_forward.1} parent=1 // pred_region
      %147 = dma.done [#allocation7], 64
    $region69: #{text_vae_forward.1} parent=1 // pred_fallthru
      _
    // Predicated region
    $region70: #{text_vae_forward.1} parent=1 // pred_check
      _
    $region71: #{text_vae_forward.1} parent=1 // pred_check_branch
      %149 = sbr.rel (0) target = $region73
    $region72: #{text_vae_forward.1} parent=1 // pred_region
      %150 = dma.done [#allocation7], 16
    $region73: #{text_vae_forward.1} parent=1 // pred_fallthru
      _
    // Predicated region
    $region74: #{text_vae_forward.1} parent=1 // pred_check
      _
    $region75: #{text_vae_forward.1} parent=1 // pred_check_branch
      %152 = sbr.rel (0) target = $region77
    $region76: #{text_vae_forward.1} parent=1 // pred_region
      %153 = dma.done [#allocation10], 1024
    $region77: #{text_vae_forward.1} parent=1 // pred_fallthru
      _
    // Predicated region
    $region78: #{text_vae_forward.1} parent=1 // pred_check
      _
    $region79: #{text_vae_forward.1} parent=1 // pred_check_branch
      %155 = sbr.rel (0) target = $region81
    $region80: #{text_vae_forward.1} parent=1 // pred_region
      %156 = dma.done [#allocation10], 4096
    $region81: #{text_vae_forward.1} parent=1 // pred_fallthru
      _
    // Predicated region
    $region82: #{text_vae_forward.1} parent=1 // pred_check
      _
    $region83: #{text_vae_forward.1} parent=1 // pred_check_branch
      %158 = sbr.rel (0) target = $region85
    $region84: #{text_vae_forward.1} parent=1 // pred_region
      %159 = dma.done [#allocation13], 4096
    $region85: #{text_vae_forward.1} parent=1 // pred_fallthru
      _
    // Predicated region
    $region86: #{text_vae_forward.1} parent=1 // pred_check
      _
    $region87: #{text_vae_forward.1} parent=1 // pred_check_branch
      %161 = sbr.rel (0) target = $region89
    $region88: #{text_vae_forward.1} parent=1 // pred_region
      %162 = dma.done [#allocation13], 64
    $region89: #{text_vae_forward.1} parent=1 // pred_fallthru
      _
    // Predicated region
    $region90: #{text_vae_forward.1} parent=1 // pred_check
      _
    $region91: #{text_vae_forward.1} parent=1 // pred_check_branch
      %164 = sbr.rel (0) target = $region93
    $region92: #{text_vae_forward.1} parent=1 // pred_region
      %165 = dma.done [#allocation16], 1024
    $region93: #{text_vae_forward.1} parent=1 // pred_fallthru
      _
    // Predicated region
    $region94: #{text_vae_forward.1} parent=1 // pred_check
      _
    $region95: #{text_vae_forward.1} parent=1 // pred_check_branch
      %167 = sbr.rel (0) target = $region97
    $region96: #{text_vae_forward.1} parent=1 // pred_region
      %168 = dma.done [#allocation16], 16
    $region97: #{text_vae_forward.1} parent=1 // pred_fallthru
      _
    %v170 = vld [vmem:[%s0] sm:$0xff]
    %v171 = vld [vmem:[%s0 + $0x8] sm:$0xff]
    %v172 = vld [vmem:[%s0 + $0x10] sm:$0xff]
    %v173 = vld [vmem:[%s0 + $0x18] sm:$0xff]
    %v174 = vld [vmem:[%s0 + $0x20] sm:$0xff]
    %v175 = vld [vmem:[%s0 + $0x28] sm:$0xff]
    %v176 = vld [vmem:[%s0 + $0x30] sm:$0xff]
    %v177 = vld [vmem:[%s0 + $0x38] sm:$0xff]
    %v178 = vlaneseq
    %v179 = vand.u32 %v178, 127
    %180 = vset.pattern.permute.xlu0 0
    %181 = vperm.xlu0 %180, %v170
    %v182 = vpop.permute.xlu0 %181
    %183 = vset.pattern.permute.xlu0 0
    %184 = vperm.xlu0 %183, %v171
    %v185 = vpop.permute.xlu0 %184
    %186 = vset.pattern.permute.xlu0 0
    %187 = vperm.xlu0 %186, %v172
    %v188 = vpop.permute.xlu0 %187
    %189 = vset.pattern.permute.xlu0 0
    %190 = vperm.xlu0 %189, %v173
    %v191 = vpop.permute.xlu0 %190
    %192 = vset.pattern.permute.xlu0 0
    %193 = vperm.xlu0 %192, %v174
    %v194 = vpop.permute.xlu0 %193
    %195 = vset.pattern.permute.xlu0 0
    %196 = vperm.xlu0 %195, %v175
    %v197 = vpop.permute.xlu0 %196
    %198 = vset.pattern.permute.xlu0 0
    %199 = vperm.xlu0 %198, %v176
    %v200 = vpop.permute.xlu0 %199
    %201 = vset.pattern.permute.xlu0 0
    %202 = vperm.xlu0 %201, %v177
    %v203 = vpop.permute.xlu0 %202
    %vm204 = vcmp.eq.s32.totalorder %v179, %v182
    %vm205 = vcmp.eq.s32.totalorder %v179, %v185
    %vm206 = vcmp.eq.s32.totalorder %v179, %v188
    %vm207 = vcmp.eq.s32.totalorder %v179, %v191
    %vm208 = vcmp.eq.s32.totalorder %v179, %v194
    %vm209 = vcmp.eq.s32.totalorder %v179, %v197
    %vm210 = vcmp.eq.s32.totalorder %v179, %v200
    %vm211 = vcmp.eq.s32.totalorder %v179, %v203
    %v212 = vsel %vm204, 1, 0
    %v213 = vsel %vm205, 1, 0
    %v214 = vsel %vm206, 1, 0
    %v215 = vsel %vm207, 1, 0
    %v216 = vsel %vm208, 1, 0
    %v217 = vsel %vm209, 1, 0
    %v218 = vsel %vm210, 1, 0
    %v219 = vsel %vm211, 1, 0
    %v220 = vcvt.s32.f32 %v212
    %v221 = vcvt.s32.f32 %v213
    %v222 = vcvt.s32.f32 %v214
    %v223 = vcvt.s32.f32 %v215
    %v224 = vcvt.s32.f32 %v216
    %v225 = vcvt.s32.f32 %v217
    %v226 = vcvt.s32.f32 %v218
    %v227 = vcvt.s32.f32 %v219
    %v228 = vpack.c.bf16 %v221, %v220
    %v229 = vpack.c.bf16 %v223, %v222
    %v230 = vpack.c.bf16 %v225, %v224
    %v231 = vpack.c.bf16 %v227, %v226
    %v232 = vld [vmem:[%s1] sm:$0xff]
    %v233 = vld [vmem:[%s1 + $0x8] sm:$0xff]
    %v234 = vld [vmem:[%s1 + $0x10] sm:$0xff]
    %v235 = vld [vmem:[%s1 + $0x18] sm:$0xff]
    %v236 = vld [vmem:[%s1 + $0x20] sm:$0xff]
    %v237 = vld [vmem:[%s1 + $0x28] sm:$0xff]
    %v238 = vld [vmem:[%s1 + $0x30] sm:$0xff]
    %v239 = vld [vmem:[%s1 + $0x38] sm:$0xff]
    %v240 = vld [vmem:[%s1 + $0x40] sm:$0xff]
    %v241 = vld [vmem:[%s1 + $0x48] sm:$0xff]
    %v242 = vld [vmem:[%s1 + $0x50] sm:$0xff]
    %v243 = vld [vmem:[%s1 + $0x58] sm:$0xff]
    %v244 = vld [vmem:[%s1 + $0x60] sm:$0xff]
    %v245 = vld [vmem:[%s1 + $0x68] sm:$0xff]
    %v246 = vld [vmem:[%s1 + $0x70] sm:$0xff]
    %v247 = vld [vmem:[%s1 + $0x78] sm:$0xff]
    %v248 = vld [vmem:[%s1 + $0x80] sm:$0xff]
    %v249 = vld [vmem:[%s1 + $0x88] sm:$0xff]
    %v250 = vld [vmem:[%s1 + $0x90] sm:$0xff]
    %v251 = vld [vmem:[%s1 + $0x98] sm:$0xff]
    %v252 = vld [vmem:[%s1 + $0xa0] sm:$0xff]
    %v253 = vld [vmem:[%s1 + $0xa8] sm:$0xff]
    %v254 = vld [vmem:[%s1 + $0xb0] sm:$0xff]
    %v255 = vld [vmem:[%s1 + $0xb8] sm:$0xff]
    %v256 = vld [vmem:[%s1 + $0xc0] sm:$0xff]
    %v257 = vld [vmem:[%s1 + $0xc8] sm:$0xff]
    %v258 = vld [vmem:[%s1 + $0xd0] sm:$0xff]
    %v259 = vld [vmem:[%s1 + $0xd8] sm:$0xff]
    %v260 = vld [vmem:[%s1 + $0xe0] sm:$0xff]
    %v261 = vld [vmem:[%s1 + $0xe8] sm:$0xff]
    %v262 = vld [vmem:[%s1 + $0xf0] sm:$0xff]
    %v263 = vld [vmem:[%s1 + $0xf8] sm:$0xff]
    %v264 = vld [vmem:[#allocation6] sm:$0xf]
    %v266 = vlaneseq
    %v267 = vshrl.u32 %v266, 7
    %v268 = vsub.s32 0, %v267
    %v269 = vrot.slane %v264, %v268
    %v270 = vlaneseq
    %v271 = vshrl.u32 %v270, 7
    %v272 = vsub.s32 1, %v271
    %v273 = vrot.slane %v264, %v272
    %v274 = vlaneseq
    %v275 = vshrl.u32 %v274, 7
    %v276 = vsub.s32 2, %v275
    %v277 = vrot.slane %v264, %v276
    %v278 = vlaneseq
    %v279 = vshrl.u32 %v278, 7
    %v280 = vsub.s32 3, %v279
    %v281 = vrot.slane %v264, %v280
    %v318 = vunpack.c.l.b16 %v232
    %v319 = vunpack.c.h.b16 %v232
    %v320 = vunpack.c.l.b16 %v233
    %v321 = vunpack.c.h.b16 %v233
    %v322 = vunpack.c.l.b16 %v234
    %v323 = vunpack.c.h.b16 %v234
    %v324 = vunpack.c.l.b16 %v235
    %v325 = vunpack.c.h.b16 %v235
    %v326 = vunpack.c.l.b16 %v236
    %v327 = vunpack.c.h.b16 %v236
    %v328 = vunpack.c.l.b16 %v237
    %v329 = vunpack.c.h.b16 %v237
    %v330 = vunpack.c.l.b16 %v238
    %v331 = vunpack.c.h.b16 %v238
    %v332 = vunpack.c.l.b16 %v239
    %v333 = vunpack.c.h.b16 %v239
    %v334 = vunpack.c.l.b16 %v240
    %v335 = vunpack.c.h.b16 %v240
    %v336 = vunpack.c.l.b16 %v241
    %v337 = vunpack.c.h.b16 %v241
    %v338 = vunpack.c.l.b16 %v242
    %v339 = vunpack.c.h.b16 %v242
    %v340 = vunpack.c.l.b16 %v243
    %v341 = vunpack.c.h.b16 %v243
    %v342 = vunpack.c.l.b16 %v244
    %v343 = vunpack.c.h.b16 %v244
    %v344 = vunpack.c.l.b16 %v245
    %v345 = vunpack.c.h.b16 %v245
    %v346 = vunpack.c.l.b16 %v246
    %v347 = vunpack.c.h.b16 %v246
    %v348 = vunpack.c.l.b16 %v247
    %v349 = vunpack.c.h.b16 %v247
    %v350 = vunpack.c.l.b16 %v248
    %v351 = vunpack.c.h.b16 %v248
    %v352 = vunpack.c.l.b16 %v249
    %v353 = vunpack.c.h.b16 %v249
    %v354 = vunpack.c.l.b16 %v250
    %v355 = vunpack.c.h.b16 %v250
    %v356 = vunpack.c.l.b16 %v251
    %v357 = vunpack.c.h.b16 %v251
    %v358 = vunpack.c.l.b16 %v252
    %v359 = vunpack.c.h.b16 %v252
    %v360 = vunpack.c.l.b16 %v253
    %v361 = vunpack.c.h.b16 %v253
    %v362 = vunpack.c.l.b16 %v254
    %v363 = vunpack.c.h.b16 %v254
    %v364 = vunpack.c.l.b16 %v255
    %v365 = vunpack.c.h.b16 %v255
    %v366 = vunpack.c.l.b16 %v256
    %v367 = vunpack.c.h.b16 %v256
    %v368 = vunpack.c.l.b16 %v257
    %v369 = vunpack.c.h.b16 %v257
    %v370 = vunpack.c.l.b16 %v258
    %v371 = vunpack.c.h.b16 %v258
    %v372 = vunpack.c.l.b16 %v259
    %v373 = vunpack.c.h.b16 %v259
    %v374 = vunpack.c.l.b16 %v260
    %v375 = vunpack.c.h.b16 %v260
    %v376 = vunpack.c.l.b16 %v261
    %v377 = vunpack.c.h.b16 %v261
    %v378 = vunpack.c.l.b16 %v262
    %v379 = vunpack.c.h.b16 %v262
    %v380 = vunpack.c.l.b16 %v263
    %v381 = vunpack.c.h.b16 %v263
    %v382 = vpack.c.b16 %v322, %v318
    %v383 = vpack.c.b16 %v323, %v319
    %v384 = vpack.c.b16 %v324, %v320
    %v385 = vpack.c.b16 %v325, %v321
    %v386 = vpack.c.b16 %v330, %v326
    %v387 = vpack.c.b16 %v331, %v327
    %v388 = vpack.c.b16 %v332, %v328
    %v389 = vpack.c.b16 %v333, %v329
    %v390 = vpack.c.b16 %v338, %v334
    %v391 = vpack.c.b16 %v339, %v335
    %v392 = vpack.c.b16 %v340, %v336
    %v393 = vpack.c.b16 %v341, %v337
    %v394 = vpack.c.b16 %v346, %v342
    %v395 = vpack.c.b16 %v347, %v343
    %v396 = vpack.c.b16 %v348, %v344
    %v397 = vpack.c.b16 %v349, %v345
    %v398 = vpack.c.b16 %v354, %v350
    %v399 = vpack.c.b16 %v355, %v351
    %v400 = vpack.c.b16 %v356, %v352
    %v401 = vpack.c.b16 %v357, %v353
    %v402 = vpack.c.b16 %v362, %v358
    %v403 = vpack.c.b16 %v363, %v359
    %v404 = vpack.c.b16 %v364, %v360
    %v405 = vpack.c.b16 %v365, %v361
    %v406 = vpack.c.b16 %v370, %v366
    %v407 = vpack.c.b16 %v371, %v367
    %v408 = vpack.c.b16 %v372, %v368
    %v409 = vpack.c.b16 %v373, %v369
    %v410 = vpack.c.b16 %v378, %v374
    %v411 = vpack.c.b16 %v379, %v375
    %v412 = vpack.c.b16 %v380, %v376
    %v413 = vpack.c.b16 %v381, %v377
    %446 = vmatprep.subr.bf16.mxu0 %v383
    %447 = vmatpush1.bf16.msra.mxu0 %v382
    %448 = vmatprep.subr.bf16.mxu0 %v387
    %449 = vmatpush1.bf16.msra.mxu0 %v386
    %450 = vmatprep.subr.bf16.mxu0 %v391
    %451 = vmatpush1.bf16.msra.mxu0 %v390
    %452 = vmatprep.subr.bf16.mxu0 %v395
    %453 = vmatpush1.bf16.msra.mxu0 %v394
    %454 = vmatprep.subr.bf16.mxu0 %v399
    %455 = vmatpush1.bf16.msra.mxu0 %v398
    %456 = vmatprep.subr.bf16.mxu0 %v403
    %457 = vmatpush1.bf16.msra.mxu0 %v402
    %458 = vmatprep.subr.bf16.mxu0 %v407
    %459 = vmatpush1.bf16.msra.mxu0 %v406
    %460 = vmatprep.subr.bf16.mxu0 %v411
    %461 = vmatpush1.bf16.msra.mxu0 %v410
    %462 = vmatprep.subr.bf16.mxu0 0
    %463 = vmatpush1.bf16.msra.mxu0 0
    %464 = vmatprep.subr.bf16.mxu0 0
    %465 = vmatpush1.bf16.msra.mxu0 0
    %466 = vmatprep.subr.bf16.mxu0 0
    %467 = vmatpush1.bf16.msra.mxu0 0
    %468 = vmatprep.subr.bf16.mxu0 0
    %469 = vmatpush1.bf16.msra.mxu0 0
    %470 = vmatprep.subr.bf16.mxu0 0
    %471 = vmatpush1.bf16.msra.mxu0 0
    %472 = vmatprep.subr.bf16.mxu0 0
    %473 = vmatpush1.bf16.msra.mxu0 0
    %474 = vmatprep.subr.bf16.mxu0 0
    %475 = vmatpush1.bf16.msra.mxu0 0
    %476 = vmatprep.subr.bf16.mxu0 0
    %477 = vmatpush1.bf16.msra.mxu0 0
    %478 = vmatprep.mubr.bf16.mxu0 0
    %479 = vmatmul.mubr.bf16.gmra.mrb[0].mxu0 %v228
    %v480 = vpop.f32.mrb[0].mxu0
    %v481 = vadd.f32 %v269, %v480
    %v482 = vpop.f32.mrb[0].mxu0
    %v483 = vadd.f32 %v273, %v482
    %v484 = vpop.f32.mrb[0].mxu0
    %v485 = vadd.f32 %v269, %v484
    %v486 = vpop.f32.mrb[0].mxu0
    %v487 = vadd.f32 %v273, %v486
    %488 = vmatprep.mubr.bf16.mxu0 0
    %489 = vmatmul.mubr.bf16.gmra.mrb[0].mxu0 %v229
    %v490 = vpop.f32.mrb[0].mxu0
    %v491 = vadd.f32 %v269, %v490
    %v492 = vpop.f32.mrb[0].mxu0
    %v493 = vadd.f32 %v273, %v492
    %v494 = vpop.f32.mrb[0].mxu0
    %v495 = vadd.f32 %v269, %v494
    %v496 = vpop.f32.mrb[0].mxu0
    %v497 = vadd.f32 %v273, %v496
    %498 = vmatprep.mubr.bf16.mxu0 0
    %499 = vmatmul.mubr.bf16.gmra.mrb[0].mxu0 %v230
    %v500 = vpop.f32.mrb[0].mxu0
    %v501 = vadd.f32 %v269, %v500
    %v502 = vpop.f32.mrb[0].mxu0
    %v503 = vadd.f32 %v273, %v502
    %v504 = vpop.f32.mrb[0].mxu0
    %v505 = vadd.f32 %v269, %v504
    %v506 = vpop.f32.mrb[0].mxu0
    %v507 = vadd.f32 %v273, %v506
    %508 = vmatprep.mubr.bf16.mxu0 0
    %509 = vmatmul.mubr.bf16.gmra.mrb[0].mxu0 %v231
    %v510 = vpop.f32.mrb[0].mxu0
    %v511 = vadd.f32 %v269, %v510
    %v512 = vpop.f32.mrb[0].mxu0
    %v513 = vadd.f32 %v273, %v512
    %v514 = vpop.f32.mrb[0].mxu0
    %v515 = vadd.f32 %v269, %v514
    %v516 = vpop.f32.mrb[0].mxu0
    %v517 = vadd.f32 %v273, %v516
    %518 = vdwg.mxu0
    %519 = vmatprep.subr.bf16.mxu0 %v385
    %520 = vmatpush1.bf16.msra.mxu0 %v384
    %521 = vmatprep.subr.bf16.mxu0 %v389
    %522 = vmatpush1.bf16.msra.mxu0 %v388
    %523 = vmatprep.subr.bf16.mxu0 %v393
    %524 = vmatpush1.bf16.msra.mxu0 %v392
    %525 = vmatprep.subr.bf16.mxu0 %v397
    %526 = vmatpush1.bf16.msra.mxu0 %v396
    %527 = vmatprep.subr.bf16.mxu0 %v401
    %528 = vmatpush1.bf16.msra.mxu0 %v400
    %529 = vmatprep.subr.bf16.mxu0 %v405
    %530 = vmatpush1.bf16.msra.mxu0 %v404
    %531 = vmatprep.subr.bf16.mxu0 %v409
    %532 = vmatpush1.bf16.msra.mxu0 %v408
    %533 = vmatprep.subr.bf16.mxu0 %v413
    %534 = vmatpush1.bf16.msra.mxu0 %v412
    %535 = vmatprep.subr.bf16.mxu0 0
    %536 = vmatpush1.bf16.msra.mxu0 0
    %537 = vmatprep.subr.bf16.mxu0 0
    %538 = vmatpush1.bf16.msra.mxu0 0
    %539 = vmatprep.subr.bf16.mxu0 0
    %540 = vmatpush1.bf16.msra.mxu0 0
    %541 = vmatprep.subr.bf16.mxu0 0
    %542 = vmatpush1.bf16.msra.mxu0 0
    %543 = vmatprep.subr.bf16.mxu0 0
    %544 = vmatpush1.bf16.msra.mxu0 0
    %545 = vmatprep.subr.bf16.mxu0 0
    %546 = vmatpush1.bf16.msra.mxu0 0
    %547 = vmatprep.subr.bf16.mxu0 0
    %548 = vmatpush1.bf16.msra.mxu0 0
    %549 = vmatprep.subr.bf16.mxu0 0
    %550 = vmatpush1.bf16.msra.mxu0 0
    %551 = vmatprep.mubr.bf16.mxu0 0
    %552 = vmatmul.mubr.bf16.gmra.mrb[0].mxu0 %v228
    %v553 = vpop.f32.mrb[0].mxu0
    %v554 = vadd.f32 %v277, %v553
    %v555 = vpop.f32.mrb[0].mxu0
    %v556 = vadd.f32 %v281, %v555
    %v557 = vpop.f32.mrb[0].mxu0
    %v558 = vadd.f32 %v277, %v557
    %v559 = vpop.f32.mrb[0].mxu0
    %v560 = vadd.f32 %v281, %v559
    %561 = vmatprep.mubr.bf16.mxu0 0
    %562 = vmatmul.mubr.bf16.gmra.mrb[0].mxu0 %v229
    %v563 = vpop.f32.mrb[0].mxu0
    %v564 = vadd.f32 %v277, %v563
    %v565 = vpop.f32.mrb[0].mxu0
    %v566 = vadd.f32 %v281, %v565
    %v567 = vpop.f32.mrb[0].mxu0
    %v568 = vadd.f32 %v277, %v567
    %v569 = vpop.f32.mrb[0].mxu0
    %v570 = vadd.f32 %v281, %v569
    %571 = vmatprep.mubr.bf16.mxu0 0
    %572 = vmatmul.mubr.bf16.gmra.mrb[0].mxu0 %v230
    %v573 = vpop.f32.mrb[0].mxu0
    %v574 = vadd.f32 %v277, %v573
    %v575 = vpop.f32.mrb[0].mxu0
    %v576 = vadd.f32 %v281, %v575
    %v577 = vpop.f32.mrb[0].mxu0
    %v578 = vadd.f32 %v277, %v577
    %v579 = vpop.f32.mrb[0].mxu0
    %v580 = vadd.f32 %v281, %v579
    %581 = vmatprep.mubr.bf16.mxu0 0
    %582 = vmatmul.mubr.bf16.gmra.mrb[0].mxu0 %v231
    %v583 = vpop.f32.mrb[0].mxu0
    %v584 = vadd.f32 %v277, %v583
    %v585 = vpop.f32.mrb[0].mxu0
    %v586 = vadd.f32 %v281, %v585
    %v587 = vpop.f32.mrb[0].mxu0
    %v588 = vadd.f32 %v277, %v587
    %v589 = vpop.f32.mrb[0].mxu0
    %v590 = vadd.f32 %v281, %v589
    %591 = vdwg.mxu0
    %592 = vst [vmem:[#allocation2] sm:$0xff] %v481
    %593 = vst [vmem:[#allocation2 + $0x8] sm:$0xff] %v483
    %594 = vst [vmem:[#allocation2 + $0x10] sm:$0xff] %v554
    %595 = vst [vmem:[#allocation2 + $0x18] sm:$0xff] %v556
    %596 = vst [vmem:[#allocation2 + $0x20] sm:$0xff] %v485
    %597 = vst [vmem:[#allocation2 + $0x28] sm:$0xff] %v487
    %598 = vst [vmem:[#allocation2 + $0x30] sm:$0xff] %v558
    %599 = vst [vmem:[#allocation2 + $0x38] sm:$0xff] %v560
    %600 = vst [vmem:[#allocation2 + $0x40] sm:$0xff] %v491
    %601 = vst [vmem:[#allocation2 + $0x48] sm:$0xff] %v493
    %602 = vst [vmem:[#allocation2 + $0x50] sm:$0xff] %v564
    %603 = vst [vmem:[#allocation2 + $0x58] sm:$0xff] %v566
    %604 = vst [vmem:[#allocation2 + $0x60] sm:$0xff] %v495
    %605 = vst [vmem:[#allocation2 + $0x68] sm:$0xff] %v497
    %606 = vst [vmem:[#allocation2 + $0x70] sm:$0xff] %v568
    %607 = vst [vmem:[#allocation2 + $0x78] sm:$0xff] %v570
    %608 = vst [vmem:[#allocation2 + $0x80] sm:$0xff] %v501
    %609 = vst [vmem:[#allocation2 + $0x88] sm:$0xff] %v503
    %610 = vst [vmem:[#allocation2 + $0x90] sm:$0xff] %v574
    %611 = vst [vmem:[#allocation2 + $0x98] sm:$0xff] %v576
    %612 = vst [vmem:[#allocation2 + $0xa0] sm:$0xff] %v505
    %613 = vst [vmem:[#allocation2 + $0xa8] sm:$0xff] %v507
    %614 = vst [vmem:[#allocation2 + $0xb0] sm:$0xff] %v578
    %615 = vst [vmem:[#allocation2 + $0xb8] sm:$0xff] %v580
    %616 = vst [vmem:[#allocation2 + $0xc0] sm:$0xff] %v511
    %617 = vst [vmem:[#allocation2 + $0xc8] sm:$0xff] %v513
    %618 = vst [vmem:[#allocation2 + $0xd0] sm:$0xff] %v584
    %619 = vst [vmem:[#allocation2 + $0xd8] sm:$0xff] %v586
    %620 = vst [vmem:[#allocation2 + $0xe0] sm:$0xff] %v515
    %621 = vst [vmem:[#allocation2 + $0xe8] sm:$0xff] %v517
    %622 = vst [vmem:[#allocation2 + $0xf0] sm:$0xff] %v588
    %623 = vst [vmem:[#allocation2 + $0xf8] sm:$0xff] %v590
    %v624 = vld [vmem:[#allocation3] sm:$0xff]
    %v625 = vld [vmem:[#allocation3 + $0x8] sm:$0xff]
    %v626 = vld [vmem:[#allocation3 + $0x10] sm:$0xff]
    %v627 = vld [vmem:[#allocation3 + $0x18] sm:$0xff]
    %v628 = vld [vmem:[#allocation3 + $0x20] sm:$0xff]
    %v629 = vld [vmem:[#allocation3 + $0x28] sm:$0xff]
    %v630 = vld [vmem:[#allocation3 + $0x30] sm:$0xff]
    %v631 = vld [vmem:[#allocation3 + $0x38] sm:$0xff]
    %v632 = vld [vmem:[#allocation3 + $0x40] sm:$0xff]
    %v633 = vld [vmem:[#allocation3 + $0x48] sm:$0xff]
    %v634 = vld [vmem:[#allocation3 + $0x50] sm:$0xff]
    %v635 = vld [vmem:[#allocation3 + $0x58] sm:$0xff]
    %v636 = vld [vmem:[#allocation3 + $0x60] sm:$0xff]
    %v637 = vld [vmem:[#allocation3 + $0x68] sm:$0xff]
    %v638 = vld [vmem:[#allocation3 + $0x70] sm:$0xff]
    %v639 = vld [vmem:[#allocation3 + $0x78] sm:$0xff]
    %v640 = vld [vmem:[#allocation3 + $0x80] sm:$0xff]
    %v641 = vld [vmem:[#allocation3 + $0x88] sm:$0xff]
    %v642 = vld [vmem:[#allocation3 + $0x90] sm:$0xff]
    %v643 = vld [vmem:[#allocation3 + $0x98] sm:$0xff]
    %v644 = vld [vmem:[#allocation3 + $0xa0] sm:$0xff]
    %v645 = vld [vmem:[#allocation3 + $0xa8] sm:$0xff]
    %v646 = vld [vmem:[#allocation3 + $0xb0] sm:$0xff]
    %v647 = vld [vmem:[#allocation3 + $0xb8] sm:$0xff]
    %v648 = vld [vmem:[#allocation3 + $0xc0] sm:$0xff]
    %v649 = vld [vmem:[#allocation3 + $0xc8] sm:$0xff]
    %v650 = vld [vmem:[#allocation3 + $0xd0] sm:$0xff]
    %v651 = vld [vmem:[#allocation3 + $0xd8] sm:$0xff]
    %v652 = vld [vmem:[#allocation3 + $0xe0] sm:$0xff]
    %v653 = vld [vmem:[#allocation3 + $0xe8] sm:$0xff]
    %v654 = vld [vmem:[#allocation3 + $0xf0] sm:$0xff]
    %v655 = vld [vmem:[#allocation3 + $0xf8] sm:$0xff]
    %v656 = vld [vmem:[#allocation2] sm:$0xff]
    %v657 = vld [vmem:[#allocation2 + $0x8] sm:$0xff]
    %v658 = vld [vmem:[#allocation2 + $0x10] sm:$0xff]
    %v659 = vld [vmem:[#allocation2 + $0x18] sm:$0xff]
    %v692 = vunpack.c.l.b16 %v624
    %v693 = vunpack.c.h.b16 %v624
    %v694 = vunpack.c.l.b16 %v625
    %v695 = vunpack.c.h.b16 %v625
    %v696 = vunpack.c.l.b16 %v626
    %v697 = vunpack.c.h.b16 %v626
    %v698 = vunpack.c.l.b16 %v627
    %v699 = vunpack.c.h.b16 %v627
    %v700 = vunpack.c.l.b16 %v628
    %v701 = vunpack.c.h.b16 %v628
    %v702 = vunpack.c.l.b16 %v629
    %v703 = vunpack.c.h.b16 %v629
    %v704 = vunpack.c.l.b16 %v630
    %v705 = vunpack.c.h.b16 %v630
    %v706 = vunpack.c.l.b16 %v631
    %v707 = vunpack.c.h.b16 %v631
    %v708 = vunpack.c.l.b16 %v632
    %v709 = vunpack.c.h.b16 %v632
    %v710 = vunpack.c.l.b16 %v633
    %v711 = vunpack.c.h.b16 %v633
    %v712 = vunpack.c.l.b16 %v634
    %v713 = vunpack.c.h.b16 %v634
    %v714 = vunpack.c.l.b16 %v635
    %v715 = vunpack.c.h.b16 %v635
    %v716 = vunpack.c.l.b16 %v636
    %v717 = vunpack.c.h.b16 %v636
    %v718 = vunpack.c.l.b16 %v637
    %v719 = vunpack.c.h.b16 %v637
    %v720 = vunpack.c.l.b16 %v638
    %v721 = vunpack.c.h.b16 %v638
    %v722 = vunpack.c.l.b16 %v639
    %v723 = vunpack.c.h.b16 %v639
    %v724 = vunpack.c.l.b16 %v640
    %v725 = vunpack.c.h.b16 %v640
    %v726 = vunpack.c.l.b16 %v641
    %v727 = vunpack.c.h.b16 %v641
    %v728 = vunpack.c.l.b16 %v642
    %v729 = vunpack.c.h.b16 %v642
    %v730 = vunpack.c.l.b16 %v643
    %v731 = vunpack.c.h.b16 %v643
    %v732 = vunpack.c.l.b16 %v644
    %v733 = vunpack.c.h.b16 %v644
    %v734 = vunpack.c.l.b16 %v645
    %v735 = vunpack.c.h.b16 %v645
    %v736 = vunpack.c.l.b16 %v646
    %v737 = vunpack.c.h.b16 %v646
    %v738 = vunpack.c.l.b16 %v647
    %v739 = vunpack.c.h.b16 %v647
    %v740 = vunpack.c.l.b16 %v648
    %v741 = vunpack.c.h.b16 %v648
    %v742 = vunpack.c.l.b16 %v649
    %v743 = vunpack.c.h.b16 %v649
    %v744 = vunpack.c.l.b16 %v650
    %v745 = vunpack.c.h.b16 %v650
    %v746 = vunpack.c.l.b16 %v651
    %v747 = vunpack.c.h.b16 %v651
    %v748 = vunpack.c.l.b16 %v652
    %v749 = vunpack.c.h.b16 %v652
    %v750 = vunpack.c.l.b16 %v653
    %v751 = vunpack.c.h.b16 %v653
    %v752 = vunpack.c.l.b16 %v654
    %v753 = vunpack.c.h.b16 %v654
    %v754 = vunpack.c.l.b16 %v655
    %v755 = vunpack.c.h.b16 %v655
    %v756 = vpack.c.b16 %v696, %v692
    %v757 = vpack.c.b16 %v697, %v693
    %v758 = vpack.c.b16 %v698, %v694
    %v759 = vpack.c.b16 %v699, %v695
    %v760 = vpack.c.b16 %v704, %v700
    %v761 = vpack.c.b16 %v705, %v701
    %v762 = vpack.c.b16 %v706, %v702
    %v763 = vpack.c.b16 %v707, %v703
    %v764 = vpack.c.b16 %v712, %v708
    %v765 = vpack.c.b16 %v713, %v709
    %v766 = vpack.c.b16 %v714, %v710
    %v767 = vpack.c.b16 %v715, %v711
    %v768 = vpack.c.b16 %v720, %v716
    %v769 = vpack.c.b16 %v721, %v717
    %v770 = vpack.c.b16 %v722, %v718
    %v771 = vpack.c.b16 %v723, %v719
    %v772 = vpack.c.b16 %v728, %v724
    %v773 = vpack.c.b16 %v729, %v725
    %v774 = vpack.c.b16 %v730, %v726
    %v775 = vpack.c.b16 %v731, %v727
    %v776 = vpack.c.b16 %v736, %v732
    %v777 = vpack.c.b16 %v737, %v733
    %v778 = vpack.c.b16 %v738, %v734
    %v779 = vpack.c.b16 %v739, %v735
    %v780 = vpack.c.b16 %v744, %v740
    %v781 = vpack.c.b16 %v745, %v741
    %v782 = vpack.c.b16 %v746, %v742
    %v783 = vpack.c.b16 %v747, %v743
    %v784 = vpack.c.b16 %v752, %v748
    %v785 = vpack.c.b16 %v753, %v749
    %v786 = vpack.c.b16 %v754, %v750
    %v787 = vpack.c.b16 %v755, %v751
    %820 = vmatprep.subr.bf16.mxu0 %v757
    %821 = vmatpush1.bf16.msra.mxu0 %v756
    %822 = vmatprep.subr.bf16.mxu0 %v761
    %823 = vmatpush1.bf16.msra.mxu0 %v760
    %824 = vmatprep.subr.bf16.mxu0 %v765
    %825 = vmatpush1.bf16.msra.mxu0 %v764
    %826 = vmatprep.subr.bf16.mxu0 %v769
    %827 = vmatpush1.bf16.msra.mxu0 %v768
    %828 = vmatprep.subr.bf16.mxu0 %v773
    %829 = vmatpush1.bf16.msra.mxu0 %v772
    %830 = vmatprep.subr.bf16.mxu0 %v777
    %831 = vmatpush1.bf16.msra.mxu0 %v776
    %832 = vmatprep.subr.bf16.mxu0 %v781
    %833 = vmatpush1.bf16.msra.mxu0 %v780
    %834 = vmatprep.subr.bf16.mxu0 %v785
    %835 = vmatpush1.bf16.msra.mxu0 %v784
    %836 = vmatprep.subr.bf16.mxu0 0
    %837 = vmatpush1.bf16.msra.mxu0 0
    %838 = vmatprep.subr.bf16.mxu0 0
    %839 = vmatpush1.bf16.msra.mxu0 0
    %840 = vmatprep.subr.bf16.mxu0 0
    %841 = vmatpush1.bf16.msra.mxu0 0
    %842 = vmatprep.subr.bf16.mxu0 0
    %843 = vmatpush1.bf16.msra.mxu0 0
    %844 = vmatprep.subr.bf16.mxu0 0
    %845 = vmatpush1.bf16.msra.mxu0 0
    %846 = vmatprep.subr.bf16.mxu0 0
    %847 = vmatpush1.bf16.msra.mxu0 0
    %848 = vmatprep.subr.bf16.mxu0 0
    %849 = vmatpush1.bf16.msra.mxu0 0
    %850 = vmatprep.subr.bf16.mxu0 0
    %851 = vmatpush1.bf16.msra.mxu0 0
    %852 = vmatprep.mubr.bf16.mxu0 0
    %853 = vmatmul.mubr.bf16.gmra.mrb[0].mxu0 0
    %v854 = vpop.f32.mrb[0].mxu0
    %v855 = vadd.f32 0.0, %v854
    %v856 = vpop.f32.mrb[0].mxu0
    %v857 = vadd.f32 0.0, %v856
    %v858 = vpop.f32.mrb[0].mxu0
    %v859 = vpop.f32.mrb[0].mxu0
    %860 = vdwg.mxu0
    %861 = vmatprep.subr.bf16.mxu0 %v759
    %862 = vmatpush1.bf16.msra.mxu0 %v758
    %863 = vmatprep.subr.bf16.mxu0 %v763
    %864 = vmatpush1.bf16.msra.mxu0 %v762
    %865 = vmatprep.subr.bf16.mxu0 %v767
    %866 = vmatpush1.bf16.msra.mxu0 %v766
    %867 = vmatprep.subr.bf16.mxu0 %v771
    %868 = vmatpush1.bf16.msra.mxu0 %v770
    %869 = vmatprep.subr.bf16.mxu0 %v775
    %870 = vmatpush1.bf16.msra.mxu0 %v774
    %871 = vmatprep.subr.bf16.mxu0 %v779
    %872 = vmatpush1.bf16.msra.mxu0 %v778
    %873 = vmatprep.subr.bf16.mxu0 %v783
    %874 = vmatpush1.bf16.msra.mxu0 %v782
    %875 = vmatprep.subr.bf16.mxu0 %v787
    %876 = vmatpush1.bf16.msra.mxu0 %v786
    %877 = vmatprep.subr.bf16.mxu0 0
    %878 = vmatpush1.bf16.msra.mxu0 0
    %879 = vmatprep.subr.bf16.mxu0 0
    %880 = vmatpush1.bf16.msra.mxu0 0
    %881 = vmatprep.subr.bf16.mxu0 0
    %882 = vmatpush1.bf16.msra.mxu0 0
    %883 = vmatprep.subr.bf16.mxu0 0
    %884 = vmatpush1.bf16.msra.mxu0 0
    %885 = vmatprep.subr.bf16.mxu0 0
    %886 = vmatpush1.bf16.msra.mxu0 0
    %887 = vmatprep.subr.bf16.mxu0 0
    %888 = vmatpush1.bf16.msra.mxu0 0
    %889 = vmatprep.subr.bf16.mxu0 0
    %890 = vmatpush1.bf16.msra.mxu0 0
    %891 = vmatprep.subr.bf16.mxu0 0
    %892 = vmatpush1.bf16.msra.mxu0 0
    %893 = vmatprep.mubr.bf16.mxu0 0
    %894 = vmatmul.mubr.bf16.gmra.mrb[0].mxu0 0
    %v895 = vpop.f32.mrb[0].mxu0
    %v896 = vadd.f32 0.0, %v895
    %v897 = vpop.f32.mrb[0].mxu0
    %v898 = vadd.f32 0.0, %v897
    %v899 = vpop.f32.mrb[0].mxu0
    %v900 = vpop.f32.mrb[0].mxu0
    %901 = vdwg.mxu0
    %v902 = vadd.f32 %v656, %v855
    %v903 = vadd.f32 %v657, %v857
    %v904 = vadd.f32 %v658, %v896
    %v905 = vadd.f32 %v659, %v898
    %v906 = vmul.f32 %v902, 0.5
    %v907 = vtanh.pop %v906
    %v908 = vmul.f32 %v907, 0.5
    %v909 = vadd.f32 %v908, 0.5
    %v910 = vmul.f32 %v903, 0.5
    %v911 = vtanh.pop %v910
    %v912 = vmul.f32 %v911, 0.5
    %v913 = vadd.f32 %v912, 0.5
    %v914 = vtanh.pop %v904
    %v915 = vmul.f32 %v905, 0.5
    %v916 = vtanh.pop %v915
    %v917 = vmul.f32 %v916, 0.5
    %v918 = vadd.f32 %v917, 0.5
    %v919 = vmul.f32 %v913, 0.0
    %v920 = vmul.f32 %v909, %v914
    %v921 = vadd.f32 %v919, %v920
    %v922 = vtanh.pop %v921
    %v923 = vmul.f32 %v918, %v922
    %v924 = vld [vmem:[#allocation2 + $0x20] sm:$0xff]
    %v925 = vld [vmem:[#allocation2 + $0x28] sm:$0xff]
    %v926 = vld [vmem:[#allocation2 + $0x30] sm:$0xff]
    %v927 = vld [vmem:[#allocation2 + $0x38] sm:$0xff]
    %v928 = vpack.c.bf16 %v923, %v923
    %929 = vmatprep.subr.bf16.mxu0 %v757
    %930 = vmatpush1.bf16.msra.mxu0 %v756
    %931 = vmatprep.subr.bf16.mxu0 %v761
    %932 = vmatpush1.bf16.msra.mxu0 %v760
    %933 = vmatprep.subr.bf16.mxu0 %v765
    %934 = vmatpush1.bf16.msra.mxu0 %v764
    %935 = vmatprep.subr.bf16.mxu0 %v769
    %936 = vmatpush1.bf16.msra.mxu0 %v768
    %937 = vmatprep.subr.bf16.mxu0 %v773
    %938 = vmatpush1.bf16.msra.mxu0 %v772
    %939 = vmatprep.subr.bf16.mxu0 %v777
    %940 = vmatpush1.bf16.msra.mxu0 %v776
    %941 = vmatprep.subr.bf16.mxu0 %v781
    %942 = vmatpush1.bf16.msra.mxu0 %v780
    %943 = vmatprep.subr.bf16.mxu0 %v785
    %944 = vmatpush1.bf16.msra.mxu0 %v784
    %945 = vmatprep.subr.bf16.mxu0 0
    %946 = vmatpush1.bf16.msra.mxu0 0
    %947 = vmatprep.subr.bf16.mxu0 0
    %948 = vmatpush1.bf16.msra.mxu0 0
    %949 = vmatprep.subr.bf16.mxu0 0
    %950 = vmatpush1.bf16.msra.mxu0 0
    %951 = vmatprep.subr.bf16.mxu0 0
    %952 = vmatpush1.bf16.msra.mxu0 0
    %953 = vmatprep.subr.bf16.mxu0 0
    %954 = vmatpush1.bf16.msra.mxu0 0
    %955 = vmatprep.subr.bf16.mxu0 0
    %956 = vmatpush1.bf16.msra.mxu0 0
    %957 = vmatprep.subr.bf16.mxu0 0
    %958 = vmatpush1.bf16.msra.mxu0 0
    %959 = vmatprep.subr.bf16.mxu0 0
    %960 = vmatpush1.bf16.msra.mxu0 0
    %961 = vmatprep.mubr.bf16.mxu0 0
    %962 = vmatmul.mubr.bf16.gmra.mrb[0].mxu0 %v928
    %v963 = vpop.f32.mrb[0].mxu0
    %v964 = vadd.f32 0.0, %v963
    %v965 = vpop.f32.mrb[0].mxu0
    %v966 = vadd.f32 0.0, %v965
    %v967 = vpop.f32.mrb[0].mxu0
    %v968 = vpop.f32.mrb[0].mxu0
    %969 = vdwg.mxu0
    %970 = vmatprep.subr.bf16.mxu0 %v759
    %971 = vmatpush1.bf16.msra.mxu0 %v758
    %972 = vmatprep.subr.bf16.mxu0 %v763
    %973 = vmatpush1.bf16.msra.mxu0 %v762
    %974 = vmatprep.subr.bf16.mxu0 %v767
    %975 = vmatpush1.bf16.msra.mxu0 %v766
    %976 = vmatprep.subr.bf16.mxu0 %v771
    %977 = vmatpush1.bf16.msra.mxu0 %v770
    %978 = vmatprep.subr.bf16.mxu0 %v775
    %979 = vmatpush1.bf16.msra.mxu0 %v774
    %980 = vmatprep.subr.bf16.mxu0 %v779
    %981 = vmatpush1.bf16.msra.mxu0 %v778
    %982 = vmatprep.subr.bf16.mxu0 %v783
    %983 = vmatpush1.bf16.msra.mxu0 %v782
    %984 = vmatprep.subr.bf16.mxu0 %v787
    %985 = vmatpush1.bf16.msra.mxu0 %v786
    %986 = vmatprep.subr.bf16.mxu0 0
    %987 = vmatpush1.bf16.msra.mxu0 0
    %988 = vmatprep.subr.bf16.mxu0 0
    %989 = vmatpush1.bf16.msra.mxu0 0
    %990 = vmatprep.subr.bf16.mxu0 0
    %991 = vmatpush1.bf16.msra.mxu0 0
    %992 = vmatprep.subr.bf16.mxu0 0
    %993 = vmatpush1.bf16.msra.mxu0 0
    %994 = vmatprep.subr.bf16.mxu0 0
    %995 = vmatpush1.bf16.msra.mxu0 0
    %996 = vmatprep.subr.bf16.mxu0 0
    %997 = vmatpush1.bf16.msra.mxu0 0
    %998 = vmatprep.subr.bf16.mxu0 0
    %999 = vmatpush1.bf16.msra.mxu0 0
    %1000 = vmatprep.subr.bf16.mxu0 0
    %1001 = vmatpush1.bf16.msra.mxu0 0
    %1002 = vmatprep.mubr.bf16.mxu0 0
    %1003 = vmatmul.mubr.bf16.gmra.mrb[0].mxu0 %v928
    %v1004 = vpop.f32.mrb[0].mxu0
    %v1005 = vadd.f32 0.0, %v1004
    %v1006 = vpop.f32.mrb[0].mxu0
    %v1007 = vadd.f32 0.0, %v1006
    %v1008 = vpop.f32.mrb[0].mxu0
    %v1009 = vpop.f32.mrb[0].mxu0
    %1010 = vdwg.mxu0
    %v1011 = vadd.f32 %v924, %v964
    %v1012 = vadd.f32 %v925, %v966
    %v1013 = vadd.f32 %v926, %v1005
    %v1014 = vadd.f32 %v927, %v1007
    %v1015 = vmul.f32 %v1011, 0.5
    %v1016 = vtanh.pop %v1015
    %v1017 = vmul.f32 %v1016, 0.5
    %v1018 = vadd.f32 %v1017, 0.5
    %v1019 = vmul.f32 %v1012, 0.5
    %v1020 = vtanh.pop %v1019
    %v1021 = vmul.f32 %v1020, 0.5
    %v1022 = vadd.f32 %v1021, 0.5
    %v1023 = vtanh.pop %v1013
    %v1024 = vmul.f32 %v1014, 0.5
    %v1025 = vtanh.pop %v1024
    %v1026 = vmul.f32 %v1025, 0.5
    %v1027 = vadd.f32 %v1026, 0.5
    %v1028 = vmul.f32 %v1022, %v921
    %v1029 = vmul.f32 %v1018, %v1023
    %v1030 = vadd.f32 %v1028, %v1029
    %v1031 = vtanh.pop %v1030
    %v1032 = vmul.f32 %v1027, %v1031
    %v1033 = vld [vmem:[#allocation2 + $0x40] sm:$0xff]
    %v1034 = vld [vmem:[#allocation2 + $0x48] sm:$0xff]
    %v1035 = vld [vmem:[#allocation2 + $0x50] sm:$0xff]
    %v1036 = vld [vmem:[#allocation2 + $0x58] sm:$0xff]
    %v1037 = vpack.c.bf16 %v1032, %v1032
    %1038 = vmatprep.subr.bf16.mxu0 %v757
    %1039 = vmatpush1.bf16.msra.mxu0 %v756
    %1040 = vmatprep.subr.bf16.mxu0 %v761
    %1041 = vmatpush1.bf16.msra.mxu0 %v760
    %1042 = vmatprep.subr.bf16.mxu0 %v765
    %1043 = vmatpush1.bf16.msra.mxu0 %v764
    %1044 = vmatprep.subr.bf16.mxu0 %v769
    %1045 = vmatpush1.bf16.msra.mxu0 %v768
    %1046 = vmatprep.subr.bf16.mxu0 %v773
    %1047 = vmatpush1.bf16.msra.mxu0 %v772
    %1048 = vmatprep.subr.bf16.mxu0 %v777
    %1049 = vmatpush1.bf16.msra.mxu0 %v776
    %1050 = vmatprep.subr.bf16.mxu0 %v781
    %1051 = vmatpush1.bf16.msra.mxu0 %v780
    %1052 = vmatprep.subr.bf16.mxu0 %v785
    %1053 = vmatpush1.bf16.msra.mxu0 %v784
    %1054 = vmatprep.subr.bf16.mxu0 0
    %1055 = vmatpush1.bf16.msra.mxu0 0
    %1056 = vmatprep.subr.bf16.mxu0 0
    %1057 = vmatpush1.bf16.msra.mxu0 0
    %1058 = vmatprep.subr.bf16.mxu0 0
    %1059 = vmatpush1.bf16.msra.mxu0 0
    %1060 = vmatprep.subr.bf16.mxu0 0
    %1061 = vmatpush1.bf16.msra.mxu0 0
    %1062 = vmatprep.subr.bf16.mxu0 0
    %1063 = vmatpush1.bf16.msra.mxu0 0
    %1064 = vmatprep.subr.bf16.mxu0 0
    %1065 = vmatpush1.bf16.msra.mxu0 0
    %1066 = vmatprep.subr.bf16.mxu0 0
    %1067 = vmatpush1.bf16.msra.mxu0 0
    %1068 = vmatprep.subr.bf16.mxu0 0
    %1069 = vmatpush1.bf16.msra.mxu0 0
    %1070 = vmatprep.mubr.bf16.mxu0 0
    %1071 = vmatmul.mubr.bf16.gmra.mrb[0].mxu0 %v1037
    %v1072 = vpop.f32.mrb[0].mxu0
    %v1073 = vadd.f32 0.0, %v1072
    %v1074 = vpop.f32.mrb[0].mxu0
    %v1075 = vadd.f32 0.0, %v1074
    %v1076 = vpop.f32.mrb[0].mxu0
    %v1077 = vpop.f32.mrb[0].mxu0
    %1078 = vdwg.mxu0
    %1079 = vmatprep.subr.bf16.mxu0 %v759
    %1080 = vmatpush1.bf16.msra.mxu0 %v758
    %1081 = vmatprep.subr.bf16.mxu0 %v763
    %1082 = vmatpush1.bf16.msra.mxu0 %v762
    %1083 = vmatprep.subr.bf16.mxu0 %v767
    %1084 = vmatpush1.bf16.msra.mxu0 %v766
    %1085 = vmatprep.subr.bf16.mxu0 %v771
    %1086 = vmatpush1.bf16.msra.mxu0 %v770
    %1087 = vmatprep.subr.bf16.mxu0 %v775
    %1088 = vmatpush1.bf16.msra.mxu0 %v774
    %1089 = vmatprep.subr.bf16.mxu0 %v779
    %1090 = vmatpush1.bf16.msra.mxu0 %v778
    %1091 = vmatprep.subr.bf16.mxu0 %v783
    %1092 = vmatpush1.bf16.msra.mxu0 %v782
    %1093 = vmatprep.subr.bf16.mxu0 %v787
    %1094 = vmatpush1.bf16.msra.mxu0 %v786
    %1095 = vmatprep.subr.bf16.mxu0 0
    %1096 = vmatpush1.bf16.msra.mxu0 0
    %1097 = vmatprep.subr.bf16.mxu0 0
    %1098 = vmatpush1.bf16.msra.mxu0 0
    %1099 = vmatprep.subr.bf16.mxu0 0
    %1100 = vmatpush1.bf16.msra.mxu0 0
    %1101 = vmatprep.subr.bf16.mxu0 0
    %1102 = vmatpush1.bf16.msra.mxu0 0
    %1103 = vmatprep.subr.bf16.mxu0 0
    %1104 = vmatpush1.bf16.msra.mxu0 0
    %1105 = vmatprep.subr.bf16.mxu0 0
    %1106 = vmatpush1.bf16.msra.mxu0 0
    %1107 = vmatprep.subr.bf16.mxu0 0
    %1108 = vmatpush1.bf16.msra.mxu0 0
    %1109 = vmatprep.subr.bf16.mxu0 0
    %1110 = vmatpush1.bf16.msra.mxu0 0
    %1111 = vmatprep.mubr.bf16.mxu0 0
    %1112 = vmatmul.mubr.bf16.gmra.mrb[0].mxu0 %v1037
    %v1113 = vpop.f32.mrb[0].mxu0
    %v1114 = vadd.f32 0.0, %v1113
    %v1115 = vpop.f32.mrb[0].mxu0
    %v1116 = vadd.f32 0.0, %v1115
    %v1117 = vpop.f32.mrb[0].mxu0
    %v1118 = vpop.f32.mrb[0].mxu0
    %1119 = vdwg.mxu0
    %v1120 = vadd.f32 %v1033, %v1073
    %v1121 = vadd.f32 %v1034, %v1075
    %v1122 = vadd.f32 %v1035, %v1114
    %v1123 = vadd.f32 %v1036, %v1116
    %v1124 = vmul.f32 %v1120, 0.5
    %v1125 = vtanh.pop %v1124
    %v1126 = vmul.f32 %v1125, 0.5
    %v1127 = vadd.f32 %v1126, 0.5
    %v1128 = vmul.f32 %v1121, 0.5
    %v1129 = vtanh.pop %v1128
    %v1130 = vmul.f32 %v1129, 0.5
    %v1131 = vadd.f32 %v1130, 0.5
    %v1132 = vtanh.pop %v1122
    %v1133 = vmul.f32 %v1123, 0.5
    %v1134 = vtanh.pop %v1133
    %v1135 = vmul.f32 %v1134, 0.5
    %v1136 = vadd.f32 %v1135, 0.5
    %v1137 = vmul.f32 %v1131, %v1030
    %v1138 = vmul.f32 %v1127, %v1132
    %v1139 = vadd.f32 %v1137, %v1138
    %v1140 = vtanh.pop %v1139
    %v1141 = vmul.f32 %v1136, %v1140
    %v1142 = vld [vmem:[#allocation2 + $0x60] sm:$0xff]
    %v1143 = vld [vmem:[#allocation2 + $0x68] sm:$0xff]
    %v1144 = vld [vmem:[#allocation2 + $0x70] sm:$0xff]
    %v1145 = vld [vmem:[#allocation2 + $0x78] sm:$0xff]
    %v1146 = vpack.c.bf16 %v1141, %v1141
    %1147 = vmatprep.subr.bf16.mxu0 %v757
    %1148 = vmatpush1.bf16.msra.mxu0 %v756
    %1149 = vmatprep.subr.bf16.mxu0 %v761
    %1150 = vmatpush1.bf16.msra.mxu0 %v760
    %1151 = vmatprep.subr.bf16.mxu0 %v765
    %1152 = vmatpush1.bf16.msra.mxu0 %v764
    %1153 = vmatprep.subr.bf16.mxu0 %v769
    %1154 = vmatpush1.bf16.msra.mxu0 %v768
    %1155 = vmatprep.subr.bf16.mxu0 %v773
    %1156 = vmatpush1.bf16.msra.mxu0 %v772
    %1157 = vmatprep.subr.bf16.mxu0 %v777
    %1158 = vmatpush1.bf16.msra.mxu0 %v776
    %1159 = vmatprep.subr.bf16.mxu0 %v781
    %1160 = vmatpush1.bf16.msra.mxu0 %v780
    %1161 = vmatprep.subr.bf16.mxu0 %v785
    %1162 = vmatpush1.bf16.msra.mxu0 %v784
    %1163 = vmatprep.subr.bf16.mxu0 0
    %1164 = vmatpush1.bf16.msra.mxu0 0
    %1165 = vmatprep.subr.bf16.mxu0 0
    %1166 = vmatpush1.bf16.msra.mxu0 0
    %1167 = vmatprep.subr.bf16.mxu0 0
    %1168 = vmatpush1.bf16.msra.mxu0 0
    %1169 = vmatprep.subr.bf16.mxu0 0
    %1170 = vmatpush1.bf16.msra.mxu0 0
    %1171 = vmatprep.subr.bf16.mxu0 0
    %1172 = vmatpush1.bf16.msra.mxu0 0
    %1173 = vmatprep.subr.bf16.mxu0 0
    %1174 = vmatpush1.bf16.msra.mxu0 0
    %1175 = vmatprep.subr.bf16.mxu0 0
    %1176 = vmatpush1.bf16.msra.mxu0 0
    %1177 = vmatprep.subr.bf16.mxu0 0
    %1178 = vmatpush1.bf16.msra.mxu0 0
    %1179 = vmatprep.mubr.bf16.mxu0 0
    %1180 = vmatmul.mubr.bf16.gmra.mrb[0].mxu0 %v1146
    %v1181 = vpop.f32.mrb[0].mxu0
    %v1182 = vadd.f32 0.0, %v1181
    %v1183 = vpop.f32.mrb[0].mxu0
    %v1184 = vadd.f32 0.0, %v1183
    %v1185 = vpop.f32.mrb[0].mxu0
    %v1186 = vpop.f32.mrb[0].mxu0
    %1187 = vdwg.mxu0
    %1188 = vmatprep.subr.bf16.mxu0 %v759
    %1189 = vmatpush1.bf16.msra.mxu0 %v758
    %1190 = vmatprep.subr.bf16.mxu0 %v763
    %1191 = vmatpush1.bf16.msra.mxu0 %v762
    %1192 = vmatprep.subr.bf16.mxu0 %v767
    %1193 = vmatpush1.bf16.msra.mxu0 %v766
    %1194 = vmatprep.subr.bf16.mxu0 %v771
    %1195 = vmatpush1.bf16.msra.mxu0 %v770
    %1196 = vmatprep.subr.bf16.mxu0 %v775
    %1197 = vmatpush1.bf16.msra.mxu0 %v774
    %1198 = vmatprep.subr.bf16.mxu0 %v779
    %1199 = vmatpush1.bf16.msra.mxu0 %v778
    %1200 = vmatprep.subr.bf16.mxu0 %v783
    %1201 = vmatpush1.bf16.msra.mxu0 %v782
    %1202 = vmatprep.subr.bf16.mxu0 %v787
    %1203 = vmatpush1.bf16.msra.mxu0 %v786
    %1204 = vmatprep.subr.bf16.mxu0 0
    %1205 = vmatpush1.bf16.msra.mxu0 0
    %1206 = vmatprep.subr.bf16.mxu0 0
    %1207 = vmatpush1.bf16.msra.mxu0 0
    %1208 = vmatprep.subr.bf16.mxu0 0
    %1209 = vmatpush1.bf16.msra.mxu0 0
    %1210 = vmatprep.subr.bf16.mxu0 0
    %1211 = vmatpush1.bf16.msra.mxu0 0
    %1212 = vmatprep.subr.bf16.mxu0 0
    %1213 = vmatpush1.bf16.msra.mxu0 0
    %1214 = vmatprep.subr.bf16.mxu0 0
    %1215 = vmatpush1.bf16.msra.mxu0 0
    %1216 = vmatprep.subr.bf16.mxu0 0
    %1217 = vmatpush1.bf16.msra.mxu0 0
    %1218 = vmatprep.subr.bf16.mxu0 0
    %1219 = vmatpush1.bf16.msra.mxu0 0
    %1220 = vmatprep.mubr.bf16.mxu0 0
    %1221 = vmatmul.mubr.bf16.gmra.mrb[0].mxu0 %v1146
    %v1222 = vpop.f32.mrb[0].mxu0
    %v1223 = vadd.f32 0.0, %v1222
    %v1224 = vpop.f32.mrb[0].mxu0
    %v1225 = vadd.f32 0.0, %v1224
    %v1226 = vpop.f32.mrb[0].mxu0
    %v1227 = vpop.f32.mrb[0].mxu0
    %1228 = vdwg.mxu0
    %v1229 = vadd.f32 %v1142, %v1182
    %v1230 = vadd.f32 %v1143, %v1184
    %v1231 = vadd.f32 %v1144, %v1223
    %v1232 = vadd.f32 %v1145, %v1225
    %v1233 = vmul.f32 %v1229, 0.5
    %v1234 = vtanh.pop %v1233
    %v1235 = vmul.f32 %v1234, 0.5
    %v1236 = vadd.f32 %v1235, 0.5
    %v1237 = vmul.f32 %v1230, 0.5
    %v1238 = vtanh.pop %v1237
    %v1239 = vmul.f32 %v1238, 0.5
    %v1240 = vadd.f32 %v1239, 0.5
    %v1241 = vtanh.pop %v1231
    %v1242 = vmul.f32 %v1232, 0.5
    %v1243 = vtanh.pop %v1242
    %v1244 = vmul.f32 %v1243, 0.5
    %v1245 = vadd.f32 %v1244, 0.5
    %v1246 = vmul.f32 %v1240, %v1139
    %v1247 = vmul.f32 %v1236, %v1241
    %v1248 = vadd.f32 %v1246, %v1247
    %v1249 = vtanh.pop %v1248
    %v1250 = vmul.f32 %v1245, %v1249
    %v1251 = vld [vmem:[#allocation2 + $0x80] sm:$0xff]
    %v1252 = vld [vmem:[#allocation2 + $0x88] sm:$0xff]
    %v1253 = vld [vmem:[#allocation2 + $0x90] sm:$0xff]
    %v1254 = vld [vmem:[#allocation2 + $0x98] sm:$0xff]
    %v1255 = vpack.c.bf16 %v1250, %v1250
    %1256 = vmatprep.subr.bf16.mxu0 %v757
    %1257 = vmatpush1.bf16.msra.mxu0 %v756
    %1258 = vmatprep.subr.bf16.mxu0 %v761
    %1259 = vmatpush1.bf16.msra.mxu0 %v760
    %1260 = vmatprep.subr.bf16.mxu0 %v765
    %1261 = vmatpush1.bf16.msra.mxu0 %v764
    %1262 = vmatprep.subr.bf16.mxu0 %v769
    %1263 = vmatpush1.bf16.msra.mxu0 %v768
    %1264 = vmatprep.subr.bf16.mxu0 %v773
    %1265 = vmatpush1.bf16.msra.mxu0 %v772
    %1266 = vmatprep.subr.bf16.mxu0 %v777
    %1267 = vmatpush1.bf16.msra.mxu0 %v776
    %1268 = vmatprep.subr.bf16.mxu0 %v781
    %1269 = vmatpush1.bf16.msra.mxu0 %v780
    %1270 = vmatprep.subr.bf16.mxu0 %v785
    %1271 = vmatpush1.bf16.msra.mxu0 %v784
    %1272 = vmatprep.subr.bf16.mxu0 0
    %1273 = vmatpush1.bf16.msra.mxu0 0
    %1274 = vmatprep.subr.bf16.mxu0 0
    %1275 = vmatpush1.bf16.msra.mxu0 0
    %1276 = vmatprep.subr.bf16.mxu0 0
    %1277 = vmatpush1.bf16.msra.mxu0 0
    %1278 = vmatprep.subr.bf16.mxu0 0
    %1279 = vmatpush1.bf16.msra.mxu0 0
    %1280 = vmatprep.subr.bf16.mxu0 0
    %1281 = vmatpush1.bf16.msra.mxu0 0
    %1282 = vmatprep.subr.bf16.mxu0 0
    %1283 = vmatpush1.bf16.msra.mxu0 0
    %1284 = vmatprep.subr.bf16.mxu0 0
    %1285 = vmatpush1.bf16.msra.mxu0 0
    %1286 = vmatprep.subr.bf16.mxu0 0
    %1287 = vmatpush1.bf16.msra.mxu0 0
    %1288 = vmatprep.mubr.bf16.mxu0 0
    %1289 = vmatmul.mubr.bf16.gmra.mrb[0].mxu0 %v1255
    %v1290 = vpop.f32.mrb[0].mxu0
    %v1291 = vadd.f32 0.0, %v1290
    %v1292 = vpop.f32.mrb[0].mxu0
    %v1293 = vadd.f32 0.0, %v1292
    %v1294 = vpop.f32.mrb[0].mxu0
    %v1295 = vpop.f32.mrb[0].mxu0
    %1296 = vdwg.mxu0
    %1297 = vmatprep.subr.bf16.mxu0 %v759
    %1298 = vmatpush1.bf16.msra.mxu0 %v758
    %1299 = vmatprep.subr.bf16.mxu0 %v763
    %1300 = vmatpush1.bf16.msra.mxu0 %v762
    %1301 = vmatprep.subr.bf16.mxu0 %v767
    %1302 = vmatpush1.bf16.msra.mxu0 %v766
    %1303 = vmatprep.subr.bf16.mxu0 %v771
    %1304 = vmatpush1.bf16.msra.mxu0 %v770
    %1305 = vmatprep.subr.bf16.mxu0 %v775
    %1306 = vmatpush1.bf16.msra.mxu0 %v774
    %1307 = vmatprep.subr.bf16.mxu0 %v779
    %1308 = vmatpush1.bf16.msra.mxu0 %v778
    %1309 = vmatprep.subr.bf16.mxu0 %v783
    %1310 = vmatpush1.bf16.msra.mxu0 %v782
    %1311 = vmatprep.subr.bf16.mxu0 %v787
    %1312 = vmatpush1.bf16.msra.mxu0 %v786
    %1313 = vmatprep.subr.bf16.mxu0 0
    %1314 = vmatpush1.bf16.msra.mxu0 0
    %1315 = vmatprep.subr.bf16.mxu0 0
    %1316 = vmatpush1.bf16.msra.mxu0 0
    %1317 = vmatprep.subr.bf16.mxu0 0
    %1318 = vmatpush1.bf16.msra.mxu0 0
    %1319 = vmatprep.subr.bf16.mxu0 0
    %1320 = vmatpush1.bf16.msra.mxu0 0
    %1321 = vmatprep.subr.bf16.mxu0 0
    %1322 = vmatpush1.bf16.msra.mxu0 0
    %1323 = vmatprep.subr.bf16.mxu0 0
    %1324 = vmatpush1.bf16.msra.mxu0 0
    %1325 = vmatprep.subr.bf16.mxu0 0
    %1326 = vmatpush1.bf16.msra.mxu0 0
    %1327 = vmatprep.subr.bf16.mxu0 0
    %1328 = vmatpush1.bf16.msra.mxu0 0
    %1329 = vmatprep.mubr.bf16.mxu0 0
    %1330 = vmatmul.mubr.bf16.gmra.mrb[0].mxu0 %v1255
    %v1331 = vpop.f32.mrb[0].mxu0
    %v1332 = vadd.f32 0.0, %v1331
    %v1333 = vpop.f32.mrb[0].mxu0
    %v1334 = vadd.f32 0.0, %v1333
    %v1335 = vpop.f32.mrb[0].mxu0
    %v1336 = vpop.f32.mrb[0].mxu0
    %1337 = vdwg.mxu0
    %v1338 = vadd.f32 %v1251, %v1291
    %v1339 = vadd.f32 %v1252, %v1293
    %v1340 = vadd.f32 %v1253, %v1332
    %v1341 = vadd.f32 %v1254, %v1334
    %v1342 = vmul.f32 %v1338, 0.5
    %v1343 = vtanh.pop %v1342
    %v1344 = vmul.f32 %v1343, 0.5
    %v1345 = vadd.f32 %v1344, 0.5
    %v1346 = vmul.f32 %v1339, 0.5
    %v1347 = vtanh.pop %v1346
    %v1348 = vmul.f32 %v1347, 0.5
    %v1349 = vadd.f32 %v1348, 0.5
    %v1350 = vtanh.pop %v1340
    %v1351 = vmul.f32 %v1341, 0.5
    %v1352 = vtanh.pop %v1351
    %v1353 = vmul.f32 %v1352, 0.5
    %v1354 = vadd.f32 %v1353, 0.5
    %v1355 = vmul.f32 %v1349, %v1248
    %v1356 = vmul.f32 %v1345, %v1350
    %v1357 = vadd.f32 %v1355, %v1356
    %v1358 = vtanh.pop %v1357
    %v1359 = vmul.f32 %v1354, %v1358
    %v1360 = vld [vmem:[#allocation2 + $0xa0] sm:$0xff]
    %v1361 = vld [vmem:[#allocation2 + $0xa8] sm:$0xff]
    %v1362 = vld [vmem:[#allocation2 + $0xb0] sm:$0xff]
    %v1363 = vld [vmem:[#allocation2 + $0xb8] sm:$0xff]
    %v1364 = vpack.c.bf16 %v1359, %v1359
    %1365 = vmatprep.subr.bf16.mxu0 %v757
    %1366 = vmatpush1.bf16.msra.mxu0 %v756
    %1367 = vmatprep.subr.bf16.mxu0 %v761
    %1368 = vmatpush1.bf16.msra.mxu0 %v760
    %1369 = vmatprep.subr.bf16.mxu0 %v765
    %1370 = vmatpush1.bf16.msra.mxu0 %v764
    %1371 = vmatprep.subr.bf16.mxu0 %v769
    %1372 = vmatpush1.bf16.msra.mxu0 %v768
    %1373 = vmatprep.subr.bf16.mxu0 %v773
    %1374 = vmatpush1.bf16.msra.mxu0 %v772
    %1375 = vmatprep.subr.bf16.mxu0 %v777
    %1376 = vmatpush1.bf16.msra.mxu0 %v776
    %1377 = vmatprep.subr.bf16.mxu0 %v781
    %1378 = vmatpush1.bf16.msra.mxu0 %v780
    %1379 = vmatprep.subr.bf16.mxu0 %v785
    %1380 = vmatpush1.bf16.msra.mxu0 %v784
    %1381 = vmatprep.subr.bf16.mxu0 0
    %1382 = vmatpush1.bf16.msra.mxu0 0
    %1383 = vmatprep.subr.bf16.mxu0 0
    %1384 = vmatpush1.bf16.msra.mxu0 0
    %1385 = vmatprep.subr.bf16.mxu0 0
    %1386 = vmatpush1.bf16.msra.mxu0 0
    %1387 = vmatprep.subr.bf16.mxu0 0
    %1388 = vmatpush1.bf16.msra.mxu0 0
    %1389 = vmatprep.subr.bf16.mxu0 0
    %1390 = vmatpush1.bf16.msra.mxu0 0
    %1391 = vmatprep.subr.bf16.mxu0 0
    %1392 = vmatpush1.bf16.msra.mxu0 0
    %1393 = vmatprep.subr.bf16.mxu0 0
    %1394 = vmatpush1.bf16.msra.mxu0 0
    %1395 = vmatprep.subr.bf16.mxu0 0
    %1396 = vmatpush1.bf16.msra.mxu0 0
    %1397 = vmatprep.mubr.bf16.mxu0 0
    %1398 = vmatmul.mubr.bf16.gmra.mrb[0].mxu0 %v1364
    %v1399 = vpop.f32.mrb[0].mxu0
    %v1400 = vadd.f32 0.0, %v1399
    %v1401 = vpop.f32.mrb[0].mxu0
    %v1402 = vadd.f32 0.0, %v1401
    %v1403 = vpop.f32.mrb[0].mxu0
    %v1404 = vpop.f32.mrb[0].mxu0
    %1405 = vdwg.mxu0
    %1406 = vmatprep.subr.bf16.mxu0 %v759
    %1407 = vmatpush1.bf16.msra.mxu0 %v758
    %1408 = vmatprep.subr.bf16.mxu0 %v763
    %1409 = vmatpush1.bf16.msra.mxu0 %v762
    %1410 = vmatprep.subr.bf16.mxu0 %v767
    %1411 = vmatpush1.bf16.msra.mxu0 %v766
    %1412 = vmatprep.subr.bf16.mxu0 %v771
    %1413 = vmatpush1.bf16.msra.mxu0 %v770
    %1414 = vmatprep.subr.bf16.mxu0 %v775
    %1415 = vmatpush1.bf16.msra.mxu0 %v774
    %1416 = vmatprep.subr.bf16.mxu0 %v779
    %1417 = vmatpush1.bf16.msra.mxu0 %v778
    %1418 = vmatprep.subr.bf16.mxu0 %v783
    %1419 = vmatpush1.bf16.msra.mxu0 %v782
    %1420 = vmatprep.subr.bf16.mxu0 %v787
    %1421 = vmatpush1.bf16.msra.mxu0 %v786
    %1422 = vmatprep.subr.bf16.mxu0 0
    %1423 = vmatpush1.bf16.msra.mxu0 0
    %1424 = vmatprep.subr.bf16.mxu0 0
    %1425 = vmatpush1.bf16.msra.mxu0 0
    %1426 = vmatprep.subr.bf16.mxu0 0
    %1427 = vmatpush1.bf16.msra.mxu0 0
    %1428 = vmatprep.subr.bf16.mxu0 0
    %1429 = vmatpush1.bf16.msra.mxu0 0
    %1430 = vmatprep.subr.bf16.mxu0 0
    %1431 = vmatpush1.bf16.msra.mxu0 0
    %1432 = vmatprep.subr.bf16.mxu0 0
    %1433 = vmatpush1.bf16.msra.mxu0 0
    %1434 = vmatprep.subr.bf16.mxu0 0
    %1435 = vmatpush1.bf16.msra.mxu0 0
    %1436 = vmatprep.subr.bf16.mxu0 0
    %1437 = vmatpush1.bf16.msra.mxu0 0
    %1438 = vmatprep.mubr.bf16.mxu0 0
    %1439 = vmatmul.mubr.bf16.gmra.mrb[0].mxu0 %v1364
    %v1440 = vpop.f32.mrb[0].mxu0
    %v1441 = vadd.f32 0.0, %v1440
    %v1442 = vpop.f32.mrb[0].mxu0
    %v1443 = vadd.f32 0.0, %v1442
    %v1444 = vpop.f32.mrb[0].mxu0
    %v1445 = vpop.f32.mrb[0].mxu0
    %1446 = vdwg.mxu0
    %v1447 = vadd.f32 %v1360, %v1400
    %v1448 = vadd.f32 %v1361, %v1402
    %v1449 = vadd.f32 %v1362, %v1441
    %v1450 = vadd.f32 %v1363, %v1443
    %v1451 = vmul.f32 %v1447, 0.5
    %v1452 = vtanh.pop %v1451
    %v1453 = vmul.f32 %v1452, 0.5
    %v1454 = vadd.f32 %v1453, 0.5
    %v1455 = vmul.f32 %v1448, 0.5
    %v1456 = vtanh.pop %v1455
    %v1457 = vmul.f32 %v1456, 0.5
    %v1458 = vadd.f32 %v1457, 0.5
    %v1459 = vtanh.pop %v1449
    %v1460 = vmul.f32 %v1450, 0.5
    %v1461 = vtanh.pop %v1460
    %v1462 = vmul.f32 %v1461, 0.5
    %v1463 = vadd.f32 %v1462, 0.5
    %v1464 = vmul.f32 %v1458, %v1357
    %v1465 = vmul.f32 %v1454, %v1459
    %v1466 = vadd.f32 %v1464, %v1465
    %v1467 = vtanh.pop %v1466
    %v1468 = vmul.f32 %v1463, %v1467
    %v1469 = vld [vmem:[#allocation2 + $0xc0] sm:$0xff]
    %v1470 = vld [vmem:[#allocation2 + $0xc8] sm:$0xff]
    %v1471 = vld [vmem:[#allocation2 + $0xd0] sm:$0xff]
    %v1472 = vld [vmem:[#allocation2 + $0xd8] sm:$0xff]
    %v1473 = vpack.c.bf16 %v1468, %v1468
    %1474 = vmatprep.subr.bf16.mxu0 %v757
    %1475 = vmatpush1.bf16.msra.mxu0 %v756
    %1476 = vmatprep.subr.bf16.mxu0 %v761
    %1477 = vmatpush1.bf16.msra.mxu0 %v760
    %1478 = vmatprep.subr.bf16.mxu0 %v765
    %1479 = vmatpush1.bf16.msra.mxu0 %v764
    %1480 = vmatprep.subr.bf16.mxu0 %v769
    %1481 = vmatpush1.bf16.msra.mxu0 %v768
    %1482 = vmatprep.subr.bf16.mxu0 %v773
    %1483 = vmatpush1.bf16.msra.mxu0 %v772
    %1484 = vmatprep.subr.bf16.mxu0 %v777
    %1485 = vmatpush1.bf16.msra.mxu0 %v776
    %1486 = vmatprep.subr.bf16.mxu0 %v781
    %1487 = vmatpush1.bf16.msra.mxu0 %v780
    %1488 = vmatprep.subr.bf16.mxu0 %v785
    %1489 = vmatpush1.bf16.msra.mxu0 %v784
    %1490 = vmatprep.subr.bf16.mxu0 0
    %1491 = vmatpush1.bf16.msra.mxu0 0
    %1492 = vmatprep.subr.bf16.mxu0 0
    %1493 = vmatpush1.bf16.msra.mxu0 0
    %1494 = vmatprep.subr.bf16.mxu0 0
    %1495 = vmatpush1.bf16.msra.mxu0 0
    %1496 = vmatprep.subr.bf16.mxu0 0
    %1497 = vmatpush1.bf16.msra.mxu0 0
    %1498 = vmatprep.subr.bf16.mxu0 0
    %1499 = vmatpush1.bf16.msra.mxu0 0
    %1500 = vmatprep.subr.bf16.mxu0 0
    %1501 = vmatpush1.bf16.msra.mxu0 0
    %1502 = vmatprep.subr.bf16.mxu0 0
    %1503 = vmatpush1.bf16.msra.mxu0 0
    %1504 = vmatprep.subr.bf16.mxu0 0
    %1505 = vmatpush1.bf16.msra.mxu0 0
    %1506 = vmatprep.mubr.bf16.mxu0 0
    %1507 = vmatmul.mubr.bf16.gmra.mrb[0].mxu0 %v1473
    %v1508 = vpop.f32.mrb[0].mxu0
    %v1509 = vadd.f32 0.0, %v1508
    %v1510 = vpop.f32.mrb[0].mxu0
    %v1511 = vadd.f32 0.0, %v1510
    %v1512 = vpop.f32.mrb[0].mxu0
    %v1513 = vpop.f32.mrb[0].mxu0
    %1514 = vdwg.mxu0
    %1515 = vmatprep.subr.bf16.mxu0 %v759
    %1516 = vmatpush1.bf16.msra.mxu0 %v758
    %1517 = vmatprep.subr.bf16.mxu0 %v763
    %1518 = vmatpush1.bf16.msra.mxu0 %v762
    %1519 = vmatprep.subr.bf16.mxu0 %v767
    %1520 = vmatpush1.bf16.msra.mxu0 %v766
    %1521 = vmatprep.subr.bf16.mxu0 %v771
    %1522 = vmatpush1.bf16.msra.mxu0 %v770
    %1523 = vmatprep.subr.bf16.mxu0 %v775
    %1524 = vmatpush1.bf16.msra.mxu0 %v774
    %1525 = vmatprep.subr.bf16.mxu0 %v779
    %1526 = vmatpush1.bf16.msra.mxu0 %v778
    %1527 = vmatprep.subr.bf16.mxu0 %v783
    %1528 = vmatpush1.bf16.msra.mxu0 %v782
    %1529 = vmatprep.subr.bf16.mxu0 %v787
    %1530 = vmatpush1.bf16.msra.mxu0 %v786
    %1531 = vmatprep.subr.bf16.mxu0 0
    %1532 = vmatpush1.bf16.msra.mxu0 0
    %1533 = vmatprep.subr.bf16.mxu0 0
    %1534 = vmatpush1.bf16.msra.mxu0 0
    %1535 = vmatprep.subr.bf16.mxu0 0
    %1536 = vmatpush1.bf16.msra.mxu0 0
    %1537 = vmatprep.subr.bf16.mxu0 0
    %1538 = vmatpush1.bf16.msra.mxu0 0
    %1539 = vmatprep.subr.bf16.mxu0 0
    %1540 = vmatpush1.bf16.msra.mxu0 0
    %1541 = vmatprep.subr.bf16.mxu0 0
    %1542 = vmatpush1.bf16.msra.mxu0 0
    %1543 = vmatprep.subr.bf16.mxu0 0
    %1544 = vmatpush1.bf16.msra.mxu0 0
    %1545 = vmatprep.subr.bf16.mxu0 0
    %1546 = vmatpush1.bf16.msra.mxu0 0
    %1547 = vmatprep.mubr.bf16.mxu0 0
    %1548 = vmatmul.mubr.bf16.gmra.mrb[0].mxu0 %v1473
    %v1549 = vpop.f32.mrb[0].mxu0
    %v1550 = vadd.f32 0.0, %v1549
    %v1551 = vpop.f32.mrb[0].mxu0
    %v1552 = vadd.f32 0.0, %v1551
    %v1553 = vpop.f32.mrb[0].mxu0
    %v1554 = vpop.f32.mrb[0].mxu0
    %1555 = vdwg.mxu0
    %v1556 = vadd.f32 %v1469, %v1509
    %v1557 = vadd.f32 %v1470, %v1511
    %v1558 = vadd.f32 %v1471, %v1550
    %v1559 = vadd.f32 %v1472, %v1552
    %v1560 = vmul.f32 %v1556, 0.5
    %v1561 = vtanh.pop %v1560
    %v1562 = vmul.f32 %v1561, 0.5
    %v1563 = vadd.f32 %v1562, 0.5
    %v1564 = vmul.f32 %v1557, 0.5
    %v1565 = vtanh.pop %v1564
    %v1566 = vmul.f32 %v1565, 0.5
    %v1567 = vadd.f32 %v1566, 0.5
    %v1568 = vtanh.pop %v1558
    %v1569 = vmul.f32 %v1559, 0.5
    %v1570 = vtanh.pop %v1569
    %v1571 = vmul.f32 %v1570, 0.5
    %v1572 = vadd.f32 %v1571, 0.5
    %v1573 = vmul.f32 %v1567, %v1466
    %v1574 = vmul.f32 %v1563, %v1568
    %v1575 = vadd.f32 %v1573, %v1574
    %v1576 = vtanh.pop %v1575
    %v1577 = vmul.f32 %v1572, %v1576
    %v1578 = vld [vmem:[#allocation2 + $0xe0] sm:$0xff]
    %v1579 = vld [vmem:[#allocation2 + $0xe8] sm:$0xff]
    %v1580 = vld [vmem:[#allocation2 + $0xf0] sm:$0xff]
    %v1581 = vld [vmem:[#allocation2 + $0xf8] sm:$0xff]
    %v1582 = vpack.c.bf16 %v1577, %v1577
    %1583 = vmatprep.subr.bf16.mxu0 %v757
    %1584 = vmatpush1.bf16.msra.mxu0 %v756
    %1585 = vmatprep.subr.bf16.mxu0 %v761
    %1586 = vmatpush1.bf16.msra.mxu0 %v760
    %1587 = vmatprep.subr.bf16.mxu0 %v765
    %1588 = vmatpush1.bf16.msra.mxu0 %v764
    %1589 = vmatprep.subr.bf16.mxu0 %v769
    %1590 = vmatpush1.bf16.msra.mxu0 %v768
    %1591 = vmatprep.subr.bf16.mxu0 %v773
    %1592 = vmatpush1.bf16.msra.mxu0 %v772
    %1593 = vmatprep.subr.bf16.mxu0 %v777
    %1594 = vmatpush1.bf16.msra.mxu0 %v776
    %1595 = vmatprep.subr.bf16.mxu0 %v781
    %1596 = vmatpush1.bf16.msra.mxu0 %v780
    %1597 = vmatprep.subr.bf16.mxu0 %v785
    %1598 = vmatpush1.bf16.msra.mxu0 %v784
    %1599 = vmatprep.subr.bf16.mxu0 0
    %1600 = vmatpush1.bf16.msra.mxu0 0
    %1601 = vmatprep.subr.bf16.mxu0 0
    %1602 = vmatpush1.bf16.msra.mxu0 0
    %1603 = vmatprep.subr.bf16.mxu0 0
    %1604 = vmatpush1.bf16.msra.mxu0 0
    %1605 = vmatprep.subr.bf16.mxu0 0
    %1606 = vmatpush1.bf16.msra.mxu0 0
    %1607 = vmatprep.subr.bf16.mxu0 0
    %1608 = vmatpush1.bf16.msra.mxu0 0
    %1609 = vmatprep.subr.bf16.mxu0 0
    %1610 = vmatpush1.bf16.msra.mxu0 0
    %1611 = vmatprep.subr.bf16.mxu0 0
    %1612 = vmatpush1.bf16.msra.mxu0 0
    %1613 = vmatprep.subr.bf16.mxu0 0
    %1614 = vmatpush1.bf16.msra.mxu0 0
    %1615 = vmatprep.mubr.bf16.mxu0 0
    %1616 = vmatmul.mubr.bf16.gmra.mrb[0].mxu0 %v1582
    %v1617 = vpop.f32.mrb[0].mxu0
    %v1618 = vadd.f32 0.0, %v1617
    %v1619 = vpop.f32.mrb[0].mxu0
    %v1620 = vadd.f32 0.0, %v1619
    %v1621 = vpop.f32.mrb[0].mxu0
    %v1622 = vpop.f32.mrb[0].mxu0
    %1623 = vdwg.mxu0
    %1624 = vmatprep.subr.bf16.mxu0 %v759
    %1625 = vmatpush1.bf16.msra.mxu0 %v758
    %1626 = vmatprep.subr.bf16.mxu0 %v763
    %1627 = vmatpush1.bf16.msra.mxu0 %v762
    %1628 = vmatprep.subr.bf16.mxu0 %v767
    %1629 = vmatpush1.bf16.msra.mxu0 %v766
    %1630 = vmatprep.subr.bf16.mxu0 %v771
    %1631 = vmatpush1.bf16.msra.mxu0 %v770
    %1632 = vmatprep.subr.bf16.mxu0 %v775
    %1633 = vmatpush1.bf16.msra.mxu0 %v774
    %1634 = vmatprep.subr.bf16.mxu0 %v779
    %1635 = vmatpush1.bf16.msra.mxu0 %v778
    %1636 = vmatprep.subr.bf16.mxu0 %v783
    %1637 = vmatpush1.bf16.msra.mxu0 %v782
    %1638 = vmatprep.subr.bf16.mxu0 %v787
    %1639 = vmatpush1.bf16.msra.mxu0 %v786
    %1640 = vmatprep.subr.bf16.mxu0 0
    %1641 = vmatpush1.bf16.msra.mxu0 0
    %1642 = vmatprep.subr.bf16.mxu0 0
    %1643 = vmatpush1.bf16.msra.mxu0 0
    %1644 = vmatprep.subr.bf16.mxu0 0
    %1645 = vmatpush1.bf16.msra.mxu0 0
    %1646 = vmatprep.subr.bf16.mxu0 0
    %1647 = vmatpush1.bf16.msra.mxu0 0
    %1648 = vmatprep.subr.bf16.mxu0 0
    %1649 = vmatpush1.bf16.msra.mxu0 0
    %1650 = vmatprep.subr.bf16.mxu0 0
    %1651 = vmatpush1.bf16.msra.mxu0 0
    %1652 = vmatprep.subr.bf16.mxu0 0
    %1653 = vmatpush1.bf16.msra.mxu0 0
    %1654 = vmatprep.subr.bf16.mxu0 0
    %1655 = vmatpush1.bf16.msra.mxu0 0
    %1656 = vmatprep.mubr.bf16.mxu0 0
    %1657 = vmatmul.mubr.bf16.gmra.mrb[0].mxu0 %v1582
    %v1658 = vpop.f32.mrb[0].mxu0
    %v1659 = vadd.f32 0.0, %v1658
    %v1660 = vpop.f32.mrb[0].mxu0
    %v1661 = vadd.f32 0.0, %v1660
    %v1662 = vpop.f32.mrb[0].mxu0
    %v1663 = vpop.f32.mrb[0].mxu0
    %1664 = vdwg.mxu0
    %v1665 = vadd.f32 %v1578, %v1618
    %v1666 = vadd.f32 %v1579, %v1620
    %v1667 = vadd.f32 %v1580, %v1659
    %v1668 = vadd.f32 %v1581, %v1661
    %v1669 = vmul.f32 %v1665, 0.5
    %v1670 = vtanh.pop %v1669
    %v1671 = vmul.f32 %v1670, 0.5
    %v1672 = vadd.f32 %v1671, 0.5
    %v1673 = vmul.f32 %v1666, 0.5
    %v1674 = vtanh.pop %v1673
    %v1675 = vmul.f32 %v1674, 0.5
    %v1676 = vadd.f32 %v1675, 0.5
    %v1677 = vtanh.pop %v1667
    %v1678 = vmul.f32 %v1668, 0.5
    %v1679 = vtanh.pop %v1678
    %v1680 = vmul.f32 %v1679, 0.5
    %v1681 = vadd.f32 %v1680, 0.5
    %v1682 = vmul.f32 %v1676, %v1575
    %v1683 = vmul.f32 %v1672, %v1677
    %v1684 = vadd.f32 %v1682, %v1683
    %v1685 = vtanh.pop %v1684
    %v1686 = vmul.f32 %v1681, %v1685
    %v1687 = vpack.c.bf16 %v1686, %v1686
    %v1688 = vld [vmem:[%s4] sm:$0xf]
    %v1689 = vld [vmem:[%s4 + $0x4] sm:$0xf]
    %v1690 = vld [vmem:[%s4 + $0x8] sm:$0xf]
    %v1691 = vld [vmem:[%s4 + $0xc] sm:$0xf]
    %v1692 = vld [vmem:[%s4 + $0x10] sm:$0xf]
    %v1693 = vld [vmem:[%s4 + $0x14] sm:$0xf]
    %v1694 = vld [vmem:[%s4 + $0x18] sm:$0xf]
    %v1695 = vld [vmem:[%s4 + $0x1c] sm:$0xf]
    %v1696 = vld [vmem:[%s4 + $0x20] sm:$0xf]
    %v1697 = vld [vmem:[%s4 + $0x24] sm:$0xf]
    %v1698 = vld [vmem:[%s4 + $0x28] sm:$0xf]
    %v1699 = vld [vmem:[%s4 + $0x2c] sm:$0xf]
    %v1700 = vld [vmem:[%s4 + $0x30] sm:$0xf]
    %v1701 = vld [vmem:[%s4 + $0x34] sm:$0xf]
    %v1702 = vld [vmem:[%s4 + $0x38] sm:$0xf]
    %v1703 = vld [vmem:[%s4 + $0x3c] sm:$0xf]
    %v1704 = vld [vmem:[%s5] sm:$0x1]
    %v1706 = vlaneseq
    %v1707 = vshrl.u32 %v1706, 7
    %v1708 = vsub.s32 0, %v1707
    %v1709 = vrot.slane %v1704, %v1708
    %v1727 = vunpack.c.l.b16 %v1688
    %v1728 = vunpack.c.l.b16 %v1689
    %v1729 = vunpack.c.l.b16 %v1690
    %v1730 = vunpack.c.l.b16 %v1691
    %v1731 = vunpack.c.l.b16 %v1692
    %v1732 = vunpack.c.l.b16 %v1693
    %v1733 = vunpack.c.l.b16 %v1694
    %v1734 = vunpack.c.l.b16 %v1695
    %v1735 = vunpack.c.l.b16 %v1696
    %v1736 = vunpack.c.l.b16 %v1697
    %v1737 = vunpack.c.l.b16 %v1698
    %v1738 = vunpack.c.l.b16 %v1699
    %v1739 = vunpack.c.l.b16 %v1700
    %v1740 = vunpack.c.l.b16 %v1701
    %v1741 = vunpack.c.l.b16 %v1702
    %v1742 = vunpack.c.l.b16 %v1703
    %v1743 = vpack.c.b16 %v1728, %v1727
    %v1744 = vpack.c.b16 %v1730, %v1729
    %v1745 = vpack.c.b16 %v1732, %v1731
    %v1746 = vpack.c.b16 %v1734, %v1733
    %v1747 = vpack.c.b16 %v1736, %v1735
    %v1748 = vpack.c.b16 %v1738, %v1737
    %v1749 = vpack.c.b16 %v1740, %v1739
    %v1750 = vpack.c.b16 %v1742, %v1741
    %1759 = vmatprep.subr.bf16.mxu0 0
    %1760 = vmatpush1.bf16.msra.mxu0 %v1743
    %1761 = vmatprep.subr.bf16.mxu0 0
    %1762 = vmatpush1.bf16.msra.mxu0 %v1744
    %1763 = vmatprep.subr.bf16.mxu0 0
    %1764 = vmatpush1.bf16.msra.mxu0 %v1745
    %1765 = vmatprep.subr.bf16.mxu0 0
    %1766 = vmatpush1.bf16.msra.mxu0 %v1746
    %1767 = vmatprep.subr.bf16.mxu0 0
    %1768 = vmatpush1.bf16.msra.mxu0 %v1747
    %1769 = vmatprep.subr.bf16.mxu0 0
    %1770 = vmatpush1.bf16.msra.mxu0 %v1748
    %1771 = vmatprep.subr.bf16.mxu0 0
    %1772 = vmatpush1.bf16.msra.mxu0 %v1749
    %1773 = vmatprep.subr.bf16.mxu0 0
    %1774 = vmatpush1.bf16.msra.mxu0 %v1750
    %1775 = vmatprep.subr.bf16.mxu0 0
    %1776 = vmatpush1.bf16.msra.mxu0 0
    %1777 = vmatprep.subr.bf16.mxu0 0
    %1778 = vmatpush1.bf16.msra.mxu0 0
    %1779 = vmatprep.subr.bf16.mxu0 0
    %1780 = vmatpush1.bf16.msra.mxu0 0
    %1781 = vmatprep.subr.bf16.mxu0 0
    %1782 = vmatpush1.bf16.msra.mxu0 0
    %1783 = vmatprep.subr.bf16.mxu0 0
    %1784 = vmatpush1.bf16.msra.mxu0 0
    %1785 = vmatprep.subr.bf16.mxu0 0
    %1786 = vmatpush1.bf16.msra.mxu0 0
    %1787 = vmatprep.subr.bf16.mxu0 0
    %1788 = vmatpush1.bf16.msra.mxu0 0
    %1789 = vmatprep.subr.bf16.mxu0 0
    %1790 = vmatpush1.bf16.msra.mxu0 0
    %1791 = vmatprep.mubr.bf16.mxu0 0
    %1792 = vmatmul.mubr.bf16.gmra.mrb[0].mxu0 %v1687
    %v1793 = vpop.f32.mrb[0].mxu0
    %v1794 = vadd.f32 %v1709, %v1793
    %v1795 = vpop.f32.mrb[0].mxu0
    %v1796 = vpop.f32.mrb[0].mxu0
    %v1797 = vpop.f32.mrb[0].mxu0
    %1798 = vdwg.mxu0
    %v1799 = vld [vmem:[%s6] sm:$0xf]
    %v1800 = vld [vmem:[%s6 + $0x4] sm:$0xf]
    %v1801 = vld [vmem:[%s6 + $0x8] sm:$0xf]
    %v1802 = vld [vmem:[%s6 + $0xc] sm:$0xf]
    %v1803 = vld [vmem:[%s6 + $0x10] sm:$0xf]
    %v1804 = vld [vmem:[%s6 + $0x14] sm:$0xf]
    %v1805 = vld [vmem:[%s6 + $0x18] sm:$0xf]
    %v1806 = vld [vmem:[%s6 + $0x1c] sm:$0xf]
    %v1807 = vld [vmem:[%s6 + $0x20] sm:$0xf]
    %v1808 = vld [vmem:[%s6 + $0x24] sm:$0xf]
    %v1809 = vld [vmem:[%s6 + $0x28] sm:$0xf]
    %v1810 = vld [vmem:[%s6 + $0x2c] sm:$0xf]
    %v1811 = vld [vmem:[%s6 + $0x30] sm:$0xf]
    %v1812 = vld [vmem:[%s6 + $0x34] sm:$0xf]
    %v1813 = vld [vmem:[%s6 + $0x38] sm:$0xf]
    %v1814 = vld [vmem:[%s6 + $0x3c] sm:$0xf]
    %v1815 = vld [vmem:[#allocation8] sm:$0x1]
    %v1817 = vlaneseq
    %v1818 = vshrl.u32 %v1817, 7
    %v1819 = vsub.s32 0, %v1818
    %v1820 = vrot.slane %v1815, %v1819
    %v1838 = vunpack.c.l.b16 %v1799
    %v1839 = vunpack.c.l.b16 %v1800
    %v1840 = vunpack.c.l.b16 %v1801
    %v1841 = vunpack.c.l.b16 %v1802
    %v1842 = vunpack.c.l.b16 %v1803
    %v1843 = vunpack.c.l.b16 %v1804
    %v1844 = vunpack.c.l.b16 %v1805
    %v1845 = vunpack.c.l.b16 %v1806
    %v1846 = vunpack.c.l.b16 %v1807
    %v1847 = vunpack.c.l.b16 %v1808
    %v1848 = vunpack.c.l.b16 %v1809
    %v1849 = vunpack.c.l.b16 %v1810
    %v1850 = vunpack.c.l.b16 %v1811
    %v1851 = vunpack.c.l.b16 %v1812
    %v1852 = vunpack.c.l.b16 %v1813
    %v1853 = vunpack.c.l.b16 %v1814
    %v1854 = vpack.c.b16 %v1839, %v1838
    %v1855 = vpack.c.b16 %v1841, %v1840
    %v1856 = vpack.c.b16 %v1843, %v1842
    %v1857 = vpack.c.b16 %v1845, %v1844
    %v1858 = vpack.c.b16 %v1847, %v1846
    %v1859 = vpack.c.b16 %v1849, %v1848
    %v1860 = vpack.c.b16 %v1851, %v1850
    %v1861 = vpack.c.b16 %v1853, %v1852
    %1870 = vmatprep.subr.bf16.mxu0 0
    %1871 = vmatpush1.bf16.msra.mxu0 %v1854
    %1872 = vmatprep.subr.bf16.mxu0 0
    %1873 = vmatpush1.bf16.msra.mxu0 %v1855
    %1874 = vmatprep.subr.bf16.mxu0 0
    %1875 = vmatpush1.bf16.msra.mxu0 %v1856
    %1876 = vmatprep.subr.bf16.mxu0 0
    %1877 = vmatpush1.bf16.msra.mxu0 %v1857
    %1878 = vmatprep.subr.bf16.mxu0 0
    %1879 = vmatpush1.bf16.msra.mxu0 %v1858
    %1880 = vmatprep.subr.bf16.mxu0 0
    %1881 = vmatpush1.bf16.msra.mxu0 %v1859
    %1882 = vmatprep.subr.bf16.mxu0 0
    %1883 = vmatpush1.bf16.msra.mxu0 %v1860
    %1884 = vmatprep.subr.bf16.mxu0 0
    %1885 = vmatpush1.bf16.msra.mxu0 %v1861
    %1886 = vmatprep.subr.bf16.mxu0 0
    %1887 = vmatpush1.bf16.msra.mxu0 0
    %1888 = vmatprep.subr.bf16.mxu0 0
    %1889 = vmatpush1.bf16.msra.mxu0 0
    %1890 = vmatprep.subr.bf16.mxu0 0
    %1891 = vmatpush1.bf16.msra.mxu0 0
    %1892 = vmatprep.subr.bf16.mxu0 0
    %1893 = vmatpush1.bf16.msra.mxu0 0
    %1894 = vmatprep.subr.bf16.mxu0 0
    %1895 = vmatpush1.bf16.msra.mxu0 0
    %1896 = vmatprep.subr.bf16.mxu0 0
    %1897 = vmatpush1.bf16.msra.mxu0 0
    %1898 = vmatprep.subr.bf16.mxu0 0
    %1899 = vmatpush1.bf16.msra.mxu0 0
    %1900 = vmatprep.subr.bf16.mxu0 0
    %1901 = vmatpush1.bf16.msra.mxu0 0
    %1902 = vmatprep.mubr.bf16.mxu0 0
    %1903 = vmatmul.mubr.bf16.gmra.mrb[0].mxu0 %v1687
    %v1904 = vpop.f32.mrb[0].mxu0
    %v1905 = vadd.f32 %v1820, %v1904
    %v1906 = vpop.f32.mrb[0].mxu0
    %v1907 = vpop.f32.mrb[0].mxu0
    %v1908 = vpop.f32.mrb[0].mxu0
    %1909 = vdwg.mxu0
    %vm1910 = vcmask 261120
    %1911 = vst.msk [vmem:[#allocation18] sm:$0xff] %vm1910, %v1794
    %1912 = vst.msk [vmem:[#allocation19] sm:$0xff] %vm1910, %v1905
    %v1913 = vld [vmem:[%s8] sm:$0xff]
    %v1914 = vmul.f32 %v1905, 0.5
    %v1915 = vmul.f32 %v1914, 1.442695
    %v1916 = vpow.pop %v1915
    %v1917 = vmul.f32 %v1913, %v1916
    %v1918 = vadd.f32 %v1794, %v1917
    %v1919 = vld [vmem:[#allocation11] sm:$0xff]
    %v1920 = vld [vmem:[#allocation11 + $0x8] sm:$0xff]
    %v1921 = vld [vmem:[#allocation11 + $0x10] sm:$0xff]
    %v1922 = vld [vmem:[#allocation11 + $0x18] sm:$0xff]
    %v1923 = vld [vmem:[#allocation11 + $0x20] sm:$0xff]
    %v1924 = vld [vmem:[#allocation11 + $0x28] sm:$0xff]
    %v1925 = vld [vmem:[#allocation11 + $0x30] sm:$0xff]
    %v1926 = vld [vmem:[#allocation11 + $0x38] sm:$0xff]
    %v1927 = vld [vmem:[#allocation11 + $0x40] sm:$0xff]
    %v1928 = vld [vmem:[#allocation11 + $0x48] sm:$0xff]
    %v1929 = vld [vmem:[#allocation11 + $0x50] sm:$0xff]
    %v1930 = vld [vmem:[#allocation11 + $0x58] sm:$0xff]
    %v1931 = vld [vmem:[#allocation11 + $0x60] sm:$0xff]
    %v1932 = vld [vmem:[#allocation11 + $0x68] sm:$0xff]
    %v1933 = vld [vmem:[#allocation11 + $0x70] sm:$0xff]
    %v1934 = vld [vmem:[#allocation11 + $0x78] sm:$0xff]
    %v1935 = vld [vmem:[#allocation11 + $0x80] sm:$0xff]
    %v1936 = vld [vmem:[#allocation11 + $0x88] sm:$0xff]
    %v1937 = vld [vmem:[#allocation11 + $0x90] sm:$0xff]
    %v1938 = vld [vmem:[#allocation11 + $0x98] sm:$0xff]
    %v1939 = vld [vmem:[#allocation11 + $0xa0] sm:$0xff]
    %v1940 = vld [vmem:[#allocation11 + $0xa8] sm:$0xff]
    %v1941 = vld [vmem:[#allocation11 + $0xb0] sm:$0xff]
    %v1942 = vld [vmem:[#allocation11 + $0xb8] sm:$0xff]
    %v1943 = vld [vmem:[#allocation11 + $0xc0] sm:$0xff]
    %v1944 = vld [vmem:[#allocation11 + $0xc8] sm:$0xff]
    %v1945 = vld [vmem:[#allocation11 + $0xd0] sm:$0xff]
    %v1946 = vld [vmem:[#allocation11 + $0xd8] sm:$0xff]
    %v1947 = vld [vmem:[#allocation11 + $0xe0] sm:$0xff]
    %v1948 = vld [vmem:[#allocation11 + $0xe8] sm:$0xff]
    %v1949 = vld [vmem:[#allocation11 + $0xf0] sm:$0xff]
    %v1950 = vld [vmem:[#allocation11 + $0xf8] sm:$0xff]
    %v1951 = vld [vmem:[#allocation12] sm:$0xff]
    %v1952 = vld [vmem:[#allocation12 + $0x8] sm:$0xff]
    %v1953 = vld [vmem:[#allocation12 + $0x10] sm:$0xff]
    %v1954 = vld [vmem:[#allocation12 + $0x18] sm:$0xff]
    %v1955 = vld [vmem:[#allocation12 + $0x20] sm:$0xff]
    %v1956 = vld [vmem:[#allocation12 + $0x28] sm:$0xff]
    %v1957 = vld [vmem:[#allocation12 + $0x30] sm:$0xff]
    %v1958 = vld [vmem:[#allocation12 + $0x38] sm:$0xff]
    %v1959 = vld [vmem:[#allocation12 + $0x40] sm:$0xff]
    %v1960 = vld [vmem:[#allocation12 + $0x48] sm:$0xff]
    %v1961 = vld [vmem:[#allocation12 + $0x50] sm:$0xff]
    %v1962 = vld [vmem:[#allocation12 + $0x58] sm:$0xff]
    %v1963 = vld [vmem:[#allocation12 + $0x60] sm:$0xff]
    %v1964 = vld [vmem:[#allocation12 + $0x68] sm:$0xff]
    %v1965 = vld [vmem:[#allocation12 + $0x70] sm:$0xff]
    %v1966 = vld [vmem:[#allocation12 + $0x78] sm:$0xff]
    %v1967 = vld [vmem:[#allocation12 + $0x80] sm:$0xff]
    %v1968 = vld [vmem:[#allocation12 + $0x88] sm:$0xff]
    %v1969 = vld [vmem:[#allocation12 + $0x90] sm:$0xff]
    %v1970 = vld [vmem:[#allocation12 + $0x98] sm:$0xff]
    %v1971 = vld [vmem:[#allocation12 + $0xa0] sm:$0xff]
    %v1972 = vld [vmem:[#allocation12 + $0xa8] sm:$0xff]
    %v1973 = vld [vmem:[#allocation12 + $0xb0] sm:$0xff]
    %v1974 = vld [vmem:[#allocation12 + $0xb8] sm:$0xff]
    %v1975 = vld [vmem:[#allocation12 + $0xc0] sm:$0xff]
    %v1976 = vld [vmem:[#allocation12 + $0xc8] sm:$0xff]
    %v1977 = vld [vmem:[#allocation12 + $0xd0] sm:$0xff]
    %v1978 = vld [vmem:[#allocation12 + $0xd8] sm:$0xff]
    %v1979 = vld [vmem:[#allocation12 + $0xe0] sm:$0xff]
    %v1980 = vld [vmem:[#allocation12 + $0xe8] sm:$0xff]
    %v1981 = vld [vmem:[#allocation12 + $0xf0] sm:$0xff]
    %v1982 = vld [vmem:[#allocation12 + $0xf8] sm:$0xff]
    %v1983 = vld [vmem:[#allocation14] sm:$0xf]
    %v1985 = vlaneseq
    %v1986 = vshrl.u32 %v1985, 7
    %v1987 = vsub.s32 0, %v1986
    %v1988 = vrot.slane %v1983, %v1987
    %v1989 = vlaneseq
    %v1990 = vshrl.u32 %v1989, 7
    %v1991 = vsub.s32 1, %v1990
    %v1992 = vrot.slane %v1983, %v1991
    %v1993 = vlaneseq
    %v1994 = vshrl.u32 %v1993, 7
    %v1995 = vsub.s32 2, %v1994
    %v1996 = vrot.slane %v1983, %v1995
    %v1997 = vlaneseq
    %v1998 = vshrl.u32 %v1997, 7
    %v1999 = vsub.s32 3, %v1998
    %v2000 = vrot.slane %v1983, %v1999
    %v2005 = vld [vmem:[#allocation15] sm:$0xf]
    %v2006 = vld [vmem:[#allocation15 + $0x4] sm:$0xf]
    %v2007 = vld [vmem:[#allocation15 + $0x8] sm:$0xf]
    %v2008 = vld [vmem:[#allocation15 + $0xc] sm:$0xf]
    %v2009 = vld [vmem:[#allocation15 + $0x10] sm:$0xf]
    %v2010 = vld [vmem:[#allocation15 + $0x14] sm:$0xf]
    %v2011 = vld [vmem:[#allocation15 + $0x18] sm:$0xf]
    %v2012 = vld [vmem:[#allocation15 + $0x1c] sm:$0xf]
    %v2013 = vld [vmem:[#allocation15 + $0x20] sm:$0xf]
    %v2014 = vld [vmem:[#allocation15 + $0x24] sm:$0xf]
    %v2015 = vld [vmem:[#allocation15 + $0x28] sm:$0xf]
    %v2016 = vld [vmem:[#allocation15 + $0x2c] sm:$0xf]
    %v2017 = vld [vmem:[#allocation15 + $0x30] sm:$0xf]
    %v2018 = vld [vmem:[#allocation15 + $0x34] sm:$0xf]
    %v2019 = vld [vmem:[#allocation15 + $0x38] sm:$0xf]
    %v2020 = vld [vmem:[#allocation15 + $0x3c] sm:$0xf]
    %v2021 = vld [vmem:[#allocation17] sm:$0x1]
    %v2023 = vlaneseq
    %v2024 = vshrl.u32 %v2023, 7
    %v2025 = vsub.s32 0, %v2024
    %v2026 = vrot.slane %v2021, %v2025
    %v2028 = vpack.c.bf16 %v1918, %v1918
    %v2029 = vld [vmem:[#allocation9] sm:$0xff]
    %v2030 = vld [vmem:[#allocation9 + $0x8] sm:$0xff]
    %v2031 = vld [vmem:[#allocation9 + $0x10] sm:$0xff]
    %v2032 = vld [vmem:[#allocation9 + $0x18] sm:$0xff]
    %v2033 = vld [vmem:[#allocation9 + $0x20] sm:$0xff]
    %v2034 = vld [vmem:[#allocation9 + $0x28] sm:$0xff]
    %v2035 = vld [vmem:[#allocation9 + $0x30] sm:$0xff]
    %v2036 = vld [vmem:[#allocation9 + $0x38] sm:$0xff]
    %v2069 = vunpack.c.l.b16 %v1951
    %v2070 = vunpack.c.h.b16 %v1951
    %v2071 = vunpack.c.l.b16 %v1952
    %v2072 = vunpack.c.h.b16 %v1952
    %v2073 = vunpack.c.l.b16 %v1953
    %v2074 = vunpack.c.h.b16 %v1953
    %v2075 = vunpack.c.l.b16 %v1954
    %v2076 = vunpack.c.h.b16 %v1954
    %v2077 = vunpack.c.l.b16 %v1955
    %v2078 = vunpack.c.h.b16 %v1955
    %v2079 = vunpack.c.l.b16 %v1956
    %v2080 = vunpack.c.h.b16 %v1956
    %v2081 = vunpack.c.l.b16 %v1957
    %v2082 = vunpack.c.h.b16 %v1957
    %v2083 = vunpack.c.l.b16 %v1958
    %v2084 = vunpack.c.h.b16 %v1958
    %v2085 = vunpack.c.l.b16 %v1959
    %v2086 = vunpack.c.h.b16 %v1959
    %v2087 = vunpack.c.l.b16 %v1960
    %v2088 = vunpack.c.h.b16 %v1960
    %v2089 = vunpack.c.l.b16 %v1961
    %v2090 = vunpack.c.h.b16 %v1961
    %v2091 = vunpack.c.l.b16 %v1962
    %v2092 = vunpack.c.h.b16 %v1962
    %v2093 = vunpack.c.l.b16 %v1963
    %v2094 = vunpack.c.h.b16 %v1963
    %v2095 = vunpack.c.l.b16 %v1964
    %v2096 = vunpack.c.h.b16 %v1964
    %v2097 = vunpack.c.l.b16 %v1965
    %v2098 = vunpack.c.h.b16 %v1965
    %v2099 = vunpack.c.l.b16 %v1966
    %v2100 = vunpack.c.h.b16 %v1966
    %v2101 = vunpack.c.l.b16 %v1967
    %v2102 = vunpack.c.h.b16 %v1967
    %v2103 = vunpack.c.l.b16 %v1968
    %v2104 = vunpack.c.h.b16 %v1968
    %v2105 = vunpack.c.l.b16 %v1969
    %v2106 = vunpack.c.h.b16 %v1969
    %v2107 = vunpack.c.l.b16 %v1970
    %v2108 = vunpack.c.h.b16 %v1970
    %v2109 = vunpack.c.l.b16 %v1971
    %v2110 = vunpack.c.h.b16 %v1971
    %v2111 = vunpack.c.l.b16 %v1972
    %v2112 = vunpack.c.h.b16 %v1972
    %v2113 = vunpack.c.l.b16 %v1973
    %v2114 = vunpack.c.h.b16 %v1973
    %v2115 = vunpack.c.l.b16 %v1974
    %v2116 = vunpack.c.h.b16 %v1974
    %v2117 = vunpack.c.l.b16 %v1975
    %v2118 = vunpack.c.h.b16 %v1975
    %v2119 = vunpack.c.l.b16 %v1976
    %v2120 = vunpack.c.h.b16 %v1976
    %v2121 = vunpack.c.l.b16 %v1977
    %v2122 = vunpack.c.h.b16 %v1977
    %v2123 = vunpack.c.l.b16 %v1978
    %v2124 = vunpack.c.h.b16 %v1978
    %v2125 = vunpack.c.l.b16 %v1979
    %v2126 = vunpack.c.h.b16 %v1979
    %v2127 = vunpack.c.l.b16 %v1980
    %v2128 = vunpack.c.h.b16 %v1980
    %v2129 = vunpack.c.l.b16 %v1981
    %v2130 = vunpack.c.h.b16 %v1981
    %v2131 = vunpack.c.l.b16 %v1982
    %v2132 = vunpack.c.h.b16 %v1982
    %v2133 = vpack.c.b16 %v2073, %v2069
    %v2134 = vpack.c.b16 %v2074, %v2070
    %v2135 = vpack.c.b16 %v2075, %v2071
    %v2136 = vpack.c.b16 %v2076, %v2072
    %v2137 = vpack.c.b16 %v2081, %v2077
    %v2138 = vpack.c.b16 %v2082, %v2078
    %v2139 = vpack.c.b16 %v2083, %v2079
    %v2140 = vpack.c.b16 %v2084, %v2080
    %v2141 = vpack.c.b16 %v2089, %v2085
    %v2142 = vpack.c.b16 %v2090, %v2086
    %v2143 = vpack.c.b16 %v2091, %v2087
    %v2144 = vpack.c.b16 %v2092, %v2088
    %v2145 = vpack.c.b16 %v2097, %v2093
    %v2146 = vpack.c.b16 %v2098, %v2094
    %v2147 = vpack.c.b16 %v2099, %v2095
    %v2148 = vpack.c.b16 %v2100, %v2096
    %v2149 = vpack.c.b16 %v2105, %v2101
    %v2150 = vpack.c.b16 %v2106, %v2102
    %v2151 = vpack.c.b16 %v2107, %v2103
    %v2152 = vpack.c.b16 %v2108, %v2104
    %v2153 = vpack.c.b16 %v2113, %v2109
    %v2154 = vpack.c.b16 %v2114, %v2110
    %v2155 = vpack.c.b16 %v2115, %v2111
    %v2156 = vpack.c.b16 %v2116, %v2112
    %v2157 = vpack.c.b16 %v2121, %v2117
    %v2158 = vpack.c.b16 %v2122, %v2118
    %v2159 = vpack.c.b16 %v2123, %v2119
    %v2160 = vpack.c.b16 %v2124, %v2120
    %v2161 = vpack.c.b16 %v2129, %v2125
    %v2162 = vpack.c.b16 %v2130, %v2126
    %v2163 = vpack.c.b16 %v2131, %v2127
    %v2164 = vpack.c.b16 %v2132, %v2128
    %2197 = vmatprep.subr.bf16.mxu0 %v2134
    %2198 = vmatpush1.bf16.msra.mxu0 %v2133
    %2199 = vmatprep.subr.bf16.mxu0 %v2138
    %2200 = vmatpush1.bf16.msra.mxu0 %v2137
    %2201 = vmatprep.subr.bf16.mxu0 %v2142
    %2202 = vmatpush1.bf16.msra.mxu0 %v2141
    %2203 = vmatprep.subr.bf16.mxu0 %v2146
    %2204 = vmatpush1.bf16.msra.mxu0 %v2145
    %2205 = vmatprep.subr.bf16.mxu0 %v2150
    %2206 = vmatpush1.bf16.msra.mxu0 %v2149
    %2207 = vmatprep.subr.bf16.mxu0 %v2154
    %2208 = vmatpush1.bf16.msra.mxu0 %v2153
    %2209 = vmatprep.subr.bf16.mxu0 %v2158
    %2210 = vmatpush1.bf16.msra.mxu0 %v2157
    %2211 = vmatprep.subr.bf16.mxu0 %v2162
    %2212 = vmatpush1.bf16.msra.mxu0 %v2161
    %2213 = vmatprep.subr.bf16.mxu0 0
    %2214 = vmatpush1.bf16.msra.mxu0 0
    %2215 = vmatprep.subr.bf16.mxu0 0
    %2216 = vmatpush1.bf16.msra.mxu0 0
    %2217 = vmatprep.subr.bf16.mxu0 0
    %2218 = vmatpush1.bf16.msra.mxu0 0
    %2219 = vmatprep.subr.bf16.mxu0 0
    %2220 = vmatpush1.bf16.msra.mxu0 0
    %2221 = vmatprep.subr.bf16.mxu0 0
    %2222 = vmatpush1.bf16.msra.mxu0 0
    %2223 = vmatprep.subr.bf16.mxu0 0
    %2224 = vmatpush1.bf16.msra.mxu0 0
    %2225 = vmatprep.subr.bf16.mxu0 0
    %2226 = vmatpush1.bf16.msra.mxu0 0
    %2227 = vmatprep.subr.bf16.mxu0 0
    %2228 = vmatpush1.bf16.msra.mxu0 0
    %2229 = vmatprep.mubr.bf16.mxu0 0
    %2230 = vmatmul.mubr.bf16.gmra.mrb[0].mxu0 0
    %v2231 = vpop.f32.mrb[0].mxu0
    %v2232 = vadd.f32 0.0, %v2231
    %v2233 = vpop.f32.mrb[0].mxu0
    %v2234 = vadd.f32 0.0, %v2233
    %v2235 = vpop.f32.mrb[0].mxu0
    %v2236 = vpop.f32.mrb[0].mxu0
    %2237 = vdwg.mxu0
    %2238 = vmatprep.subr.bf16.mxu0 %v2136
    %2239 = vmatpush1.bf16.msra.mxu0 %v2135
    %2240 = vmatprep.subr.bf16.mxu0 %v2140
    %2241 = vmatpush1.bf16.msra.mxu0 %v2139
    %2242 = vmatprep.subr.bf16.mxu0 %v2144
    %2243 = vmatpush1.bf16.msra.mxu0 %v2143
    %2244 = vmatprep.subr.bf16.mxu0 %v2148
    %2245 = vmatpush1.bf16.msra.mxu0 %v2147
    %2246 = vmatprep.subr.bf16.mxu0 %v2152
    %2247 = vmatpush1.bf16.msra.mxu0 %v2151
    %2248 = vmatprep.subr.bf16.mxu0 %v2156
    %2249 = vmatpush1.bf16.msra.mxu0 %v2155
    %2250 = vmatprep.subr.bf16.mxu0 %v2160
    %2251 = vmatpush1.bf16.msra.mxu0 %v2159
    %2252 = vmatprep.subr.bf16.mxu0 %v2164
    %2253 = vmatpush1.bf16.msra.mxu0 %v2163
    %2254 = vmatprep.subr.bf16.mxu0 0
    %2255 = vmatpush1.bf16.msra.mxu0 0
    %2256 = vmatprep.subr.bf16.mxu0 0
    %2257 = vmatpush1.bf16.msra.mxu0 0
    %2258 = vmatprep.subr.bf16.mxu0 0
    %2259 = vmatpush1.bf16.msra.mxu0 0
    %2260 = vmatprep.subr.bf16.mxu0 0
    %2261 = vmatpush1.bf16.msra.mxu0 0
    %2262 = vmatprep.subr.bf16.mxu0 0
    %2263 = vmatpush1.bf16.msra.mxu0 0
    %2264 = vmatprep.subr.bf16.mxu0 0
    %2265 = vmatpush1.bf16.msra.mxu0 0
    %2266 = vmatprep.subr.bf16.mxu0 0
    %2267 = vmatpush1.bf16.msra.mxu0 0
    %2268 = vmatprep.subr.bf16.mxu0 0
    %2269 = vmatpush1.bf16.msra.mxu0 0
    %2270 = vmatprep.mubr.bf16.mxu0 0
    %2271 = vmatmul.mubr.bf16.gmra.mrb[0].mxu0 0
    %v2272 = vpop.f32.mrb[0].mxu0
    %v2273 = vadd.f32 0.0, %v2272
    %v2274 = vpop.f32.mrb[0].mxu0
    %v2275 = vadd.f32 0.0, %v2274
    %v2276 = vpop.f32.mrb[0].mxu0
    %v2277 = vpop.f32.mrb[0].mxu0
    %2278 = vdwg.mxu0
    %v2287 = vunpack.c.l.b16 %v2029
    %v2288 = vunpack.c.h.b16 %v2029
    %v2289 = vunpack.c.l.b16 %v2030
    %v2290 = vunpack.c.h.b16 %v2030
    %v2291 = vunpack.c.l.b16 %v2031
    %v2292 = vunpack.c.h.b16 %v2031
    %v2293 = vunpack.c.l.b16 %v2032
    %v2294 = vunpack.c.h.b16 %v2032
    %v2295 = vunpack.c.l.b16 %v2033
    %v2296 = vunpack.c.h.b16 %v2033
    %v2297 = vunpack.c.l.b16 %v2034
    %v2298 = vunpack.c.h.b16 %v2034
    %v2299 = vunpack.c.l.b16 %v2035
    %v2300 = vunpack.c.h.b16 %v2035
    %v2301 = vunpack.c.l.b16 %v2036
    %v2302 = vunpack.c.h.b16 %v2036
    %v2303 = vpack.c.b16 %v2291, %v2287
    %v2304 = vpack.c.b16 %v2292, %v2288
    %v2305 = vpack.c.b16 %v2293, %v2289
    %v2306 = vpack.c.b16 %v2294, %v2290
    %v2307 = vpack.c.b16 %v2299, %v2295
    %v2308 = vpack.c.b16 %v2300, %v2296
    %v2309 = vpack.c.b16 %v2301, %v2297
    %v2310 = vpack.c.b16 %v2302, %v2298
    %v2320 = vsel %vm1910, %v2028, 0
    %2322 = vmatprep.subr.bf16.mxu0 %v2304
    %2323 = vmatpush1.bf16.msra.mxu0 %v2303
    %2324 = vmatprep.subr.bf16.mxu0 %v2308
    %2325 = vmatpush1.bf16.msra.mxu0 %v2307
    %2326 = vmatprep.subr.bf16.mxu0 0
    %2327 = vmatpush1.bf16.msra.mxu0 0
    %2328 = vmatprep.subr.bf16.mxu0 0
    %2329 = vmatpush1.bf16.msra.mxu0 0
    %2330 = vmatprep.subr.bf16.mxu0 0
    %2331 = vmatpush1.bf16.msra.mxu0 0
    %2332 = vmatprep.subr.bf16.mxu0 0
    %2333 = vmatpush1.bf16.msra.mxu0 0
    %2334 = vmatprep.subr.bf16.mxu0 0
    %2335 = vmatpush1.bf16.msra.mxu0 0
    %2336 = vmatprep.subr.bf16.mxu0 0
    %2337 = vmatpush1.bf16.msra.mxu0 0
    %2338 = vmatprep.subr.bf16.mxu0 0
    %2339 = vmatpush1.bf16.msra.mxu0 0
    %2340 = vmatprep.subr.bf16.mxu0 0
    %2341 = vmatpush1.bf16.msra.mxu0 0
    %2342 = vmatprep.subr.bf16.mxu0 0
    %2343 = vmatpush1.bf16.msra.mxu0 0
    %2344 = vmatprep.subr.bf16.mxu0 0
    %2345 = vmatpush1.bf16.msra.mxu0 0
    %2346 = vmatprep.subr.bf16.mxu0 0
    %2347 = vmatpush1.bf16.msra.mxu0 0
    %2348 = vmatprep.subr.bf16.mxu0 0
    %2349 = vmatpush1.bf16.msra.mxu0 0
    %2350 = vmatprep.subr.bf16.mxu0 0
    %2351 = vmatpush1.bf16.msra.mxu0 0
    %2352 = vmatprep.subr.bf16.mxu0 0
    %2353 = vmatpush1.bf16.msra.mxu0 0
    %2354 = vmatprep.mubr.bf16.mxu0 0
    %2355 = vmatmul.mubr.bf16.gmra.mrb[0].mxu0 %v2320
    %v2356 = vpop.f32.mrb[0].mxu0
    %v2357 = vadd.f32 %v2232, %v2356
    %v2358 = vpop.f32.mrb[0].mxu0
    %v2359 = vadd.f32 %v2234, %v2358
    %v2360 = vpop.f32.mrb[0].mxu0
    %v2361 = vpop.f32.mrb[0].mxu0
    %2362 = vdwg.mxu0
    %2363 = vmatprep.subr.bf16.mxu0 %v2306
    %2364 = vmatpush1.bf16.msra.mxu0 %v2305
    %2365 = vmatprep.subr.bf16.mxu0 %v2310
    %2366 = vmatpush1.bf16.msra.mxu0 %v2309
    %2367 = vmatprep.subr.bf16.mxu0 0
    %2368 = vmatpush1.bf16.msra.mxu0 0
    %2369 = vmatprep.subr.bf16.mxu0 0
    %2370 = vmatpush1.bf16.msra.mxu0 0
    %2371 = vmatprep.subr.bf16.mxu0 0
    %2372 = vmatpush1.bf16.msra.mxu0 0
    %2373 = vmatprep.subr.bf16.mxu0 0
    %2374 = vmatpush1.bf16.msra.mxu0 0
    %2375 = vmatprep.subr.bf16.mxu0 0
    %2376 = vmatpush1.bf16.msra.mxu0 0
    %2377 = vmatprep.subr.bf16.mxu0 0
    %2378 = vmatpush1.bf16.msra.mxu0 0
    %2379 = vmatprep.subr.bf16.mxu0 0
    %2380 = vmatpush1.bf16.msra.mxu0 0
    %2381 = vmatprep.subr.bf16.mxu0 0
    %2382 = vmatpush1.bf16.msra.mxu0 0
    %2383 = vmatprep.subr.bf16.mxu0 0
    %2384 = vmatpush1.bf16.msra.mxu0 0
    %2385 = vmatprep.subr.bf16.mxu0 0
    %2386 = vmatpush1.bf16.msra.mxu0 0
    %2387 = vmatprep.subr.bf16.mxu0 0
    %2388 = vmatpush1.bf16.msra.mxu0 0
    %2389 = vmatprep.subr.bf16.mxu0 0
    %2390 = vmatpush1.bf16.msra.mxu0 0
    %2391 = vmatprep.subr.bf16.mxu0 0
    %2392 = vmatpush1.bf16.msra.mxu0 0
    %2393 = vmatprep.subr.bf16.mxu0 0
    %2394 = vmatpush1.bf16.msra.mxu0 0
    %2395 = vmatprep.mubr.bf16.mxu0 0
    %2396 = vmatmul.mubr.bf16.gmra.mrb[0].mxu0 %v2320
    %v2397 = vpop.f32.mrb[0].mxu0
    %v2398 = vadd.f32 %v2273, %v2397
    %v2399 = vpop.f32.mrb[0].mxu0
    %v2400 = vadd.f32 %v2275, %v2399
    %v2401 = vpop.f32.mrb[0].mxu0
    %v2402 = vpop.f32.mrb[0].mxu0
    %2403 = vdwg.mxu0
    %v2404 = vadd.f32 %v2357, %v1988
    %v2405 = vadd.f32 %v2359, %v1992
    %v2406 = vadd.f32 %v2398, %v1996
    %v2407 = vadd.f32 %v2400, %v2000
    %v2408 = vmul.f32 %v2404, 0.5
    %v2409 = vtanh.pop %v2408
    %v2410 = vmul.f32 %v2409, 0.5
    %v2411 = vadd.f32 %v2410, 0.5
    %v2412 = vmul.f32 %v2405, 0.5
    %v2413 = vtanh.pop %v2412
    %v2414 = vmul.f32 %v2413, 0.5
    %v2415 = vadd.f32 %v2414, 0.5
    %v2416 = vtanh.pop %v2406
    %v2417 = vmul.f32 %v2407, 0.5
    %v2418 = vtanh.pop %v2417
    %v2419 = vmul.f32 %v2418, 0.5
    %v2420 = vadd.f32 %v2419, 0.5
    %v2421 = vmul.f32 %v2415, 0.0
    %v2422 = vmul.f32 %v2411, %v2416
    %v2423 = vadd.f32 %v2421, %v2422
    %v2424 = vtanh.pop %v2423
    %v2425 = vmul.f32 %v2420, %v2424
    %v2426 = vpack.c.bf16 %v2425, %v2425
    %v2443 = vunpack.c.l.b16 %v2005
    %v2444 = vunpack.c.l.b16 %v2006
    %v2445 = vunpack.c.l.b16 %v2007
    %v2446 = vunpack.c.l.b16 %v2008
    %v2447 = vunpack.c.l.b16 %v2009
    %v2448 = vunpack.c.l.b16 %v2010
    %v2449 = vunpack.c.l.b16 %v2011
    %v2450 = vunpack.c.l.b16 %v2012
    %v2451 = vunpack.c.l.b16 %v2013
    %v2452 = vunpack.c.l.b16 %v2014
    %v2453 = vunpack.c.l.b16 %v2015
    %v2454 = vunpack.c.l.b16 %v2016
    %v2455 = vunpack.c.l.b16 %v2017
    %v2456 = vunpack.c.l.b16 %v2018
    %v2457 = vunpack.c.l.b16 %v2019
    %v2458 = vunpack.c.l.b16 %v2020
    %v2459 = vpack.c.b16 %v2444, %v2443
    %v2460 = vpack.c.b16 %v2446, %v2445
    %v2461 = vpack.c.b16 %v2448, %v2447
    %v2462 = vpack.c.b16 %v2450, %v2449
    %v2463 = vpack.c.b16 %v2452, %v2451
    %v2464 = vpack.c.b16 %v2454, %v2453
    %v2465 = vpack.c.b16 %v2456, %v2455
    %v2466 = vpack.c.b16 %v2458, %v2457
    %2475 = vmatprep.subr.bf16.mxu0 0
    %2476 = vmatpush1.bf16.msra.mxu0 %v2459
    %2477 = vmatprep.subr.bf16.mxu0 0
    %2478 = vmatpush1.bf16.msra.mxu0 %v2460
    %2479 = vmatprep.subr.bf16.mxu0 0
    %2480 = vmatpush1.bf16.msra.mxu0 %v2461
    %2481 = vmatprep.subr.bf16.mxu0 0
    %2482 = vmatpush1.bf16.msra.mxu0 %v2462
    %2483 = vmatprep.subr.bf16.mxu0 0
    %2484 = vmatpush1.bf16.msra.mxu0 %v2463
    %2485 = vmatprep.subr.bf16.mxu0 0
    %2486 = vmatpush1.bf16.msra.mxu0 %v2464
    %2487 = vmatprep.subr.bf16.mxu0 0
    %2488 = vmatpush1.bf16.msra.mxu0 %v2465
    %2489 = vmatprep.subr.bf16.mxu0 0
    %2490 = vmatpush1.bf16.msra.mxu0 %v2466
    %2491 = vmatprep.subr.bf16.mxu0 0
    %2492 = vmatpush1.bf16.msra.mxu0 0
    %2493 = vmatprep.subr.bf16.mxu0 0
    %2494 = vmatpush1.bf16.msra.mxu0 0
    %2495 = vmatprep.subr.bf16.mxu0 0
    %2496 = vmatpush1.bf16.msra.mxu0 0
    %2497 = vmatprep.subr.bf16.mxu0 0
    %2498 = vmatpush1.bf16.msra.mxu0 0
    %2499 = vmatprep.subr.bf16.mxu0 0
    %2500 = vmatpush1.bf16.msra.mxu0 0
    %2501 = vmatprep.subr.bf16.mxu0 0
    %2502 = vmatpush1.bf16.msra.mxu0 0
    %2503 = vmatprep.subr.bf16.mxu0 0
    %2504 = vmatpush1.bf16.msra.mxu0 0
    %2505 = vmatprep.subr.bf16.mxu0 0
    %2506 = vmatpush1.bf16.msra.mxu0 0
    %2507 = vmatprep.mubr.bf16.mxu0 0
    %2508 = vmatmul.mubr.bf16.gmra.mrb[0].mxu0 %v2426
    %v2509 = vpop.f32.mrb[0].mxu0
    %v2510 = vadd.f32 %v2026, %v2509
    %v2511 = vpop.f32.mrb[0].mxu0
    %v2512 = vpop.f32.mrb[0].mxu0
    %v2513 = vpop.f32.mrb[0].mxu0
    %2514 = vdwg.mxu0
    %2515 = vst [vmem:[%s15] sm:$0xff] %v2510
    %2516 = vmax.xlane.f32.xlu0 %v2510
    %v2517 = vpop.xlane.xlu0 %2516
    %vm2518 = vcmp.eq.f32.partialorder %v2510, %v2517
    %v2519 = vsel %vm2518, 1, 0
    %v2520 = vcvt.s32.f32 %v2519
    %v2521 = vpack.c.bf16 %v2520, %v2520
    %2522 = vmatprep.subr.bf16.mxu0 %v2134
    %2523 = vmatpush1.bf16.msra.mxu0 %v2133
    %2524 = vmatprep.subr.bf16.mxu0 %v2138
    %2525 = vmatpush1.bf16.msra.mxu0 %v2137
    %2526 = vmatprep.subr.bf16.mxu0 %v2142
    %2527 = vmatpush1.bf16.msra.mxu0 %v2141
    %2528 = vmatprep.subr.bf16.mxu0 %v2146
    %2529 = vmatpush1.bf16.msra.mxu0 %v2145
    %2530 = vmatprep.subr.bf16.mxu0 %v2150
    %2531 = vmatpush1.bf16.msra.mxu0 %v2149
    %2532 = vmatprep.subr.bf16.mxu0 %v2154
    %2533 = vmatpush1.bf16.msra.mxu0 %v2153
    %2534 = vmatprep.subr.bf16.mxu0 %v2158
    %2535 = vmatpush1.bf16.msra.mxu0 %v2157
    %2536 = vmatprep.subr.bf16.mxu0 %v2162
    %2537 = vmatpush1.bf16.msra.mxu0 %v2161
    %2538 = vmatprep.subr.bf16.mxu0 0
    %2539 = vmatpush1.bf16.msra.mxu0 0
    %2540 = vmatprep.subr.bf16.mxu0 0
    %2541 = vmatpush1.bf16.msra.mxu0 0
    %2542 = vmatprep.subr.bf16.mxu0 0
    %2543 = vmatpush1.bf16.msra.mxu0 0
    %2544 = vmatprep.subr.bf16.mxu0 0
    %2545 = vmatpush1.bf16.msra.mxu0 0
    %2546 = vmatprep.subr.bf16.mxu0 0
    %2547 = vmatpush1.bf16.msra.mxu0 0
    %2548 = vmatprep.subr.bf16.mxu0 0
    %2549 = vmatpush1.bf16.msra.mxu0 0
    %2550 = vmatprep.subr.bf16.mxu0 0
    %2551 = vmatpush1.bf16.msra.mxu0 0
    %2552 = vmatprep.subr.bf16.mxu0 0
    %2553 = vmatpush1.bf16.msra.mxu0 0
    %2554 = vmatprep.mubr.bf16.mxu0 0
    %2555 = vmatmul.mubr.bf16.gmra.mrb[0].mxu0 %v2426
    %v2556 = vpop.f32.mrb[0].mxu0
    %v2557 = vadd.f32 0.0, %v2556
    %v2558 = vpop.f32.mrb[0].mxu0
    %v2559 = vadd.f32 0.0, %v2558
    %v2560 = vpop.f32.mrb[0].mxu0
    %v2561 = vpop.f32.mrb[0].mxu0
    %2562 = vdwg.mxu0
    %2563 = vmatprep.subr.bf16.mxu0 %v2136
    %2564 = vmatpush1.bf16.msra.mxu0 %v2135
    %2565 = vmatprep.subr.bf16.mxu0 %v2140
    %2566 = vmatpush1.bf16.msra.mxu0 %v2139
    %2567 = vmatprep.subr.bf16.mxu0 %v2144
    %2568 = vmatpush1.bf16.msra.mxu0 %v2143
    %2569 = vmatprep.subr.bf16.mxu0 %v2148
    %2570 = vmatpush1.bf16.msra.mxu0 %v2147
    %2571 = vmatprep.subr.bf16.mxu0 %v2152
    %2572 = vmatpush1.bf16.msra.mxu0 %v2151
    %2573 = vmatprep.subr.bf16.mxu0 %v2156
    %2574 = vmatpush1.bf16.msra.mxu0 %v2155
    %2575 = vmatprep.subr.bf16.mxu0 %v2160
    %2576 = vmatpush1.bf16.msra.mxu0 %v2159
    %2577 = vmatprep.subr.bf16.mxu0 %v2164
    %2578 = vmatpush1.bf16.msra.mxu0 %v2163
    %2579 = vmatprep.subr.bf16.mxu0 0
    %2580 = vmatpush1.bf16.msra.mxu0 0
    %2581 = vmatprep.subr.bf16.mxu0 0
    %2582 = vmatpush1.bf16.msra.mxu0 0
    %2583 = vmatprep.subr.bf16.mxu0 0
    %2584 = vmatpush1.bf16.msra.mxu0 0
    %2585 = vmatprep.subr.bf16.mxu0 0
    %2586 = vmatpush1.bf16.msra.mxu0 0
    %2587 = vmatprep.subr.bf16.mxu0 0
    %2588 = vmatpush1.bf16.msra.mxu0 0
    %2589 = vmatprep.subr.bf16.mxu0 0
    %2590 = vmatpush1.bf16.msra.mxu0 0
    %2591 = vmatprep.subr.bf16.mxu0 0
    %2592 = vmatpush1.bf16.msra.mxu0 0
    %2593 = vmatprep.subr.bf16.mxu0 0
    %2594 = vmatpush1.bf16.msra.mxu0 0
    %2595 = vmatprep.mubr.bf16.mxu0 0
    %2596 = vmatmul.mubr.bf16.gmra.mrb[0].mxu0 %v2426
    %v2597 = vpop.f32.mrb[0].mxu0
    %v2598 = vadd.f32 0.0, %v2597
    %v2599 = vpop.f32.mrb[0].mxu0
    %v2600 = vadd.f32 0.0, %v2599
    %v2601 = vpop.f32.mrb[0].mxu0
    %v2602 = vpop.f32.mrb[0].mxu0
    %2603 = vdwg.mxu0
    %v2636 = vunpack.c.l.b16 %v1919
    %v2637 = vunpack.c.h.b16 %v1919
    %v2638 = vunpack.c.l.b16 %v1920
    %v2639 = vunpack.c.h.b16 %v1920
    %v2640 = vunpack.c.l.b16 %v1921
    %v2641 = vunpack.c.h.b16 %v1921
    %v2642 = vunpack.c.l.b16 %v1922
    %v2643 = vunpack.c.h.b16 %v1922
    %v2644 = vunpack.c.l.b16 %v1923
    %v2645 = vunpack.c.h.b16 %v1923
    %v2646 = vunpack.c.l.b16 %v1924
    %v2647 = vunpack.c.h.b16 %v1924
    %v2648 = vunpack.c.l.b16 %v1925
    %v2649 = vunpack.c.h.b16 %v1925
    %v2650 = vunpack.c.l.b16 %v1926
    %v2651 = vunpack.c.h.b16 %v1926
    %v2652 = vunpack.c.l.b16 %v1927
    %v2653 = vunpack.c.h.b16 %v1927
    %v2654 = vunpack.c.l.b16 %v1928
    %v2655 = vunpack.c.h.b16 %v1928
    %v2656 = vunpack.c.l.b16 %v1929
    %v2657 = vunpack.c.h.b16 %v1929
    %v2658 = vunpack.c.l.b16 %v1930
    %v2659 = vunpack.c.h.b16 %v1930
    %v2660 = vunpack.c.l.b16 %v1931
    %v2661 = vunpack.c.h.b16 %v1931
    %v2662 = vunpack.c.l.b16 %v1932
    %v2663 = vunpack.c.h.b16 %v1932
    %v2664 = vunpack.c.l.b16 %v1933
    %v2665 = vunpack.c.h.b16 %v1933
    %v2666 = vunpack.c.l.b16 %v1934
    %v2667 = vunpack.c.h.b16 %v1934
    %v2668 = vunpack.c.l.b16 %v1935
    %v2669 = vunpack.c.h.b16 %v1935
    %v2670 = vunpack.c.l.b16 %v1936
    %v2671 = vunpack.c.h.b16 %v1936
    %v2672 = vunpack.c.l.b16 %v1937
    %v2673 = vunpack.c.h.b16 %v1937
    %v2674 = vunpack.c.l.b16 %v1938
    %v2675 = vunpack.c.h.b16 %v1938
    %v2676 = vunpack.c.l.b16 %v1939
    %v2677 = vunpack.c.h.b16 %v1939
    %v2678 = vunpack.c.l.b16 %v1940
    %v2679 = vunpack.c.h.b16 %v1940
    %v2680 = vunpack.c.l.b16 %v1941
    %v2681 = vunpack.c.h.b16 %v1941
    %v2682 = vunpack.c.l.b16 %v1942
    %v2683 = vunpack.c.h.b16 %v1942
    %v2684 = vunpack.c.l.b16 %v1943
    %v2685 = vunpack.c.h.b16 %v1943
    %v2686 = vunpack.c.l.b16 %v1944
    %v2687 = vunpack.c.h.b16 %v1944
    %v2688 = vunpack.c.l.b16 %v1945
    %v2689 = vunpack.c.h.b16 %v1945
    %v2690 = vunpack.c.l.b16 %v1946
    %v2691 = vunpack.c.h.b16 %v1946
    %v2692 = vunpack.c.l.b16 %v1947
    %v2693 = vunpack.c.h.b16 %v1947
    %v2694 = vunpack.c.l.b16 %v1948
    %v2695 = vunpack.c.h.b16 %v1948
    %v2696 = vunpack.c.l.b16 %v1949
    %v2697 = vunpack.c.h.b16 %v1949
    %v2698 = vunpack.c.l.b16 %v1950
    %v2699 = vunpack.c.h.b16 %v1950
    %v2700 = vpack.c.b16 %v2640, %v2636
    %v2701 = vpack.c.b16 %v2641, %v2637
    %v2702 = vpack.c.b16 %v2642, %v2638
    %v2703 = vpack.c.b16 %v2643, %v2639
    %v2704 = vpack.c.b16 %v2648, %v2644
    %v2705 = vpack.c.b16 %v2649, %v2645
    %v2706 = vpack.c.b16 %v2650, %v2646
    %v2707 = vpack.c.b16 %v2651, %v2647
    %v2708 = vpack.c.b16 %v2656, %v2652
    %v2709 = vpack.c.b16 %v2657, %v2653
    %v2710 = vpack.c.b16 %v2658, %v2654
    %v2711 = vpack.c.b16 %v2659, %v2655
    %v2712 = vpack.c.b16 %v2664, %v2660
    %v2713 = vpack.c.b16 %v2665, %v2661
    %v2714 = vpack.c.b16 %v2666, %v2662
    %v2715 = vpack.c.b16 %v2667, %v2663
    %v2716 = vpack.c.b16 %v2672, %v2668
    %v2717 = vpack.c.b16 %v2673, %v2669
    %v2718 = vpack.c.b16 %v2674, %v2670
    %v2719 = vpack.c.b16 %v2675, %v2671
    %v2720 = vpack.c.b16 %v2680, %v2676
    %v2721 = vpack.c.b16 %v2681, %v2677
    %v2722 = vpack.c.b16 %v2682, %v2678
    %v2723 = vpack.c.b16 %v2683, %v2679
    %v2724 = vpack.c.b16 %v2688, %v2684
    %v2725 = vpack.c.b16 %v2689, %v2685
    %v2726 = vpack.c.b16 %v2690, %v2686
    %v2727 = vpack.c.b16 %v2691, %v2687
    %v2728 = vpack.c.b16 %v2696, %v2692
    %v2729 = vpack.c.b16 %v2697, %v2693
    %v2730 = vpack.c.b16 %v2698, %v2694
    %v2731 = vpack.c.b16 %v2699, %v2695
    %2764 = vmatprep.subr.bf16.mxu0 %v2701
    %2765 = vmatpush1.bf16.msra.mxu0 %v2700
    %2766 = vmatprep.subr.bf16.mxu0 %v2705
    %2767 = vmatpush1.bf16.msra.mxu0 %v2704
    %2768 = vmatprep.subr.bf16.mxu0 %v2709
    %2769 = vmatpush1.bf16.msra.mxu0 %v2708
    %2770 = vmatprep.subr.bf16.mxu0 %v2713
    %2771 = vmatpush1.bf16.msra.mxu0 %v2712
    %2772 = vmatprep.subr.bf16.mxu0 %v2717
    %2773 = vmatpush1.bf16.msra.mxu0 %v2716
    %2774 = vmatprep.subr.bf16.mxu0 %v2721
    %2775 = vmatpush1.bf16.msra.mxu0 %v2720
    %2776 = vmatprep.subr.bf16.mxu0 %v2725
    %2777 = vmatpush1.bf16.msra.mxu0 %v2724
    %2778 = vmatprep.subr.bf16.mxu0 %v2729
    %2779 = vmatpush1.bf16.msra.mxu0 %v2728
    %2780 = vmatprep.subr.bf16.mxu0 0
    %2781 = vmatpush1.bf16.msra.mxu0 0
    %2782 = vmatprep.subr.bf16.mxu0 0
    %2783 = vmatpush1.bf16.msra.mxu0 0
    %2784 = vmatprep.subr.bf16.mxu0 0
    %2785 = vmatpush1.bf16.msra.mxu0 0
    %2786 = vmatprep.subr.bf16.mxu0 0
    %2787 = vmatpush1.bf16.msra.mxu0 0
    %2788 = vmatprep.subr.bf16.mxu0 0
    %2789 = vmatpush1.bf16.msra.mxu0 0
    %2790 = vmatprep.subr.bf16.mxu0 0
    %2791 = vmatpush1.bf16.msra.mxu0 0
    %2792 = vmatprep.subr.bf16.mxu0 0
    %2793 = vmatpush1.bf16.msra.mxu0 0
    %2794 = vmatprep.subr.bf16.mxu0 0
    %2795 = vmatpush1.bf16.msra.mxu0 0
    %2796 = vmatprep.mubr.bf16.mxu0 0
    %2797 = vmatmul.mubr.bf16.gmra.mrb[0].mxu0 %v2521
    %v2798 = vpop.f32.mrb[0].mxu0
    %v2799 = vadd.f32 %v2557, %v2798
    %v2800 = vpop.f32.mrb[0].mxu0
    %v2801 = vadd.f32 %v2559, %v2800
    %v2802 = vpop.f32.mrb[0].mxu0
    %v2803 = vpop.f32.mrb[0].mxu0
    %2804 = vdwg.mxu0
    %2805 = vmatprep.subr.bf16.mxu0 %v2703
    %2806 = vmatpush1.bf16.msra.mxu0 %v2702
    %2807 = vmatprep.subr.bf16.mxu0 %v2707
    %2808 = vmatpush1.bf16.msra.mxu0 %v2706
    %2809 = vmatprep.subr.bf16.mxu0 %v2711
    %2810 = vmatpush1.bf16.msra.mxu0 %v2710
    %2811 = vmatprep.subr.bf16.mxu0 %v2715
    %2812 = vmatpush1.bf16.msra.mxu0 %v2714
    %2813 = vmatprep.subr.bf16.mxu0 %v2719
    %2814 = vmatpush1.bf16.msra.mxu0 %v2718
    %2815 = vmatprep.subr.bf16.mxu0 %v2723
    %2816 = vmatpush1.bf16.msra.mxu0 %v2722
    %2817 = vmatprep.subr.bf16.mxu0 %v2727
    %2818 = vmatpush1.bf16.msra.mxu0 %v2726
    %2819 = vmatprep.subr.bf16.mxu0 %v2731
    %2820 = vmatpush1.bf16.msra.mxu0 %v2730
    %2821 = vmatprep.subr.bf16.mxu0 0
    %2822 = vmatpush1.bf16.msra.mxu0 0
    %2823 = vmatprep.subr.bf16.mxu0 0
    %2824 = vmatpush1.bf16.msra.mxu0 0
    %2825 = vmatprep.subr.bf16.mxu0 0
    %2826 = vmatpush1.bf16.msra.mxu0 0
    %2827 = vmatprep.subr.bf16.mxu0 0
    %2828 = vmatpush1.bf16.msra.mxu0 0
    %2829 = vmatprep.subr.bf16.mxu0 0
    %2830 = vmatpush1.bf16.msra.mxu0 0
    %2831 = vmatprep.subr.bf16.mxu0 0
    %2832 = vmatpush1.bf16.msra.mxu0 0
    %2833 = vmatprep.subr.bf16.mxu0 0
    %2834 = vmatpush1.bf16.msra.mxu0 0
    %2835 = vmatprep.subr.bf16.mxu0 0
    %2836 = vmatpush1.bf16.msra.mxu0 0
    %2837 = vmatprep.mubr.bf16.mxu0 0
    %2838 = vmatmul.mubr.bf16.gmra.mrb[0].mxu0 %v2521
    %v2839 = vpop.f32.mrb[0].mxu0
    %v2840 = vadd.f32 %v2598, %v2839
    %v2841 = vpop.f32.mrb[0].mxu0
    %v2842 = vadd.f32 %v2600, %v2841
    %v2843 = vpop.f32.mrb[0].mxu0
    %v2844 = vpop.f32.mrb[0].mxu0
    %2845 = vdwg.mxu0
    %v2846 = vadd.f32 %v2799, %v1988
    %v2847 = vadd.f32 %v2801, %v1992
    %v2848 = vadd.f32 %v2840, %v1996
    %v2849 = vadd.f32 %v2842, %v2000
    %v2850 = vmul.f32 %v2846, 0.5
    %v2851 = vtanh.pop %v2850
    %v2852 = vmul.f32 %v2851, 0.5
    %v2853 = vadd.f32 %v2852, 0.5
    %v2854 = vmul.f32 %v2847, 0.5
    %v2855 = vtanh.pop %v2854
    %v2856 = vmul.f32 %v2855, 0.5
    %v2857 = vadd.f32 %v2856, 0.5
    %v2858 = vtanh.pop %v2848
    %v2859 = vmul.f32 %v2849, 0.5
    %v2860 = vtanh.pop %v2859
    %v2861 = vmul.f32 %v2860, 0.5
    %v2862 = vadd.f32 %v2861, 0.5
    %v2863 = vmul.f32 %v2857, %v2423
    %v2864 = vmul.f32 %v2853, %v2858
    %v2865 = vadd.f32 %v2863, %v2864
    %v2866 = vtanh.pop %v2865
    %v2867 = vmul.f32 %v2862, %v2866
    %v2868 = vpack.c.bf16 %v2867, %v2867
    %2869 = vmatprep.subr.bf16.mxu0 0
    %2870 = vmatpush1.bf16.msra.mxu0 %v2459
    %2871 = vmatprep.subr.bf16.mxu0 0
    %2872 = vmatpush1.bf16.msra.mxu0 %v2460
    %2873 = vmatprep.subr.bf16.mxu0 0
    %2874 = vmatpush1.bf16.msra.mxu0 %v2461
    %2875 = vmatprep.subr.bf16.mxu0 0
    %2876 = vmatpush1.bf16.msra.mxu0 %v2462
    %2877 = vmatprep.subr.bf16.mxu0 0
    %2878 = vmatpush1.bf16.msra.mxu0 %v2463
    %2879 = vmatprep.subr.bf16.mxu0 0
    %2880 = vmatpush1.bf16.msra.mxu0 %v2464
    %2881 = vmatprep.subr.bf16.mxu0 0
    %2882 = vmatpush1.bf16.msra.mxu0 %v2465
    %2883 = vmatprep.subr.bf16.mxu0 0
    %2884 = vmatpush1.bf16.msra.mxu0 %v2466
    %2885 = vmatprep.subr.bf16.mxu0 0
    %2886 = vmatpush1.bf16.msra.mxu0 0
    %2887 = vmatprep.subr.bf16.mxu0 0
    %2888 = vmatpush1.bf16.msra.mxu0 0
    %2889 = vmatprep.subr.bf16.mxu0 0
    %2890 = vmatpush1.bf16.msra.mxu0 0
    %2891 = vmatprep.subr.bf16.mxu0 0
    %2892 = vmatpush1.bf16.msra.mxu0 0
    %2893 = vmatprep.subr.bf16.mxu0 0
    %2894 = vmatpush1.bf16.msra.mxu0 0
    %2895 = vmatprep.subr.bf16.mxu0 0
    %2896 = vmatpush1.bf16.msra.mxu0 0
    %2897 = vmatprep.subr.bf16.mxu0 0
    %2898 = vmatpush1.bf16.msra.mxu0 0
    %2899 = vmatprep.subr.bf16.mxu0 0
    %2900 = vmatpush1.bf16.msra.mxu0 0
    %2901 = vmatprep.mubr.bf16.mxu0 0
    %2902 = vmatmul.mubr.bf16.gmra.mrb[0].mxu0 %v2868
    %v2903 = vpop.f32.mrb[0].mxu0
    %v2904 = vadd.f32 %v2026, %v2903
    %v2905 = vpop.f32.mrb[0].mxu0
    %v2906 = vpop.f32.mrb[0].mxu0
    %v2907 = vpop.f32.mrb[0].mxu0
    %2908 = vdwg.mxu0
    %2909 = vst [vmem:[%s15 + $0x8] sm:$0xff] %v2904
    %2910 = vmax.xlane.f32.xlu0 %v2904
    %v2911 = vpop.xlane.xlu0 %2910
    %vm2912 = vcmp.eq.f32.partialorder %v2904, %v2911
    %v2913 = vsel %vm2912, 1, 0
    %v2914 = vcvt.s32.f32 %v2913
    %v2915 = vpack.c.bf16 %v2914, %v2914
    %2916 = vmatprep.subr.bf16.mxu0 %v2134
    %2917 = vmatpush1.bf16.msra.mxu0 %v2133
    %2918 = vmatprep.subr.bf16.mxu0 %v2138
    %2919 = vmatpush1.bf16.msra.mxu0 %v2137
    %2920 = vmatprep.subr.bf16.mxu0 %v2142
    %2921 = vmatpush1.bf16.msra.mxu0 %v2141
    %2922 = vmatprep.subr.bf16.mxu0 %v2146
    %2923 = vmatpush1.bf16.msra.mxu0 %v2145
    %2924 = vmatprep.subr.bf16.mxu0 %v2150
    %2925 = vmatpush1.bf16.msra.mxu0 %v2149
    %2926 = vmatprep.subr.bf16.mxu0 %v2154
    %2927 = vmatpush1.bf16.msra.mxu0 %v2153
    %2928 = vmatprep.subr.bf16.mxu0 %v2158
    %2929 = vmatpush1.bf16.msra.mxu0 %v2157
    %2930 = vmatprep.subr.bf16.mxu0 %v2162
    %2931 = vmatpush1.bf16.msra.mxu0 %v2161
    %2932 = vmatprep.subr.bf16.mxu0 0
    %2933 = vmatpush1.bf16.msra.mxu0 0
    %2934 = vmatprep.subr.bf16.mxu0 0
    %2935 = vmatpush1.bf16.msra.mxu0 0
    %2936 = vmatprep.subr.bf16.mxu0 0
    %2937 = vmatpush1.bf16.msra.mxu0 0
    %2938 = vmatprep.subr.bf16.mxu0 0
    %2939 = vmatpush1.bf16.msra.mxu0 0
    %2940 = vmatprep.subr.bf16.mxu0 0
    %2941 = vmatpush1.bf16.msra.mxu0 0
    %2942 = vmatprep.subr.bf16.mxu0 0
    %2943 = vmatpush1.bf16.msra.mxu0 0
    %2944 = vmatprep.subr.bf16.mxu0 0
    %2945 = vmatpush1.bf16.msra.mxu0 0
    %2946 = vmatprep.subr.bf16.mxu0 0
    %2947 = vmatpush1.bf16.msra.mxu0 0
    %2948 = vmatprep.mubr.bf16.mxu0 0
    %2949 = vmatmul.mubr.bf16.gmra.mrb[0].mxu0 %v2868
    %v2950 = vpop.f32.mrb[0].mxu0
    %v2951 = vadd.f32 0.0, %v2950
    %v2952 = vpop.f32.mrb[0].mxu0
    %v2953 = vadd.f32 0.0, %v2952
    %v2954 = vpop.f32.mrb[0].mxu0
    %v2955 = vpop.f32.mrb[0].mxu0
    %2956 = vdwg.mxu0
    %2957 = vmatprep.subr.bf16.mxu0 %v2136
    %2958 = vmatpush1.bf16.msra.mxu0 %v2135
    %2959 = vmatprep.subr.bf16.mxu0 %v2140
    %2960 = vmatpush1.bf16.msra.mxu0 %v2139
    %2961 = vmatprep.subr.bf16.mxu0 %v2144
    %2962 = vmatpush1.bf16.msra.mxu0 %v2143
    %2963 = vmatprep.subr.bf16.mxu0 %v2148
    %2964 = vmatpush1.bf16.msra.mxu0 %v2147
    %2965 = vmatprep.subr.bf16.mxu0 %v2152
    %2966 = vmatpush1.bf16.msra.mxu0 %v2151
    %2967 = vmatprep.subr.bf16.mxu0 %v2156
    %2968 = vmatpush1.bf16.msra.mxu0 %v2155
    %2969 = vmatprep.subr.bf16.mxu0 %v2160
    %2970 = vmatpush1.bf16.msra.mxu0 %v2159
    %2971 = vmatprep.subr.bf16.mxu0 %v2164
    %2972 = vmatpush1.bf16.msra.mxu0 %v2163
    %2973 = vmatprep.subr.bf16.mxu0 0
    %2974 = vmatpush1.bf16.msra.mxu0 0
    %2975 = vmatprep.subr.bf16.mxu0 0
    %2976 = vmatpush1.bf16.msra.mxu0 0
    %2977 = vmatprep.subr.bf16.mxu0 0
    %2978 = vmatpush1.bf16.msra.mxu0 0
    %2979 = vmatprep.subr.bf16.mxu0 0
    %2980 = vmatpush1.bf16.msra.mxu0 0
    %2981 = vmatprep.subr.bf16.mxu0 0
    %2982 = vmatpush1.bf16.msra.mxu0 0
    %2983 = vmatprep.subr.bf16.mxu0 0
    %2984 = vmatpush1.bf16.msra.mxu0 0
    %2985 = vmatprep.subr.bf16.mxu0 0
    %2986 = vmatpush1.bf16.msra.mxu0 0
    %2987 = vmatprep.subr.bf16.mxu0 0
    %2988 = vmatpush1.bf16.msra.mxu0 0
    %2989 = vmatprep.mubr.bf16.mxu0 0
    %2990 = vmatmul.mubr.bf16.gmra.mrb[0].mxu0 %v2868
    %v2991 = vpop.f32.mrb[0].mxu0
    %v2992 = vadd.f32 0.0, %v2991
    %v2993 = vpop.f32.mrb[0].mxu0
    %v2994 = vadd.f32 0.0, %v2993
    %v2995 = vpop.f32.mrb[0].mxu0
    %v2996 = vpop.f32.mrb[0].mxu0
    %2997 = vdwg.mxu0
    %2998 = vmatprep.subr.bf16.mxu0 %v2701
    %2999 = vmatpush1.bf16.msra.mxu0 %v2700
    %3000 = vmatprep.subr.bf16.mxu0 %v2705
    %3001 = vmatpush1.bf16.msra.mxu0 %v2704
    %3002 = vmatprep.subr.bf16.mxu0 %v2709
    %3003 = vmatpush1.bf16.msra.mxu0 %v2708
    %3004 = vmatprep.subr.bf16.mxu0 %v2713
    %3005 = vmatpush1.bf16.msra.mxu0 %v2712
    %3006 = vmatprep.subr.bf16.mxu0 %v2717
    %3007 = vmatpush1.bf16.msra.mxu0 %v2716
    %3008 = vmatprep.subr.bf16.mxu0 %v2721
    %3009 = vmatpush1.bf16.msra.mxu0 %v2720
    %3010 = vmatprep.subr.bf16.mxu0 %v2725
    %3011 = vmatpush1.bf16.msra.mxu0 %v2724
    %3012 = vmatprep.subr.bf16.mxu0 %v2729
    %3013 = vmatpush1.bf16.msra.mxu0 %v2728
    %3014 = vmatprep.subr.bf16.mxu0 0
    %3015 = vmatpush1.bf16.msra.mxu0 0
    %3016 = vmatprep.subr.bf16.mxu0 0
    %3017 = vmatpush1.bf16.msra.mxu0 0
    %3018 = vmatprep.subr.bf16.mxu0 0
    %3019 = vmatpush1.bf16.msra.mxu0 0
    %3020 = vmatprep.subr.bf16.mxu0 0
    %3021 = vmatpush1.bf16.msra.mxu0 0
    %3022 = vmatprep.subr.bf16.mxu0 0
    %3023 = vmatpush1.bf16.msra.mxu0 0
    %3024 = vmatprep.subr.bf16.mxu0 0
    %3025 = vmatpush1.bf16.msra.mxu0 0
    %3026 = vmatprep.subr.bf16.mxu0 0
    %3027 = vmatpush1.bf16.msra.mxu0 0
    %3028 = vmatprep.subr.bf16.mxu0 0
    %3029 = vmatpush1.bf16.msra.mxu0 0
    %3030 = vmatprep.mubr.bf16.mxu0 0
    %3031 = vmatmul.mubr.bf16.gmra.mrb[0].mxu0 %v2915
    %v3032 = vpop.f32.mrb[0].mxu0
    %v3033 = vadd.f32 %v2951, %v3032
    %v3034 = vpop.f32.mrb[0].mxu0
    %v3035 = vadd.f32 %v2953, %v3034
    %v3036 = vpop.f32.mrb[0].mxu0
    %v3037 = vpop.f32.mrb[0].mxu0
    %3038 = vdwg.mxu0
    %3039 = vmatprep.subr.bf16.mxu0 %v2703
    %3040 = vmatpush1.bf16.msra.mxu0 %v2702
    %3041 = vmatprep.subr.bf16.mxu0 %v2707
    %3042 = vmatpush1.bf16.msra.mxu0 %v2706
    %3043 = vmatprep.subr.bf16.mxu0 %v2711
    %3044 = vmatpush1.bf16.msra.mxu0 %v2710
    %3045 = vmatprep.subr.bf16.mxu0 %v2715
    %3046 = vmatpush1.bf16.msra.mxu0 %v2714
    %3047 = vmatprep.subr.bf16.mxu0 %v2719
    %3048 = vmatpush1.bf16.msra.mxu0 %v2718
    %3049 = vmatprep.subr.bf16.mxu0 %v2723
    %3050 = vmatpush1.bf16.msra.mxu0 %v2722
    %3051 = vmatprep.subr.bf16.mxu0 %v2727
    %3052 = vmatpush1.bf16.msra.mxu0 %v2726
    %3053 = vmatprep.subr.bf16.mxu0 %v2731
    %3054 = vmatpush1.bf16.msra.mxu0 %v2730
    %3055 = vmatprep.subr.bf16.mxu0 0
    %3056 = vmatpush1.bf16.msra.mxu0 0
    %3057 = vmatprep.subr.bf16.mxu0 0
    %3058 = vmatpush1.bf16.msra.mxu0 0
    %3059 = vmatprep.subr.bf16.mxu0 0
    %3060 = vmatpush1.bf16.msra.mxu0 0
    %3061 = vmatprep.subr.bf16.mxu0 0
    %3062 = vmatpush1.bf16.msra.mxu0 0
    %3063 = vmatprep.subr.bf16.mxu0 0
    %3064 = vmatpush1.bf16.msra.mxu0 0
    %3065 = vmatprep.subr.bf16.mxu0 0
    %3066 = vmatpush1.bf16.msra.mxu0 0
    %3067 = vmatprep.subr.bf16.mxu0 0
    %3068 = vmatpush1.bf16.msra.mxu0 0
    %3069 = vmatprep.subr.bf16.mxu0 0
    %3070 = vmatpush1.bf16.msra.mxu0 0
    %3071 = vmatprep.mubr.bf16.mxu0 0
    %3072 = vmatmul.mubr.bf16.gmra.mrb[0].mxu0 %v2915
    %v3073 = vpop.f32.mrb[0].mxu0
    %v3074 = vadd.f32 %v2992, %v3073
    %v3075 = vpop.f32.mrb[0].mxu0
    %v3076 = vadd.f32 %v2994, %v3075
    %v3077 = vpop.f32.mrb[0].mxu0
    %v3078 = vpop.f32.mrb[0].mxu0
    %3079 = vdwg.mxu0
    %v3080 = vadd.f32 %v3033, %v1988
    %v3081 = vadd.f32 %v3035, %v1992
    %v3082 = vadd.f32 %v3074, %v1996
    %v3083 = vadd.f32 %v3076, %v2000
    %v3084 = vmul.f32 %v3080, 0.5
    %v3085 = vtanh.pop %v3084
    %v3086 = vmul.f32 %v3085, 0.5
    %v3087 = vadd.f32 %v3086, 0.5
    %v3088 = vmul.f32 %v3081, 0.5
    %v3089 = vtanh.pop %v3088
    %v3090 = vmul.f32 %v3089, 0.5
    %v3091 = vadd.f32 %v3090, 0.5
    %v3092 = vtanh.pop %v3082
    %v3093 = vmul.f32 %v3083, 0.5
    %v3094 = vtanh.pop %v3093
    %v3095 = vmul.f32 %v3094, 0.5
    %v3096 = vadd.f32 %v3095, 0.5
    %v3097 = vmul.f32 %v3091, %v2865
    %v3098 = vmul.f32 %v3087, %v3092
    %v3099 = vadd.f32 %v3097, %v3098
    %v3100 = vtanh.pop %v3099
    %v3101 = vmul.f32 %v3096, %v3100
    %v3102 = vpack.c.bf16 %v3101, %v3101
    %3103 = vmatprep.subr.bf16.mxu0 0
    %3104 = vmatpush1.bf16.msra.mxu0 %v2459
    %3105 = vmatprep.subr.bf16.mxu0 0
    %3106 = vmatpush1.bf16.msra.mxu0 %v2460
    %3107 = vmatprep.subr.bf16.mxu0 0
    %3108 = vmatpush1.bf16.msra.mxu0 %v2461
    %3109 = vmatprep.subr.bf16.mxu0 0
    %3110 = vmatpush1.bf16.msra.mxu0 %v2462
    %3111 = vmatprep.subr.bf16.mxu0 0
    %3112 = vmatpush1.bf16.msra.mxu0 %v2463
    %3113 = vmatprep.subr.bf16.mxu0 0
    %3114 = vmatpush1.bf16.msra.mxu0 %v2464
    %3115 = vmatprep.subr.bf16.mxu0 0
    %3116 = vmatpush1.bf16.msra.mxu0 %v2465
    %3117 = vmatprep.subr.bf16.mxu0 0
    %3118 = vmatpush1.bf16.msra.mxu0 %v2466
    %3119 = vmatprep.subr.bf16.mxu0 0
    %3120 = vmatpush1.bf16.msra.mxu0 0
    %3121 = vmatprep.subr.bf16.mxu0 0
    %3122 = vmatpush1.bf16.msra.mxu0 0
    %3123 = vmatprep.subr.bf16.mxu0 0
    %3124 = vmatpush1.bf16.msra.mxu0 0
    %3125 = vmatprep.subr.bf16.mxu0 0
    %3126 = vmatpush1.bf16.msra.mxu0 0
    %3127 = vmatprep.subr.bf16.mxu0 0
    %3128 = vmatpush1.bf16.msra.mxu0 0
    %3129 = vmatprep.subr.bf16.mxu0 0
    %3130 = vmatpush1.bf16.msra.mxu0 0
    %3131 = vmatprep.subr.bf16.mxu0 0
    %3132 = vmatpush1.bf16.msra.mxu0 0
    %3133 = vmatprep.subr.bf16.mxu0 0
    %3134 = vmatpush1.bf16.msra.mxu0 0
    %3135 = vmatprep.mubr.bf16.mxu0 0
    %3136 = vmatmul.mubr.bf16.gmra.mrb[0].mxu0 %v3102
    %v3137 = vpop.f32.mrb[0].mxu0
    %v3138 = vadd.f32 %v2026, %v3137
    %v3139 = vpop.f32.mrb[0].mxu0
    %v3140 = vpop.f32.mrb[0].mxu0
    %v3141 = vpop.f32.mrb[0].mxu0
    %3142 = vdwg.mxu0
    %3143 = vst [vmem:[%s15 + $0x10] sm:$0xff] %v3138
    %3144 = vmax.xlane.f32.xlu0 %v3138
    %v3145 = vpop.xlane.xlu0 %3144
    %vm3146 = vcmp.eq.f32.partialorder %v3138, %v3145
    %v3147 = vsel %vm3146, 1, 0
    %v3148 = vcvt.s32.f32 %v3147
    %v3149 = vpack.c.bf16 %v3148, %v3148
    %3150 = vmatprep.subr.bf16.mxu0 %v2134
    %3151 = vmatpush1.bf16.msra.mxu0 %v2133
    %3152 = vmatprep.subr.bf16.mxu0 %v2138
    %3153 = vmatpush1.bf16.msra.mxu0 %v2137
    %3154 = vmatprep.subr.bf16.mxu0 %v2142
    %3155 = vmatpush1.bf16.msra.mxu0 %v2141
    %3156 = vmatprep.subr.bf16.mxu0 %v2146
    %3157 = vmatpush1.bf16.msra.mxu0 %v2145
    %3158 = vmatprep.subr.bf16.mxu0 %v2150
    %3159 = vmatpush1.bf16.msra.mxu0 %v2149
    %3160 = vmatprep.subr.bf16.mxu0 %v2154
    %3161 = vmatpush1.bf16.msra.mxu0 %v2153
    %3162 = vmatprep.subr.bf16.mxu0 %v2158
    %3163 = vmatpush1.bf16.msra.mxu0 %v2157
    %3164 = vmatprep.subr.bf16.mxu0 %v2162
    %3165 = vmatpush1.bf16.msra.mxu0 %v2161
    %3166 = vmatprep.subr.bf16.mxu0 0
    %3167 = vmatpush1.bf16.msra.mxu0 0
    %3168 = vmatprep.subr.bf16.mxu0 0
    %3169 = vmatpush1.bf16.msra.mxu0 0
    %3170 = vmatprep.subr.bf16.mxu0 0
    %3171 = vmatpush1.bf16.msra.mxu0 0
    %3172 = vmatprep.subr.bf16.mxu0 0
    %3173 = vmatpush1.bf16.msra.mxu0 0
    %3174 = vmatprep.subr.bf16.mxu0 0
    %3175 = vmatpush1.bf16.msra.mxu0 0
    %3176 = vmatprep.subr.bf16.mxu0 0
    %3177 = vmatpush1.bf16.msra.mxu0 0
    %3178 = vmatprep.subr.bf16.mxu0 0
    %3179 = vmatpush1.bf16.msra.mxu0 0
    %3180 = vmatprep.subr.bf16.mxu0 0
    %3181 = vmatpush1.bf16.msra.mxu0 0
    %3182 = vmatprep.mubr.bf16.mxu0 0
    %3183 = vmatmul.mubr.bf16.gmra.mrb[0].mxu0 %v3102
    %v3184 = vpop.f32.mrb[0].mxu0
    %v3185 = vadd.f32 0.0, %v3184
    %v3186 = vpop.f32.mrb[0].mxu0
    %v3187 = vadd.f32 0.0, %v3186
    %v3188 = vpop.f32.mrb[0].mxu0
    %v3189 = vpop.f32.mrb[0].mxu0
    %3190 = vdwg.mxu0
    %3191 = vmatprep.subr.bf16.mxu0 %v2136
    %3192 = vmatpush1.bf16.msra.mxu0 %v2135
    %3193 = vmatprep.subr.bf16.mxu0 %v2140
    %3194 = vmatpush1.bf16.msra.mxu0 %v2139
    %3195 = vmatprep.subr.bf16.mxu0 %v2144
    %3196 = vmatpush1.bf16.msra.mxu0 %v2143
    %3197 = vmatprep.subr.bf16.mxu0 %v2148
    %3198 = vmatpush1.bf16.msra.mxu0 %v2147
    %3199 = vmatprep.subr.bf16.mxu0 %v2152
    %3200 = vmatpush1.bf16.msra.mxu0 %v2151
    %3201 = vmatprep.subr.bf16.mxu0 %v2156
    %3202 = vmatpush1.bf16.msra.mxu0 %v2155
    %3203 = vmatprep.subr.bf16.mxu0 %v2160
    %3204 = vmatpush1.bf16.msra.mxu0 %v2159
    %3205 = vmatprep.subr.bf16.mxu0 %v2164
    %3206 = vmatpush1.bf16.msra.mxu0 %v2163
    %3207 = vmatprep.subr.bf16.mxu0 0
    %3208 = vmatpush1.bf16.msra.mxu0 0
    %3209 = vmatprep.subr.bf16.mxu0 0
    %3210 = vmatpush1.bf16.msra.mxu0 0
    %3211 = vmatprep.subr.bf16.mxu0 0
    %3212 = vmatpush1.bf16.msra.mxu0 0
    %3213 = vmatprep.subr.bf16.mxu0 0
    %3214 = vmatpush1.bf16.msra.mxu0 0
    %3215 = vmatprep.subr.bf16.mxu0 0
    %3216 = vmatpush1.bf16.msra.mxu0 0
    %3217 = vmatprep.subr.bf16.mxu0 0
    %3218 = vmatpush1.bf16.msra.mxu0 0
    %3219 = vmatprep.subr.bf16.mxu0 0
    %3220 = vmatpush1.bf16.msra.mxu0 0
    %3221 = vmatprep.subr.bf16.mxu0 0
    %3222 = vmatpush1.bf16.msra.mxu0 0
    %3223 = vmatprep.mubr.bf16.mxu0 0
    %3224 = vmatmul.mubr.bf16.gmra.mrb[0].mxu0 %v3102
    %v3225 = vpop.f32.mrb[0].mxu0
    %v3226 = vadd.f32 0.0, %v3225
    %v3227 = vpop.f32.mrb[0].mxu0
    %v3228 = vadd.f32 0.0, %v3227
    %v3229 = vpop.f32.mrb[0].mxu0
    %v3230 = vpop.f32.mrb[0].mxu0
    %3231 = vdwg.mxu0
    %3232 = vmatprep.subr.bf16.mxu0 %v2701
    %3233 = vmatpush1.bf16.msra.mxu0 %v2700
    %3234 = vmatprep.subr.bf16.mxu0 %v2705
    %3235 = vmatpush1.bf16.msra.mxu0 %v2704
    %3236 = vmatprep.subr.bf16.mxu0 %v2709
    %3237 = vmatpush1.bf16.msra.mxu0 %v2708
    %3238 = vmatprep.subr.bf16.mxu0 %v2713
    %3239 = vmatpush1.bf16.msra.mxu0 %v2712
    %3240 = vmatprep.subr.bf16.mxu0 %v2717
    %3241 = vmatpush1.bf16.msra.mxu0 %v2716
    %3242 = vmatprep.subr.bf16.mxu0 %v2721
    %3243 = vmatpush1.bf16.msra.mxu0 %v2720
    %3244 = vmatprep.subr.bf16.mxu0 %v2725
    %3245 = vmatpush1.bf16.msra.mxu0 %v2724
    %3246 = vmatprep.subr.bf16.mxu0 %v2729
    %3247 = vmatpush1.bf16.msra.mxu0 %v2728
    %3248 = vmatprep.subr.bf16.mxu0 0
    %3249 = vmatpush1.bf16.msra.mxu0 0
    %3250 = vmatprep.subr.bf16.mxu0 0
    %3251 = vmatpush1.bf16.msra.mxu0 0
    %3252 = vmatprep.subr.bf16.mxu0 0
    %3253 = vmatpush1.bf16.msra.mxu0 0
    %3254 = vmatprep.subr.bf16.mxu0 0
    %3255 = vmatpush1.bf16.msra.mxu0 0
    %3256 = vmatprep.subr.bf16.mxu0 0
    %3257 = vmatpush1.bf16.msra.mxu0 0
    %3258 = vmatprep.subr.bf16.mxu0 0
    %3259 = vmatpush1.bf16.msra.mxu0 0
    %3260 = vmatprep.subr.bf16.mxu0 0
    %3261 = vmatpush1.bf16.msra.mxu0 0
    %3262 = vmatprep.subr.bf16.mxu0 0
    %3263 = vmatpush1.bf16.msra.mxu0 0
    %3264 = vmatprep.mubr.bf16.mxu0 0
    %3265 = vmatmul.mubr.bf16.gmra.mrb[0].mxu0 %v3149
    %v3266 = vpop.f32.mrb[0].mxu0
    %v3267 = vadd.f32 %v3185, %v3266
    %v3268 = vpop.f32.mrb[0].mxu0
    %v3269 = vadd.f32 %v3187, %v3268
    %v3270 = vpop.f32.mrb[0].mxu0
    %v3271 = vpop.f32.mrb[0].mxu0
    %3272 = vdwg.mxu0
    %3273 = vmatprep.subr.bf16.mxu0 %v2703
    %3274 = vmatpush1.bf16.msra.mxu0 %v2702
    %3275 = vmatprep.subr.bf16.mxu0 %v2707
    %3276 = vmatpush1.bf16.msra.mxu0 %v2706
    %3277 = vmatprep.subr.bf16.mxu0 %v2711
    %3278 = vmatpush1.bf16.msra.mxu0 %v2710
    %3279 = vmatprep.subr.bf16.mxu0 %v2715
    %3280 = vmatpush1.bf16.msra.mxu0 %v2714
    %3281 = vmatprep.subr.bf16.mxu0 %v2719
    %3282 = vmatpush1.bf16.msra.mxu0 %v2718
    %3283 = vmatprep.subr.bf16.mxu0 %v2723
    %3284 = vmatpush1.bf16.msra.mxu0 %v2722
    %3285 = vmatprep.subr.bf16.mxu0 %v2727
    %3286 = vmatpush1.bf16.msra.mxu0 %v2726
    %3287 = vmatprep.subr.bf16.mxu0 %v2731
    %3288 = vmatpush1.bf16.msra.mxu0 %v2730
    %3289 = vmatprep.subr.bf16.mxu0 0
    %3290 = vmatpush1.bf16.msra.mxu0 0
    %3291 = vmatprep.subr.bf16.mxu0 0
    %3292 = vmatpush1.bf16.msra.mxu0 0
    %3293 = vmatprep.subr.bf16.mxu0 0
    %3294 = vmatpush1.bf16.msra.mxu0 0
    %3295 = vmatprep.subr.bf16.mxu0 0
    %3296 = vmatpush1.bf16.msra.mxu0 0
    %3297 = vmatprep.subr.bf16.mxu0 0
    %3298 = vmatpush1.bf16.msra.mxu0 0
    %3299 = vmatprep.subr.bf16.mxu0 0
    %3300 = vmatpush1.bf16.msra.mxu0 0
    %3301 = vmatprep.subr.bf16.mxu0 0
    %3302 = vmatpush1.bf16.msra.mxu0 0
    %3303 = vmatprep.subr.bf16.mxu0 0
    %3304 = vmatpush1.bf16.msra.mxu0 0
    %3305 = vmatprep.mubr.bf16.mxu0 0
    %3306 = vmatmul.mubr.bf16.gmra.mrb[0].mxu0 %v3149
    %v3307 = vpop.f32.mrb[0].mxu0
    %v3308 = vadd.f32 %v3226, %v3307
    %v3309 = vpop.f32.mrb[0].mxu0
    %v3310 = vadd.f32 %v3228, %v3309
    %v3311 = vpop.f32.mrb[0].mxu0
    %v3312 = vpop.f32.mrb[0].mxu0
    %3313 = vdwg.mxu0
    %v3314 = vadd.f32 %v3267, %v1988
    %v3315 = vadd.f32 %v3269, %v1992
    %v3316 = vadd.f32 %v3308, %v1996
    %v3317 = vadd.f32 %v3310, %v2000
    %v3318 = vmul.f32 %v3314, 0.5
    %v3319 = vtanh.pop %v3318
    %v3320 = vmul.f32 %v3319, 0.5
    %v3321 = vadd.f32 %v3320, 0.5
    %v3322 = vmul.f32 %v3315, 0.5
    %v3323 = vtanh.pop %v3322
    %v3324 = vmul.f32 %v3323, 0.5
    %v3325 = vadd.f32 %v3324, 0.5
    %v3326 = vtanh.pop %v3316
    %v3327 = vmul.f32 %v3317, 0.5
    %v3328 = vtanh.pop %v3327
    %v3329 = vmul.f32 %v3328, 0.5
    %v3330 = vadd.f32 %v3329, 0.5
    %v3331 = vmul.f32 %v3325, %v3099
    %v3332 = vmul.f32 %v3321, %v3326
    %v3333 = vadd.f32 %v3331, %v3332
    %v3334 = vtanh.pop %v3333
    %v3335 = vmul.f32 %v3330, %v3334
    %v3336 = vpack.c.bf16 %v3335, %v3335
    %3337 = vmatprep.subr.bf16.mxu0 0
    %3338 = vmatpush1.bf16.msra.mxu0 %v2459
    %3339 = vmatprep.subr.bf16.mxu0 0
    %3340 = vmatpush1.bf16.msra.mxu0 %v2460
    %3341 = vmatprep.subr.bf16.mxu0 0
    %3342 = vmatpush1.bf16.msra.mxu0 %v2461
    %3343 = vmatprep.subr.bf16.mxu0 0
    %3344 = vmatpush1.bf16.msra.mxu0 %v2462
    %3345 = vmatprep.subr.bf16.mxu0 0
    %3346 = vmatpush1.bf16.msra.mxu0 %v2463
    %3347 = vmatprep.subr.bf16.mxu0 0
    %3348 = vmatpush1.bf16.msra.mxu0 %v2464
    %3349 = vmatprep.subr.bf16.mxu0 0
    %3350 = vmatpush1.bf16.msra.mxu0 %v2465
    %3351 = vmatprep.subr.bf16.mxu0 0
    %3352 = vmatpush1.bf16.msra.mxu0 %v2466
    %3353 = vmatprep.subr.bf16.mxu0 0
    %3354 = vmatpush1.bf16.msra.mxu0 0
    %3355 = vmatprep.subr.bf16.mxu0 0
    %3356 = vmatpush1.bf16.msra.mxu0 0
    %3357 = vmatprep.subr.bf16.mxu0 0
    %3358 = vmatpush1.bf16.msra.mxu0 0
    %3359 = vmatprep.subr.bf16.mxu0 0
    %3360 = vmatpush1.bf16.msra.mxu0 0
    %3361 = vmatprep.subr.bf16.mxu0 0
    %3362 = vmatpush1.bf16.msra.mxu0 0
    %3363 = vmatprep.subr.bf16.mxu0 0
    %3364 = vmatpush1.bf16.msra.mxu0 0
    %3365 = vmatprep.subr.bf16.mxu0 0
    %3366 = vmatpush1.bf16.msra.mxu0 0
    %3367 = vmatprep.subr.bf16.mxu0 0
    %3368 = vmatpush1.bf16.msra.mxu0 0
    %3369 = vmatprep.mubr.bf16.mxu0 0
    %3370 = vmatmul.mubr.bf16.gmra.mrb[0].mxu0 %v3336
    %v3371 = vpop.f32.mrb[0].mxu0
    %v3372 = vadd.f32 %v2026, %v3371
    %v3373 = vpop.f32.mrb[0].mxu0
    %v3374 = vpop.f32.mrb[0].mxu0
    %v3375 = vpop.f32.mrb[0].mxu0
    %3376 = vdwg.mxu0
    %3377 = vst [vmem:[%s15 + $0x18] sm:$0xff] %v3372
    %3378 = vmax.xlane.f32.xlu0 %v3372
    %v3379 = vpop.xlane.xlu0 %3378
    %vm3380 = vcmp.eq.f32.partialorder %v3372, %v3379
    %v3381 = vsel %vm3380, 1, 0
    %v3382 = vcvt.s32.f32 %v3381
    %v3383 = vpack.c.bf16 %v3382, %v3382
    %3384 = vmatprep.subr.bf16.mxu0 %v2134
    %3385 = vmatpush1.bf16.msra.mxu0 %v2133
    %3386 = vmatprep.subr.bf16.mxu0 %v2138
    %3387 = vmatpush1.bf16.msra.mxu0 %v2137
    %3388 = vmatprep.subr.bf16.mxu0 %v2142
    %3389 = vmatpush1.bf16.msra.mxu0 %v2141
    %3390 = vmatprep.subr.bf16.mxu0 %v2146
    %3391 = vmatpush1.bf16.msra.mxu0 %v2145
    %3392 = vmatprep.subr.bf16.mxu0 %v2150
    %3393 = vmatpush1.bf16.msra.mxu0 %v2149
    %3394 = vmatprep.subr.bf16.mxu0 %v2154
    %3395 = vmatpush1.bf16.msra.mxu0 %v2153
    %3396 = vmatprep.subr.bf16.mxu0 %v2158
    %3397 = vmatpush1.bf16.msra.mxu0 %v2157
    %3398 = vmatprep.subr.bf16.mxu0 %v2162
    %3399 = vmatpush1.bf16.msra.mxu0 %v2161
    %3400 = vmatprep.subr.bf16.mxu0 0
    %3401 = vmatpush1.bf16.msra.mxu0 0
    %3402 = vmatprep.subr.bf16.mxu0 0
    %3403 = vmatpush1.bf16.msra.mxu0 0
    %3404 = vmatprep.subr.bf16.mxu0 0
    %3405 = vmatpush1.bf16.msra.mxu0 0
    %3406 = vmatprep.subr.bf16.mxu0 0
    %3407 = vmatpush1.bf16.msra.mxu0 0
    %3408 = vmatprep.subr.bf16.mxu0 0
    %3409 = vmatpush1.bf16.msra.mxu0 0
    %3410 = vmatprep.subr.bf16.mxu0 0
    %3411 = vmatpush1.bf16.msra.mxu0 0
    %3412 = vmatprep.subr.bf16.mxu0 0
    %3413 = vmatpush1.bf16.msra.mxu0 0
    %3414 = vmatprep.subr.bf16.mxu0 0
    %3415 = vmatpush1.bf16.msra.mxu0 0
    %3416 = vmatprep.mubr.bf16.mxu0 0
    %3417 = vmatmul.mubr.bf16.gmra.mrb[0].mxu0 %v3336
    %v3418 = vpop.f32.mrb[0].mxu0
    %v3419 = vadd.f32 0.0, %v3418
    %v3420 = vpop.f32.mrb[0].mxu0
    %v3421 = vadd.f32 0.0, %v3420
    %v3422 = vpop.f32.mrb[0].mxu0
    %v3423 = vpop.f32.mrb[0].mxu0
    %3424 = vdwg.mxu0
    %3425 = vmatprep.subr.bf16.mxu0 %v2136
    %3426 = vmatpush1.bf16.msra.mxu0 %v2135
    %3427 = vmatprep.subr.bf16.mxu0 %v2140
    %3428 = vmatpush1.bf16.msra.mxu0 %v2139
    %3429 = vmatprep.subr.bf16.mxu0 %v2144
    %3430 = vmatpush1.bf16.msra.mxu0 %v2143
    %3431 = vmatprep.subr.bf16.mxu0 %v2148
    %3432 = vmatpush1.bf16.msra.mxu0 %v2147
    %3433 = vmatprep.subr.bf16.mxu0 %v2152
    %3434 = vmatpush1.bf16.msra.mxu0 %v2151
    %3435 = vmatprep.subr.bf16.mxu0 %v2156
    %3436 = vmatpush1.bf16.msra.mxu0 %v2155
    %3437 = vmatprep.subr.bf16.mxu0 %v2160
    %3438 = vmatpush1.bf16.msra.mxu0 %v2159
    %3439 = vmatprep.subr.bf16.mxu0 %v2164
    %3440 = vmatpush1.bf16.msra.mxu0 %v2163
    %3441 = vmatprep.subr.bf16.mxu0 0
    %3442 = vmatpush1.bf16.msra.mxu0 0
    %3443 = vmatprep.subr.bf16.mxu0 0
    %3444 = vmatpush1.bf16.msra.mxu0 0
    %3445 = vmatprep.subr.bf16.mxu0 0
    %3446 = vmatpush1.bf16.msra.mxu0 0
    %3447 = vmatprep.subr.bf16.mxu0 0
    %3448 = vmatpush1.bf16.msra.mxu0 0
    %3449 = vmatprep.subr.bf16.mxu0 0
    %3450 = vmatpush1.bf16.msra.mxu0 0
    %3451 = vmatprep.subr.bf16.mxu0 0
    %3452 = vmatpush1.bf16.msra.mxu0 0
    %3453 = vmatprep.subr.bf16.mxu0 0
    %3454 = vmatpush1.bf16.msra.mxu0 0
    %3455 = vmatprep.subr.bf16.mxu0 0
    %3456 = vmatpush1.bf16.msra.mxu0 0
    %3457 = vmatprep.mubr.bf16.mxu0 0
    %3458 = vmatmul.mubr.bf16.gmra.mrb[0].mxu0 %v3336
    %v3459 = vpop.f32.mrb[0].mxu0
    %v3460 = vadd.f32 0.0, %v3459
    %v3461 = vpop.f32.mrb[0].mxu0
    %v3462 = vadd.f32 0.0, %v3461
    %v3463 = vpop.f32.mrb[0].mxu0
    %v3464 = vpop.f32.mrb[0].mxu0
    %3465 = vdwg.mxu0
    %3466 = vmatprep.subr.bf16.mxu0 %v2701
    %3467 = vmatpush1.bf16.msra.mxu0 %v2700
    %3468 = vmatprep.subr.bf16.mxu0 %v2705
    %3469 = vmatpush1.bf16.msra.mxu0 %v2704
    %3470 = vmatprep.subr.bf16.mxu0 %v2709
    %3471 = vmatpush1.bf16.msra.mxu0 %v2708
    %3472 = vmatprep.subr.bf16.mxu0 %v2713
    %3473 = vmatpush1.bf16.msra.mxu0 %v2712
    %3474 = vmatprep.subr.bf16.mxu0 %v2717
    %3475 = vmatpush1.bf16.msra.mxu0 %v2716
    %3476 = vmatprep.subr.bf16.mxu0 %v2721
    %3477 = vmatpush1.bf16.msra.mxu0 %v2720
    %3478 = vmatprep.subr.bf16.mxu0 %v2725
    %3479 = vmatpush1.bf16.msra.mxu0 %v2724
    %3480 = vmatprep.subr.bf16.mxu0 %v2729
    %3481 = vmatpush1.bf16.msra.mxu0 %v2728
    %3482 = vmatprep.subr.bf16.mxu0 0
    %3483 = vmatpush1.bf16.msra.mxu0 0
    %3484 = vmatprep.subr.bf16.mxu0 0
    %3485 = vmatpush1.bf16.msra.mxu0 0
    %3486 = vmatprep.subr.bf16.mxu0 0
    %3487 = vmatpush1.bf16.msra.mxu0 0
    %3488 = vmatprep.subr.bf16.mxu0 0
    %3489 = vmatpush1.bf16.msra.mxu0 0
    %3490 = vmatprep.subr.bf16.mxu0 0
    %3491 = vmatpush1.bf16.msra.mxu0 0
    %3492 = vmatprep.subr.bf16.mxu0 0
    %3493 = vmatpush1.bf16.msra.mxu0 0
    %3494 = vmatprep.subr.bf16.mxu0 0
    %3495 = vmatpush1.bf16.msra.mxu0 0
    %3496 = vmatprep.subr.bf16.mxu0 0
    %3497 = vmatpush1.bf16.msra.mxu0 0
    %3498 = vmatprep.mubr.bf16.mxu0 0
    %3499 = vmatmul.mubr.bf16.gmra.mrb[0].mxu0 %v3383
    %v3500 = vpop.f32.mrb[0].mxu0
    %v3501 = vadd.f32 %v3419, %v3500
    %v3502 = vpop.f32.mrb[0].mxu0
    %v3503 = vadd.f32 %v3421, %v3502
    %v3504 = vpop.f32.mrb[0].mxu0
    %v3505 = vpop.f32.mrb[0].mxu0
    %3506 = vdwg.mxu0
    %3507 = vmatprep.subr.bf16.mxu0 %v2703
    %3508 = vmatpush1.bf16.msra.mxu0 %v2702
    %3509 = vmatprep.subr.bf16.mxu0 %v2707
    %3510 = vmatpush1.bf16.msra.mxu0 %v2706
    %3511 = vmatprep.subr.bf16.mxu0 %v2711
    %3512 = vmatpush1.bf16.msra.mxu0 %v2710
    %3513 = vmatprep.subr.bf16.mxu0 %v2715
    %3514 = vmatpush1.bf16.msra.mxu0 %v2714
    %3515 = vmatprep.subr.bf16.mxu0 %v2719
    %3516 = vmatpush1.bf16.msra.mxu0 %v2718
    %3517 = vmatprep.subr.bf16.mxu0 %v2723
    %3518 = vmatpush1.bf16.msra.mxu0 %v2722
    %3519 = vmatprep.subr.bf16.mxu0 %v2727
    %3520 = vmatpush1.bf16.msra.mxu0 %v2726
    %3521 = vmatprep.subr.bf16.mxu0 %v2731
    %3522 = vmatpush1.bf16.msra.mxu0 %v2730
    %3523 = vmatprep.subr.bf16.mxu0 0
    %3524 = vmatpush1.bf16.msra.mxu0 0
    %3525 = vmatprep.subr.bf16.mxu0 0
    %3526 = vmatpush1.bf16.msra.mxu0 0
    %3527 = vmatprep.subr.bf16.mxu0 0
    %3528 = vmatpush1.bf16.msra.mxu0 0
    %3529 = vmatprep.subr.bf16.mxu0 0
    %3530 = vmatpush1.bf16.msra.mxu0 0
    %3531 = vmatprep.subr.bf16.mxu0 0
    %3532 = vmatpush1.bf16.msra.mxu0 0
    %3533 = vmatprep.subr.bf16.mxu0 0
    %3534 = vmatpush1.bf16.msra.mxu0 0
    %3535 = vmatprep.subr.bf16.mxu0 0
    %3536 = vmatpush1.bf16.msra.mxu0 0
    %3537 = vmatprep.subr.bf16.mxu0 0
    %3538 = vmatpush1.bf16.msra.mxu0 0
    %3539 = vmatprep.mubr.bf16.mxu0 0
    %3540 = vmatmul.mubr.bf16.gmra.mrb[0].mxu0 %v3383
    %v3541 = vpop.f32.mrb[0].mxu0
    %v3542 = vadd.f32 %v3460, %v3541
    %v3543 = vpop.f32.mrb[0].mxu0
    %v3544 = vadd.f32 %v3462, %v3543
    %v3545 = vpop.f32.mrb[0].mxu0
    %v3546 = vpop.f32.mrb[0].mxu0
    %3547 = vdwg.mxu0
    %v3548 = vadd.f32 %v3501, %v1988
    %v3549 = vadd.f32 %v3503, %v1992
    %v3550 = vadd.f32 %v3542, %v1996
    %v3551 = vadd.f32 %v3544, %v2000
    %v3552 = vmul.f32 %v3548, 0.5
    %v3553 = vtanh.pop %v3552
    %v3554 = vmul.f32 %v3553, 0.5
    %v3555 = vadd.f32 %v3554, 0.5
    %v3556 = vmul.f32 %v3549, 0.5
    %v3557 = vtanh.pop %v3556
    %v3558 = vmul.f32 %v3557, 0.5
    %v3559 = vadd.f32 %v3558, 0.5
    %v3560 = vtanh.pop %v3550
    %v3561 = vmul.f32 %v3551, 0.5
    %v3562 = vtanh.pop %v3561
    %v3563 = vmul.f32 %v3562, 0.5
    %v3564 = vadd.f32 %v3563, 0.5
    %v3565 = vmul.f32 %v3559, %v3333
    %v3566 = vmul.f32 %v3555, %v3560
    %v3567 = vadd.f32 %v3565, %v3566
    %v3568 = vtanh.pop %v3567
    %v3569 = vmul.f32 %v3564, %v3568
    %v3570 = vpack.c.bf16 %v3569, %v3569
    %3571 = vmatprep.subr.bf16.mxu0 0
    %3572 = vmatpush1.bf16.msra.mxu0 %v2459
    %3573 = vmatprep.subr.bf16.mxu0 0
    %3574 = vmatpush1.bf16.msra.mxu0 %v2460
    %3575 = vmatprep.subr.bf16.mxu0 0
    %3576 = vmatpush1.bf16.msra.mxu0 %v2461
    %3577 = vmatprep.subr.bf16.mxu0 0
    %3578 = vmatpush1.bf16.msra.mxu0 %v2462
    %3579 = vmatprep.subr.bf16.mxu0 0
    %3580 = vmatpush1.bf16.msra.mxu0 %v2463
    %3581 = vmatprep.subr.bf16.mxu0 0
    %3582 = vmatpush1.bf16.msra.mxu0 %v2464
    %3583 = vmatprep.subr.bf16.mxu0 0
    %3584 = vmatpush1.bf16.msra.mxu0 %v2465
    %3585 = vmatprep.subr.bf16.mxu0 0
    %3586 = vmatpush1.bf16.msra.mxu0 %v2466
    %3587 = vmatprep.subr.bf16.mxu0 0
    %3588 = vmatpush1.bf16.msra.mxu0 0
    %3589 = vmatprep.subr.bf16.mxu0 0
    %3590 = vmatpush1.bf16.msra.mxu0 0
    %3591 = vmatprep.subr.bf16.mxu0 0
    %3592 = vmatpush1.bf16.msra.mxu0 0
    %3593 = vmatprep.subr.bf16.mxu0 0
    %3594 = vmatpush1.bf16.msra.mxu0 0
    %3595 = vmatprep.subr.bf16.mxu0 0
    %3596 = vmatpush1.bf16.msra.mxu0 0
    %3597 = vmatprep.subr.bf16.mxu0 0
    %3598 = vmatpush1.bf16.msra.mxu0 0
    %3599 = vmatprep.subr.bf16.mxu0 0
    %3600 = vmatpush1.bf16.msra.mxu0 0
    %3601 = vmatprep.subr.bf16.mxu0 0
    %3602 = vmatpush1.bf16.msra.mxu0 0
    %3603 = vmatprep.mubr.bf16.mxu0 0
    %3604 = vmatmul.mubr.bf16.gmra.mrb[0].mxu0 %v3570
    %v3605 = vpop.f32.mrb[0].mxu0
    %v3606 = vadd.f32 %v2026, %v3605
    %v3607 = vpop.f32.mrb[0].mxu0
    %v3608 = vpop.f32.mrb[0].mxu0
    %v3609 = vpop.f32.mrb[0].mxu0
    %3610 = vdwg.mxu0
    %3611 = vst [vmem:[%s15 + $0x20] sm:$0xff] %v3606
    %3612 = vmax.xlane.f32.xlu0 %v3606
    %v3613 = vpop.xlane.xlu0 %3612
    %vm3614 = vcmp.eq.f32.partialorder %v3606, %v3613
    %v3615 = vsel %vm3614, 1, 0
    %v3616 = vcvt.s32.f32 %v3615
    %v3617 = vpack.c.bf16 %v3616, %v3616
    %3618 = vmatprep.subr.bf16.mxu0 %v2134
    %3619 = vmatpush1.bf16.msra.mxu0 %v2133
    %3620 = vmatprep.subr.bf16.mxu0 %v2138
    %3621 = vmatpush1.bf16.msra.mxu0 %v2137
    %3622 = vmatprep.subr.bf16.mxu0 %v2142
    %3623 = vmatpush1.bf16.msra.mxu0 %v2141
    %3624 = vmatprep.subr.bf16.mxu0 %v2146
    %3625 = vmatpush1.bf16.msra.mxu0 %v2145
    %3626 = vmatprep.subr.bf16.mxu0 %v2150
    %3627 = vmatpush1.bf16.msra.mxu0 %v2149
    %3628 = vmatprep.subr.bf16.mxu0 %v2154
    %3629 = vmatpush1.bf16.msra.mxu0 %v2153
    %3630 = vmatprep.subr.bf16.mxu0 %v2158
    %3631 = vmatpush1.bf16.msra.mxu0 %v2157
    %3632 = vmatprep.subr.bf16.mxu0 %v2162
    %3633 = vmatpush1.bf16.msra.mxu0 %v2161
    %3634 = vmatprep.subr.bf16.mxu0 0
    %3635 = vmatpush1.bf16.msra.mxu0 0
    %3636 = vmatprep.subr.bf16.mxu0 0
    %3637 = vmatpush1.bf16.msra.mxu0 0
    %3638 = vmatprep.subr.bf16.mxu0 0
    %3639 = vmatpush1.bf16.msra.mxu0 0
    %3640 = vmatprep.subr.bf16.mxu0 0
    %3641 = vmatpush1.bf16.msra.mxu0 0
    %3642 = vmatprep.subr.bf16.mxu0 0
    %3643 = vmatpush1.bf16.msra.mxu0 0
    %3644 = vmatprep.subr.bf16.mxu0 0
    %3645 = vmatpush1.bf16.msra.mxu0 0
    %3646 = vmatprep.subr.bf16.mxu0 0
    %3647 = vmatpush1.bf16.msra.mxu0 0
    %3648 = vmatprep.subr.bf16.mxu0 0
    %3649 = vmatpush1.bf16.msra.mxu0 0
    %3650 = vmatprep.mubr.bf16.mxu0 0
    %3651 = vmatmul.mubr.bf16.gmra.mrb[0].mxu0 %v3570
    %v3652 = vpop.f32.mrb[0].mxu0
    %v3653 = vadd.f32 0.0, %v3652
    %v3654 = vpop.f32.mrb[0].mxu0
    %v3655 = vadd.f32 0.0, %v3654
    %v3656 = vpop.f32.mrb[0].mxu0
    %v3657 = vpop.f32.mrb[0].mxu0
    %3658 = vdwg.mxu0
    %3659 = vmatprep.subr.bf16.mxu0 %v2136
    %3660 = vmatpush1.bf16.msra.mxu0 %v2135
    %3661 = vmatprep.subr.bf16.mxu0 %v2140
    %3662 = vmatpush1.bf16.msra.mxu0 %v2139
    %3663 = vmatprep.subr.bf16.mxu0 %v2144
    %3664 = vmatpush1.bf16.msra.mxu0 %v2143
    %3665 = vmatprep.subr.bf16.mxu0 %v2148
    %3666 = vmatpush1.bf16.msra.mxu0 %v2147
    %3667 = vmatprep.subr.bf16.mxu0 %v2152
    %3668 = vmatpush1.bf16.msra.mxu0 %v2151
    %3669 = vmatprep.subr.bf16.mxu0 %v2156
    %3670 = vmatpush1.bf16.msra.mxu0 %v2155
    %3671 = vmatprep.subr.bf16.mxu0 %v2160
    %3672 = vmatpush1.bf16.msra.mxu0 %v2159
    %3673 = vmatprep.subr.bf16.mxu0 %v2164
    %3674 = vmatpush1.bf16.msra.mxu0 %v2163
    %3675 = vmatprep.subr.bf16.mxu0 0
    %3676 = vmatpush1.bf16.msra.mxu0 0
    %3677 = vmatprep.subr.bf16.mxu0 0
    %3678 = vmatpush1.bf16.msra.mxu0 0
    %3679 = vmatprep.subr.bf16.mxu0 0
    %3680 = vmatpush1.bf16.msra.mxu0 0
    %3681 = vmatprep.subr.bf16.mxu0 0
    %3682 = vmatpush1.bf16.msra.mxu0 0
    %3683 = vmatprep.subr.bf16.mxu0 0
    %3684 = vmatpush1.bf16.msra.mxu0 0
    %3685 = vmatprep.subr.bf16.mxu0 0
    %3686 = vmatpush1.bf16.msra.mxu0 0
    %3687 = vmatprep.subr.bf16.mxu0 0
    %3688 = vmatpush1.bf16.msra.mxu0 0
    %3689 = vmatprep.subr.bf16.mxu0 0
    %3690 = vmatpush1.bf16.msra.mxu0 0
    %3691 = vmatprep.mubr.bf16.mxu0 0
    %3692 = vmatmul.mubr.bf16.gmra.mrb[0].mxu0 %v3570
    %v3693 = vpop.f32.mrb[0].mxu0
    %v3694 = vadd.f32 0.0, %v3693
    %v3695 = vpop.f32.mrb[0].mxu0
    %v3696 = vadd.f32 0.0, %v3695
    %v3697 = vpop.f32.mrb[0].mxu0
    %v3698 = vpop.f32.mrb[0].mxu0
    %3699 = vdwg.mxu0
    %3700 = vmatprep.subr.bf16.mxu0 %v2701
    %3701 = vmatpush1.bf16.msra.mxu0 %v2700
    %3702 = vmatprep.subr.bf16.mxu0 %v2705
    %3703 = vmatpush1.bf16.msra.mxu0 %v2704
    %3704 = vmatprep.subr.bf16.mxu0 %v2709
    %3705 = vmatpush1.bf16.msra.mxu0 %v2708
    %3706 = vmatprep.subr.bf16.mxu0 %v2713
    %3707 = vmatpush1.bf16.msra.mxu0 %v2712
    %3708 = vmatprep.subr.bf16.mxu0 %v2717
    %3709 = vmatpush1.bf16.msra.mxu0 %v2716
    %3710 = vmatprep.subr.bf16.mxu0 %v2721
    %3711 = vmatpush1.bf16.msra.mxu0 %v2720
    %3712 = vmatprep.subr.bf16.mxu0 %v2725
    %3713 = vmatpush1.bf16.msra.mxu0 %v2724
    %3714 = vmatprep.subr.bf16.mxu0 %v2729
    %3715 = vmatpush1.bf16.msra.mxu0 %v2728
    %3716 = vmatprep.subr.bf16.mxu0 0
    %3717 = vmatpush1.bf16.msra.mxu0 0
    %3718 = vmatprep.subr.bf16.mxu0 0
    %3719 = vmatpush1.bf16.msra.mxu0 0
    %3720 = vmatprep.subr.bf16.mxu0 0
    %3721 = vmatpush1.bf16.msra.mxu0 0
    %3722 = vmatprep.subr.bf16.mxu0 0
    %3723 = vmatpush1.bf16.msra.mxu0 0
    %3724 = vmatprep.subr.bf16.mxu0 0
    %3725 = vmatpush1.bf16.msra.mxu0 0
    %3726 = vmatprep.subr.bf16.mxu0 0
    %3727 = vmatpush1.bf16.msra.mxu0 0
    %3728 = vmatprep.subr.bf16.mxu0 0
    %3729 = vmatpush1.bf16.msra.mxu0 0
    %3730 = vmatprep.subr.bf16.mxu0 0
    %3731 = vmatpush1.bf16.msra.mxu0 0
    %3732 = vmatprep.mubr.bf16.mxu0 0
    %3733 = vmatmul.mubr.bf16.gmra.mrb[0].mxu0 %v3617
    %v3734 = vpop.f32.mrb[0].mxu0
    %v3735 = vadd.f32 %v3653, %v3734
    %v3736 = vpop.f32.mrb[0].mxu0
    %v3737 = vadd.f32 %v3655, %v3736
    %v3738 = vpop.f32.mrb[0].mxu0
    %v3739 = vpop.f32.mrb[0].mxu0
    %3740 = vdwg.mxu0
    %3741 = vmatprep.subr.bf16.mxu0 %v2703
    %3742 = vmatpush1.bf16.msra.mxu0 %v2702
    %3743 = vmatprep.subr.bf16.mxu0 %v2707
    %3744 = vmatpush1.bf16.msra.mxu0 %v2706
    %3745 = vmatprep.subr.bf16.mxu0 %v2711
    %3746 = vmatpush1.bf16.msra.mxu0 %v2710
    %3747 = vmatprep.subr.bf16.mxu0 %v2715
    %3748 = vmatpush1.bf16.msra.mxu0 %v2714
    %3749 = vmatprep.subr.bf16.mxu0 %v2719
    %3750 = vmatpush1.bf16.msra.mxu0 %v2718
    %3751 = vmatprep.subr.bf16.mxu0 %v2723
    %3752 = vmatpush1.bf16.msra.mxu0 %v2722
    %3753 = vmatprep.subr.bf16.mxu0 %v2727
    %3754 = vmatpush1.bf16.msra.mxu0 %v2726
    %3755 = vmatprep.subr.bf16.mxu0 %v2731
    %3756 = vmatpush1.bf16.msra.mxu0 %v2730
    %3757 = vmatprep.subr.bf16.mxu0 0
    %3758 = vmatpush1.bf16.msra.mxu0 0
    %3759 = vmatprep.subr.bf16.mxu0 0
    %3760 = vmatpush1.bf16.msra.mxu0 0
    %3761 = vmatprep.subr.bf16.mxu0 0
    %3762 = vmatpush1.bf16.msra.mxu0 0
    %3763 = vmatprep.subr.bf16.mxu0 0
    %3764 = vmatpush1.bf16.msra.mxu0 0
    %3765 = vmatprep.subr.bf16.mxu0 0
    %3766 = vmatpush1.bf16.msra.mxu0 0
    %3767 = vmatprep.subr.bf16.mxu0 0
    %3768 = vmatpush1.bf16.msra.mxu0 0
    %3769 = vmatprep.subr.bf16.mxu0 0
    %3770 = vmatpush1.bf16.msra.mxu0 0
    %3771 = vmatprep.subr.bf16.mxu0 0
    %3772 = vmatpush1.bf16.msra.mxu0 0
    %3773 = vmatprep.mubr.bf16.mxu0 0
    %3774 = vmatmul.mubr.bf16.gmra.mrb[0].mxu0 %v3617
    %v3775 = vpop.f32.mrb[0].mxu0
    %v3776 = vadd.f32 %v3694, %v3775
    %v3777 = vpop.f32.mrb[0].mxu0
    %v3778 = vadd.f32 %v3696, %v3777
    %v3779 = vpop.f32.mrb[0].mxu0
    %v3780 = vpop.f32.mrb[0].mxu0
    %3781 = vdwg.mxu0
    %v3782 = vadd.f32 %v3735, %v1988
    %v3783 = vadd.f32 %v3737, %v1992
    %v3784 = vadd.f32 %v3776, %v1996
    %v3785 = vadd.f32 %v3778, %v2000
    %v3786 = vmul.f32 %v3782, 0.5
    %v3787 = vtanh.pop %v3786
    %v3788 = vmul.f32 %v3787, 0.5
    %v3789 = vadd.f32 %v3788, 0.5
    %v3790 = vmul.f32 %v3783, 0.5
    %v3791 = vtanh.pop %v3790
    %v3792 = vmul.f32 %v3791, 0.5
    %v3793 = vadd.f32 %v3792, 0.5
    %v3794 = vtanh.pop %v3784
    %v3795 = vmul.f32 %v3785, 0.5
    %v3796 = vtanh.pop %v3795
    %v3797 = vmul.f32 %v3796, 0.5
    %v3798 = vadd.f32 %v3797, 0.5
    %v3799 = vmul.f32 %v3793, %v3567
    %v3800 = vmul.f32 %v3789, %v3794
    %v3801 = vadd.f32 %v3799, %v3800
    %v3802 = vtanh.pop %v3801
    %v3803 = vmul.f32 %v3798, %v3802
    %v3804 = vpack.c.bf16 %v3803, %v3803
    %3805 = vmatprep.subr.bf16.mxu0 0
    %3806 = vmatpush1.bf16.msra.mxu0 %v2459
    %3807 = vmatprep.subr.bf16.mxu0 0
    %3808 = vmatpush1.bf16.msra.mxu0 %v2460
    %3809 = vmatprep.subr.bf16.mxu0 0
    %3810 = vmatpush1.bf16.msra.mxu0 %v2461
    %3811 = vmatprep.subr.bf16.mxu0 0
    %3812 = vmatpush1.bf16.msra.mxu0 %v2462
    %3813 = vmatprep.subr.bf16.mxu0 0
    %3814 = vmatpush1.bf16.msra.mxu0 %v2463
    %3815 = vmatprep.subr.bf16.mxu0 0
    %3816 = vmatpush1.bf16.msra.mxu0 %v2464
    %3817 = vmatprep.subr.bf16.mxu0 0
    %3818 = vmatpush1.bf16.msra.mxu0 %v2465
    %3819 = vmatprep.subr.bf16.mxu0 0
    %3820 = vmatpush1.bf16.msra.mxu0 %v2466
    %3821 = vmatprep.subr.bf16.mxu0 0
    %3822 = vmatpush1.bf16.msra.mxu0 0
    %3823 = vmatprep.subr.bf16.mxu0 0
    %3824 = vmatpush1.bf16.msra.mxu0 0
    %3825 = vmatprep.subr.bf16.mxu0 0
    %3826 = vmatpush1.bf16.msra.mxu0 0
    %3827 = vmatprep.subr.bf16.mxu0 0
    %3828 = vmatpush1.bf16.msra.mxu0 0
    %3829 = vmatprep.subr.bf16.mxu0 0
    %3830 = vmatpush1.bf16.msra.mxu0 0
    %3831 = vmatprep.subr.bf16.mxu0 0
    %3832 = vmatpush1.bf16.msra.mxu0 0
    %3833 = vmatprep.subr.bf16.mxu0 0
    %3834 = vmatpush1.bf16.msra.mxu0 0
    %3835 = vmatprep.subr.bf16.mxu0 0
    %3836 = vmatpush1.bf16.msra.mxu0 0
    %3837 = vmatprep.mubr.bf16.mxu0 0
    %3838 = vmatmul.mubr.bf16.gmra.mrb[0].mxu0 %v3804
    %v3839 = vpop.f32.mrb[0].mxu0
    %v3840 = vadd.f32 %v2026, %v3839
    %v3841 = vpop.f32.mrb[0].mxu0
    %v3842 = vpop.f32.mrb[0].mxu0
    %v3843 = vpop.f32.mrb[0].mxu0
    %3844 = vdwg.mxu0
    %3845 = vst [vmem:[%s15 + $0x28] sm:$0xff] %v3840
    %3846 = vmax.xlane.f32.xlu0 %v3840
    %v3847 = vpop.xlane.xlu0 %3846
    %vm3848 = vcmp.eq.f32.partialorder %v3840, %v3847
    %v3849 = vsel %vm3848, 1, 0
    %v3850 = vcvt.s32.f32 %v3849
    %v3851 = vpack.c.bf16 %v3850, %v3850
    %3852 = vmatprep.subr.bf16.mxu0 %v2134
    %3853 = vmatpush1.bf16.msra.mxu0 %v2133
    %3854 = vmatprep.subr.bf16.mxu0 %v2138
    %3855 = vmatpush1.bf16.msra.mxu0 %v2137
    %3856 = vmatprep.subr.bf16.mxu0 %v2142
    %3857 = vmatpush1.bf16.msra.mxu0 %v2141
    %3858 = vmatprep.subr.bf16.mxu0 %v2146
    %3859 = vmatpush1.bf16.msra.mxu0 %v2145
    %3860 = vmatprep.subr.bf16.mxu0 %v2150
    %3861 = vmatpush1.bf16.msra.mxu0 %v2149
    %3862 = vmatprep.subr.bf16.mxu0 %v2154
    %3863 = vmatpush1.bf16.msra.mxu0 %v2153
    %3864 = vmatprep.subr.bf16.mxu0 %v2158
    %3865 = vmatpush1.bf16.msra.mxu0 %v2157
    %3866 = vmatprep.subr.bf16.mxu0 %v2162
    %3867 = vmatpush1.bf16.msra.mxu0 %v2161
    %3868 = vmatprep.subr.bf16.mxu0 0
    %3869 = vmatpush1.bf16.msra.mxu0 0
    %3870 = vmatprep.subr.bf16.mxu0 0
    %3871 = vmatpush1.bf16.msra.mxu0 0
    %3872 = vmatprep.subr.bf16.mxu0 0
    %3873 = vmatpush1.bf16.msra.mxu0 0
    %3874 = vmatprep.subr.bf16.mxu0 0
    %3875 = vmatpush1.bf16.msra.mxu0 0
    %3876 = vmatprep.subr.bf16.mxu0 0
    %3877 = vmatpush1.bf16.msra.mxu0 0
    %3878 = vmatprep.subr.bf16.mxu0 0
    %3879 = vmatpush1.bf16.msra.mxu0 0
    %3880 = vmatprep.subr.bf16.mxu0 0
    %3881 = vmatpush1.bf16.msra.mxu0 0
    %3882 = vmatprep.subr.bf16.mxu0 0
    %3883 = vmatpush1.bf16.msra.mxu0 0
    %3884 = vmatprep.mubr.bf16.mxu0 0
    %3885 = vmatmul.mubr.bf16.gmra.mrb[0].mxu0 %v3804
    %v3886 = vpop.f32.mrb[0].mxu0
    %v3887 = vadd.f32 0.0, %v3886
    %v3888 = vpop.f32.mrb[0].mxu0
    %v3889 = vadd.f32 0.0, %v3888
    %v3890 = vpop.f32.mrb[0].mxu0
    %v3891 = vpop.f32.mrb[0].mxu0
    %3892 = vdwg.mxu0
    %3893 = vmatprep.subr.bf16.mxu0 %v2136
    %3894 = vmatpush1.bf16.msra.mxu0 %v2135
    %3895 = vmatprep.subr.bf16.mxu0 %v2140
    %3896 = vmatpush1.bf16.msra.mxu0 %v2139
    %3897 = vmatprep.subr.bf16.mxu0 %v2144
    %3898 = vmatpush1.bf16.msra.mxu0 %v2143
    %3899 = vmatprep.subr.bf16.mxu0 %v2148
    %3900 = vmatpush1.bf16.msra.mxu0 %v2147
    %3901 = vmatprep.subr.bf16.mxu0 %v2152
    %3902 = vmatpush1.bf16.msra.mxu0 %v2151
    %3903 = vmatprep.subr.bf16.mxu0 %v2156
    %3904 = vmatpush1.bf16.msra.mxu0 %v2155
    %3905 = vmatprep.subr.bf16.mxu0 %v2160
    %3906 = vmatpush1.bf16.msra.mxu0 %v2159
    %3907 = vmatprep.subr.bf16.mxu0 %v2164
    %3908 = vmatpush1.bf16.msra.mxu0 %v2163
    %3909 = vmatprep.subr.bf16.mxu0 0
    %3910 = vmatpush1.bf16.msra.mxu0 0
    %3911 = vmatprep.subr.bf16.mxu0 0
    %3912 = vmatpush1.bf16.msra.mxu0 0
    %3913 = vmatprep.subr.bf16.mxu0 0
    %3914 = vmatpush1.bf16.msra.mxu0 0
    %3915 = vmatprep.subr.bf16.mxu0 0
    %3916 = vmatpush1.bf16.msra.mxu0 0
    %3917 = vmatprep.subr.bf16.mxu0 0
    %3918 = vmatpush1.bf16.msra.mxu0 0
    %3919 = vmatprep.subr.bf16.mxu0 0
    %3920 = vmatpush1.bf16.msra.mxu0 0
    %3921 = vmatprep.subr.bf16.mxu0 0
    %3922 = vmatpush1.bf16.msra.mxu0 0
    %3923 = vmatprep.subr.bf16.mxu0 0
    %3924 = vmatpush1.bf16.msra.mxu0 0
    %3925 = vmatprep.mubr.bf16.mxu0 0
    %3926 = vmatmul.mubr.bf16.gmra.mrb[0].mxu0 %v3804
    %v3927 = vpop.f32.mrb[0].mxu0
    %v3928 = vadd.f32 0.0, %v3927
    %v3929 = vpop.f32.mrb[0].mxu0
    %v3930 = vadd.f32 0.0, %v3929
    %v3931 = vpop.f32.mrb[0].mxu0
    %v3932 = vpop.f32.mrb[0].mxu0
    %3933 = vdwg.mxu0
    %3934 = vmatprep.subr.bf16.mxu0 %v2701
    %3935 = vmatpush1.bf16.msra.mxu0 %v2700
    %3936 = vmatprep.subr.bf16.mxu0 %v2705
    %3937 = vmatpush1.bf16.msra.mxu0 %v2704
    %3938 = vmatprep.subr.bf16.mxu0 %v2709
    %3939 = vmatpush1.bf16.msra.mxu0 %v2708
    %3940 = vmatprep.subr.bf16.mxu0 %v2713
    %3941 = vmatpush1.bf16.msra.mxu0 %v2712
    %3942 = vmatprep.subr.bf16.mxu0 %v2717
    %3943 = vmatpush1.bf16.msra.mxu0 %v2716
    %3944 = vmatprep.subr.bf16.mxu0 %v2721
    %3945 = vmatpush1.bf16.msra.mxu0 %v2720
    %3946 = vmatprep.subr.bf16.mxu0 %v2725
    %3947 = vmatpush1.bf16.msra.mxu0 %v2724
    %3948 = vmatprep.subr.bf16.mxu0 %v2729
    %3949 = vmatpush1.bf16.msra.mxu0 %v2728
    %3950 = vmatprep.subr.bf16.mxu0 0
    %3951 = vmatpush1.bf16.msra.mxu0 0
    %3952 = vmatprep.subr.bf16.mxu0 0
    %3953 = vmatpush1.bf16.msra.mxu0 0
    %3954 = vmatprep.subr.bf16.mxu0 0
    %3955 = vmatpush1.bf16.msra.mxu0 0
    %3956 = vmatprep.subr.bf16.mxu0 0
    %3957 = vmatpush1.bf16.msra.mxu0 0
    %3958 = vmatprep.subr.bf16.mxu0 0
    %3959 = vmatpush1.bf16.msra.mxu0 0
    %3960 = vmatprep.subr.bf16.mxu0 0
    %3961 = vmatpush1.bf16.msra.mxu0 0
    %3962 = vmatprep.subr.bf16.mxu0 0
    %3963 = vmatpush1.bf16.msra.mxu0 0
    %3964 = vmatprep.subr.bf16.mxu0 0
    %3965 = vmatpush1.bf16.msra.mxu0 0
    %3966 = vmatprep.mubr.bf16.mxu0 0
    %3967 = vmatmul.mubr.bf16.gmra.mrb[0].mxu0 %v3851
    %v3968 = vpop.f32.mrb[0].mxu0
    %v3969 = vadd.f32 %v3887, %v3968
    %v3970 = vpop.f32.mrb[0].mxu0
    %v3971 = vadd.f32 %v3889, %v3970
    %v3972 = vpop.f32.mrb[0].mxu0
    %v3973 = vpop.f32.mrb[0].mxu0
    %3974 = vdwg.mxu0
    %3975 = vmatprep.subr.bf16.mxu0 %v2703
    %3976 = vmatpush1.bf16.msra.mxu0 %v2702
    %3977 = vmatprep.subr.bf16.mxu0 %v2707
    %3978 = vmatpush1.bf16.msra.mxu0 %v2706
    %3979 = vmatprep.subr.bf16.mxu0 %v2711
    %3980 = vmatpush1.bf16.msra.mxu0 %v2710
    %3981 = vmatprep.subr.bf16.mxu0 %v2715
    %3982 = vmatpush1.bf16.msra.mxu0 %v2714
    %3983 = vmatprep.subr.bf16.mxu0 %v2719
    %3984 = vmatpush1.bf16.msra.mxu0 %v2718
    %3985 = vmatprep.subr.bf16.mxu0 %v2723
    %3986 = vmatpush1.bf16.msra.mxu0 %v2722
    %3987 = vmatprep.subr.bf16.mxu0 %v2727
    %3988 = vmatpush1.bf16.msra.mxu0 %v2726
    %3989 = vmatprep.subr.bf16.mxu0 %v2731
    %3990 = vmatpush1.bf16.msra.mxu0 %v2730
    %3991 = vmatprep.subr.bf16.mxu0 0
    %3992 = vmatpush1.bf16.msra.mxu0 0
    %3993 = vmatprep.subr.bf16.mxu0 0
    %3994 = vmatpush1.bf16.msra.mxu0 0
    %3995 = vmatprep.subr.bf16.mxu0 0
    %3996 = vmatpush1.bf16.msra.mxu0 0
    %3997 = vmatprep.subr.bf16.mxu0 0
    %3998 = vmatpush1.bf16.msra.mxu0 0
    %3999 = vmatprep.subr.bf16.mxu0 0
    %4000 = vmatpush1.bf16.msra.mxu0 0
    %4001 = vmatprep.subr.bf16.mxu0 0
    %4002 = vmatpush1.bf16.msra.mxu0 0
    %4003 = vmatprep.subr.bf16.mxu0 0
    %4004 = vmatpush1.bf16.msra.mxu0 0
    %4005 = vmatprep.subr.bf16.mxu0 0
    %4006 = vmatpush1.bf16.msra.mxu0 0
    %4007 = vmatprep.mubr.bf16.mxu0 0
    %4008 = vmatmul.mubr.bf16.gmra.mrb[0].mxu0 %v3851
    %v4009 = vpop.f32.mrb[0].mxu0
    %v4010 = vadd.f32 %v3928, %v4009
    %v4011 = vpop.f32.mrb[0].mxu0
    %v4012 = vadd.f32 %v3930, %v4011
    %v4013 = vpop.f32.mrb[0].mxu0
    %v4014 = vpop.f32.mrb[0].mxu0
    %4015 = vdwg.mxu0
    %v4016 = vadd.f32 %v3969, %v1988
    %v4017 = vadd.f32 %v3971, %v1992
    %v4018 = vadd.f32 %v4010, %v1996
    %v4019 = vadd.f32 %v4012, %v2000
    %v4020 = vmul.f32 %v4016, 0.5
    %v4021 = vtanh.pop %v4020
    %v4022 = vmul.f32 %v4021, 0.5
    %v4023 = vadd.f32 %v4022, 0.5
    %v4024 = vmul.f32 %v4017, 0.5
    %v4025 = vtanh.pop %v4024
    %v4026 = vmul.f32 %v4025, 0.5
    %v4027 = vadd.f32 %v4026, 0.5
    %v4028 = vtanh.pop %v4018
    %v4029 = vmul.f32 %v4019, 0.5
    %v4030 = vtanh.pop %v4029
    %v4031 = vmul.f32 %v4030, 0.5
    %v4032 = vadd.f32 %v4031, 0.5
    %v4033 = vmul.f32 %v4027, %v3801
    %v4034 = vmul.f32 %v4023, %v4028
    %v4035 = vadd.f32 %v4033, %v4034
    %v4036 = vtanh.pop %v4035
    %v4037 = vmul.f32 %v4032, %v4036
    %v4038 = vpack.c.bf16 %v4037, %v4037
    %4039 = vmatprep.subr.bf16.mxu0 0
    %4040 = vmatpush1.bf16.msra.mxu0 %v2459
    %4041 = vmatprep.subr.bf16.mxu0 0
    %4042 = vmatpush1.bf16.msra.mxu0 %v2460
    %4043 = vmatprep.subr.bf16.mxu0 0
    %4044 = vmatpush1.bf16.msra.mxu0 %v2461
    %4045 = vmatprep.subr.bf16.mxu0 0
    %4046 = vmatpush1.bf16.msra.mxu0 %v2462
    %4047 = vmatprep.subr.bf16.mxu0 0
    %4048 = vmatpush1.bf16.msra.mxu0 %v2463
    %4049 = vmatprep.subr.bf16.mxu0 0
    %4050 = vmatpush1.bf16.msra.mxu0 %v2464
    %4051 = vmatprep.subr.bf16.mxu0 0
    %4052 = vmatpush1.bf16.msra.mxu0 %v2465
    %4053 = vmatprep.subr.bf16.mxu0 0
    %4054 = vmatpush1.bf16.msra.mxu0 %v2466
    %4055 = vmatprep.subr.bf16.mxu0 0
    %4056 = vmatpush1.bf16.msra.mxu0 0
    %4057 = vmatprep.subr.bf16.mxu0 0
    %4058 = vmatpush1.bf16.msra.mxu0 0
    %4059 = vmatprep.subr.bf16.mxu0 0
    %4060 = vmatpush1.bf16.msra.mxu0 0
    %4061 = vmatprep.subr.bf16.mxu0 0
    %4062 = vmatpush1.bf16.msra.mxu0 0
    %4063 = vmatprep.subr.bf16.mxu0 0
    %4064 = vmatpush1.bf16.msra.mxu0 0
    %4065 = vmatprep.subr.bf16.mxu0 0
    %4066 = vmatpush1.bf16.msra.mxu0 0
    %4067 = vmatprep.subr.bf16.mxu0 0
    %4068 = vmatpush1.bf16.msra.mxu0 0
    %4069 = vmatprep.subr.bf16.mxu0 0
    %4070 = vmatpush1.bf16.msra.mxu0 0
    %4071 = vmatprep.mubr.bf16.mxu0 0
    %4072 = vmatmul.mubr.bf16.gmra.mrb[0].mxu0 %v4038
    %v4073 = vpop.f32.mrb[0].mxu0
    %v4074 = vadd.f32 %v2026, %v4073
    %v4075 = vpop.f32.mrb[0].mxu0
    %v4076 = vpop.f32.mrb[0].mxu0
    %v4077 = vpop.f32.mrb[0].mxu0
    %4078 = vdwg.mxu0
    %4079 = vst [vmem:[%s15 + $0x30] sm:$0xff] %v4074
    %4080 = vmax.xlane.f32.xlu0 %v4074
    %v4081 = vpop.xlane.xlu0 %4080
    %vm4082 = vcmp.eq.f32.partialorder %v4074, %v4081
    %v4083 = vsel %vm4082, 1, 0
    %v4084 = vcvt.s32.f32 %v4083
    %v4085 = vpack.c.bf16 %v4084, %v4084
    %4086 = vmatprep.subr.bf16.mxu0 %v2134
    %4087 = vmatpush1.bf16.msra.mxu0 %v2133
    %4088 = vmatprep.subr.bf16.mxu0 %v2138
    %4089 = vmatpush1.bf16.msra.mxu0 %v2137
    %4090 = vmatprep.subr.bf16.mxu0 %v2142
    %4091 = vmatpush1.bf16.msra.mxu0 %v2141
    %4092 = vmatprep.subr.bf16.mxu0 %v2146
    %4093 = vmatpush1.bf16.msra.mxu0 %v2145
    %4094 = vmatprep.subr.bf16.mxu0 %v2150
    %4095 = vmatpush1.bf16.msra.mxu0 %v2149
    %4096 = vmatprep.subr.bf16.mxu0 %v2154
    %4097 = vmatpush1.bf16.msra.mxu0 %v2153
    %4098 = vmatprep.subr.bf16.mxu0 %v2158
    %4099 = vmatpush1.bf16.msra.mxu0 %v2157
    %4100 = vmatprep.subr.bf16.mxu0 %v2162
    %4101 = vmatpush1.bf16.msra.mxu0 %v2161
    %4102 = vmatprep.subr.bf16.mxu0 0
    %4103 = vmatpush1.bf16.msra.mxu0 0
    %4104 = vmatprep.subr.bf16.mxu0 0
    %4105 = vmatpush1.bf16.msra.mxu0 0
    %4106 = vmatprep.subr.bf16.mxu0 0
    %4107 = vmatpush1.bf16.msra.mxu0 0
    %4108 = vmatprep.subr.bf16.mxu0 0
    %4109 = vmatpush1.bf16.msra.mxu0 0
    %4110 = vmatprep.subr.bf16.mxu0 0
    %4111 = vmatpush1.bf16.msra.mxu0 0
    %4112 = vmatprep.subr.bf16.mxu0 0
    %4113 = vmatpush1.bf16.msra.mxu0 0
    %4114 = vmatprep.subr.bf16.mxu0 0
    %4115 = vmatpush1.bf16.msra.mxu0 0
    %4116 = vmatprep.subr.bf16.mxu0 0
    %4117 = vmatpush1.bf16.msra.mxu0 0
    %4118 = vmatprep.mubr.bf16.mxu0 0
    %4119 = vmatmul.mubr.bf16.gmra.mrb[0].mxu0 %v4038
    %v4120 = vpop.f32.mrb[0].mxu0
    %v4121 = vadd.f32 0.0, %v4120
    %v4122 = vpop.f32.mrb[0].mxu0
    %v4123 = vadd.f32 0.0, %v4122
    %v4124 = vpop.f32.mrb[0].mxu0
    %v4125 = vpop.f32.mrb[0].mxu0
    %4126 = vdwg.mxu0
    %4127 = vmatprep.subr.bf16.mxu0 %v2136
    %4128 = vmatpush1.bf16.msra.mxu0 %v2135
    %4129 = vmatprep.subr.bf16.mxu0 %v2140
    %4130 = vmatpush1.bf16.msra.mxu0 %v2139
    %4131 = vmatprep.subr.bf16.mxu0 %v2144
    %4132 = vmatpush1.bf16.msra.mxu0 %v2143
    %4133 = vmatprep.subr.bf16.mxu0 %v2148
    %4134 = vmatpush1.bf16.msra.mxu0 %v2147
    %4135 = vmatprep.subr.bf16.mxu0 %v2152
    %4136 = vmatpush1.bf16.msra.mxu0 %v2151
    %4137 = vmatprep.subr.bf16.mxu0 %v2156
    %4138 = vmatpush1.bf16.msra.mxu0 %v2155
    %4139 = vmatprep.subr.bf16.mxu0 %v2160
    %4140 = vmatpush1.bf16.msra.mxu0 %v2159
    %4141 = vmatprep.subr.bf16.mxu0 %v2164
    %4142 = vmatpush1.bf16.msra.mxu0 %v2163
    %4143 = vmatprep.subr.bf16.mxu0 0
    %4144 = vmatpush1.bf16.msra.mxu0 0
    %4145 = vmatprep.subr.bf16.mxu0 0
    %4146 = vmatpush1.bf16.msra.mxu0 0
    %4147 = vmatprep.subr.bf16.mxu0 0
    %4148 = vmatpush1.bf16.msra.mxu0 0
    %4149 = vmatprep.subr.bf16.mxu0 0
    %4150 = vmatpush1.bf16.msra.mxu0 0
    %4151 = vmatprep.subr.bf16.mxu0 0
    %4152 = vmatpush1.bf16.msra.mxu0 0
    %4153 = vmatprep.subr.bf16.mxu0 0
    %4154 = vmatpush1.bf16.msra.mxu0 0
    %4155 = vmatprep.subr.bf16.mxu0 0
    %4156 = vmatpush1.bf16.msra.mxu0 0
    %4157 = vmatprep.subr.bf16.mxu0 0
    %4158 = vmatpush1.bf16.msra.mxu0 0
    %4159 = vmatprep.mubr.bf16.mxu0 0
    %4160 = vmatmul.mubr.bf16.gmra.mrb[0].mxu0 %v4038
    %v4161 = vpop.f32.mrb[0].mxu0
    %v4162 = vadd.f32 0.0, %v4161
    %v4163 = vpop.f32.mrb[0].mxu0
    %v4164 = vadd.f32 0.0, %v4163
    %v4165 = vpop.f32.mrb[0].mxu0
    %v4166 = vpop.f32.mrb[0].mxu0
    %4167 = vdwg.mxu0
    %4168 = vmatprep.subr.bf16.mxu0 %v2701
    %4169 = vmatpush1.bf16.msra.mxu0 %v2700
    %4170 = vmatprep.subr.bf16.mxu0 %v2705
    %4171 = vmatpush1.bf16.msra.mxu0 %v2704
    %4172 = vmatprep.subr.bf16.mxu0 %v2709
    %4173 = vmatpush1.bf16.msra.mxu0 %v2708
    %4174 = vmatprep.subr.bf16.mxu0 %v2713
    %4175 = vmatpush1.bf16.msra.mxu0 %v2712
    %4176 = vmatprep.subr.bf16.mxu0 %v2717
    %4177 = vmatpush1.bf16.msra.mxu0 %v2716
    %4178 = vmatprep.subr.bf16.mxu0 %v2721
    %4179 = vmatpush1.bf16.msra.mxu0 %v2720
    %4180 = vmatprep.subr.bf16.mxu0 %v2725
    %4181 = vmatpush1.bf16.msra.mxu0 %v2724
    %4182 = vmatprep.subr.bf16.mxu0 %v2729
    %4183 = vmatpush1.bf16.msra.mxu0 %v2728
    %4184 = vmatprep.subr.bf16.mxu0 0
    %4185 = vmatpush1.bf16.msra.mxu0 0
    %4186 = vmatprep.subr.bf16.mxu0 0
    %4187 = vmatpush1.bf16.msra.mxu0 0
    %4188 = vmatprep.subr.bf16.mxu0 0
    %4189 = vmatpush1.bf16.msra.mxu0 0
    %4190 = vmatprep.subr.bf16.mxu0 0
    %4191 = vmatpush1.bf16.msra.mxu0 0
    %4192 = vmatprep.subr.bf16.mxu0 0
    %4193 = vmatpush1.bf16.msra.mxu0 0
    %4194 = vmatprep.subr.bf16.mxu0 0
    %4195 = vmatpush1.bf16.msra.mxu0 0
    %4196 = vmatprep.subr.bf16.mxu0 0
    %4197 = vmatpush1.bf16.msra.mxu0 0
    %4198 = vmatprep.subr.bf16.mxu0 0
    %4199 = vmatpush1.bf16.msra.mxu0 0
    %4200 = vmatprep.mubr.bf16.mxu0 0
    %4201 = vmatmul.mubr.bf16.gmra.mrb[0].mxu0 %v4085
    %v4202 = vpop.f32.mrb[0].mxu0
    %v4203 = vadd.f32 %v4121, %v4202
    %v4204 = vpop.f32.mrb[0].mxu0
    %v4205 = vadd.f32 %v4123, %v4204
    %v4206 = vpop.f32.mrb[0].mxu0
    %v4207 = vpop.f32.mrb[0].mxu0
    %4208 = vdwg.mxu0
    %4209 = vmatprep.subr.bf16.mxu0 %v2703
    %4210 = vmatpush1.bf16.msra.mxu0 %v2702
    %4211 = vmatprep.subr.bf16.mxu0 %v2707
    %4212 = vmatpush1.bf16.msra.mxu0 %v2706
    %4213 = vmatprep.subr.bf16.mxu0 %v2711
    %4214 = vmatpush1.bf16.msra.mxu0 %v2710
    %4215 = vmatprep.subr.bf16.mxu0 %v2715
    %4216 = vmatpush1.bf16.msra.mxu0 %v2714
    %4217 = vmatprep.subr.bf16.mxu0 %v2719
    %4218 = vmatpush1.bf16.msra.mxu0 %v2718
    %4219 = vmatprep.subr.bf16.mxu0 %v2723
    %4220 = vmatpush1.bf16.msra.mxu0 %v2722
    %4221 = vmatprep.subr.bf16.mxu0 %v2727
    %4222 = vmatpush1.bf16.msra.mxu0 %v2726
    %4223 = vmatprep.subr.bf16.mxu0 %v2731
    %4224 = vmatpush1.bf16.msra.mxu0 %v2730
    %4225 = vmatprep.subr.bf16.mxu0 0
    %4226 = vmatpush1.bf16.msra.mxu0 0
    %4227 = vmatprep.subr.bf16.mxu0 0
    %4228 = vmatpush1.bf16.msra.mxu0 0
    %4229 = vmatprep.subr.bf16.mxu0 0
    %4230 = vmatpush1.bf16.msra.mxu0 0
    %4231 = vmatprep.subr.bf16.mxu0 0
    %4232 = vmatpush1.bf16.msra.mxu0 0
    %4233 = vmatprep.subr.bf16.mxu0 0
    %4234 = vmatpush1.bf16.msra.mxu0 0
    %4235 = vmatprep.subr.bf16.mxu0 0
    %4236 = vmatpush1.bf16.msra.mxu0 0
    %4237 = vmatprep.subr.bf16.mxu0 0
    %4238 = vmatpush1.bf16.msra.mxu0 0
    %4239 = vmatprep.subr.bf16.mxu0 0
    %4240 = vmatpush1.bf16.msra.mxu0 0
    %4241 = vmatprep.mubr.bf16.mxu0 0
    %4242 = vmatmul.mubr.bf16.gmra.mrb[0].mxu0 %v4085
    %v4243 = vpop.f32.mrb[0].mxu0
    %v4244 = vadd.f32 %v4162, %v4243
    %v4245 = vpop.f32.mrb[0].mxu0
    %v4246 = vadd.f32 %v4164, %v4245
    %v4247 = vpop.f32.mrb[0].mxu0
    %v4248 = vpop.f32.mrb[0].mxu0
    %4249 = vdwg.mxu0
    %v4250 = vadd.f32 %v4203, %v1988
    %v4251 = vadd.f32 %v4205, %v1992
    %v4252 = vadd.f32 %v4244, %v1996
    %v4253 = vadd.f32 %v4246, %v2000
    %v4254 = vmul.f32 %v4250, 0.5
    %v4255 = vtanh.pop %v4254
    %v4256 = vmul.f32 %v4255, 0.5
    %v4257 = vadd.f32 %v4256, 0.5
    %v4258 = vmul.f32 %v4251, 0.5
    %v4259 = vtanh.pop %v4258
    %v4260 = vmul.f32 %v4259, 0.5
    %v4261 = vadd.f32 %v4260, 0.5
    %v4262 = vtanh.pop %v4252
    %v4263 = vmul.f32 %v4253, 0.5
    %v4264 = vtanh.pop %v4263
    %v4265 = vmul.f32 %v4264, 0.5
    %v4266 = vadd.f32 %v4265, 0.5
    %v4267 = vmul.f32 %v4261, %v4035
    %v4268 = vmul.f32 %v4257, %v4262
    %v4269 = vadd.f32 %v4267, %v4268
    %v4270 = vtanh.pop %v4269
    %v4271 = vmul.f32 %v4266, %v4270
    %v4272 = vpack.c.bf16 %v4271, %v4271
    %4273 = vmatprep.subr.bf16.mxu0 0
    %4274 = vmatpush1.bf16.msra.mxu0 %v2459
    %4275 = vmatprep.subr.bf16.mxu0 0
    %4276 = vmatpush1.bf16.msra.mxu0 %v2460
    %4277 = vmatprep.subr.bf16.mxu0 0
    %4278 = vmatpush1.bf16.msra.mxu0 %v2461
    %4279 = vmatprep.subr.bf16.mxu0 0
    %4280 = vmatpush1.bf16.msra.mxu0 %v2462
    %4281 = vmatprep.subr.bf16.mxu0 0
    %4282 = vmatpush1.bf16.msra.mxu0 %v2463
    %4283 = vmatprep.subr.bf16.mxu0 0
    %4284 = vmatpush1.bf16.msra.mxu0 %v2464
    %4285 = vmatprep.subr.bf16.mxu0 0
    %4286 = vmatpush1.bf16.msra.mxu0 %v2465
    %4287 = vmatprep.subr.bf16.mxu0 0
    %4288 = vmatpush1.bf16.msra.mxu0 %v2466
    %4289 = vmatprep.subr.bf16.mxu0 0
    %4290 = vmatpush1.bf16.msra.mxu0 0
    %4291 = vmatprep.subr.bf16.mxu0 0
    %4292 = vmatpush1.bf16.msra.mxu0 0
    %4293 = vmatprep.subr.bf16.mxu0 0
    %4294 = vmatpush1.bf16.msra.mxu0 0
    %4295 = vmatprep.subr.bf16.mxu0 0
    %4296 = vmatpush1.bf16.msra.mxu0 0
    %4297 = vmatprep.subr.bf16.mxu0 0
    %4298 = vmatpush1.bf16.msra.mxu0 0
    %4299 = vmatprep.subr.bf16.mxu0 0
    %4300 = vmatpush1.bf16.msra.mxu0 0
    %4301 = vmatprep.subr.bf16.mxu0 0
    %4302 = vmatpush1.bf16.msra.mxu0 0
    %4303 = vmatprep.subr.bf16.mxu0 0
    %4304 = vmatpush1.bf16.msra.mxu0 0
    %4305 = vmatprep.mubr.bf16.mxu0 0
    %4306 = vmatmul.mubr.bf16.gmra.mrb[0].mxu0 %v4272
    %v4307 = vpop.f32.mrb[0].mxu0
    %v4308 = vadd.f32 %v2026, %v4307
    %v4309 = vpop.f32.mrb[0].mxu0
    %v4310 = vpop.f32.mrb[0].mxu0
    %v4311 = vpop.f32.mrb[0].mxu0
    %4312 = vdwg.mxu0
    %4313 = vst [vmem:[%s15 + $0x38] sm:$0xff] %v4308
    // Predicated region
    $region98: #{text_vae_forward.1} parent=1 // pred_check
      _
    $region99: #{text_vae_forward.1} parent=1 // pred_check_branch
      %4315 = sbr.rel (0) target = $region101
    $region100: #{text_vae_forward.1} parent=1 // pred_region
      _
    $region101: #{text_vae_forward.1} parent=1 // pred_fallthru
      _
    // Predicated region
    $region102: #{text_vae_forward.1} parent=1 // pred_check
      _
    $region103: #{text_vae_forward.1} parent=1 // pred_check_branch
      %4317 = sbr.rel (0) target = $region105
    $region104: #{text_vae_forward.1} parent=1 // pred_region
      %s4319 = ssub.s32 128, 128
      %4320 = vsyncadd [#allocation5], %s4319
      %s4322 = sshll.u32 [#allocation18], 4
      %s4323 = int_to_ptr.vmem [resolvable:$true] %s4322
      %4325 = dma.vmem_to_hbm [thread:$0]  %s4323, 128, %s16, [#allocation5]
    $region105: #{text_vae_forward.1} parent=1 // pred_fallthru
      _
    // Predicated region
    $region106: #{text_vae_forward.1} parent=1 // pred_check
      _
    $region107: #{text_vae_forward.1} parent=1 // pred_check_branch
      %4327 = sbr.rel (0) target = $region109
    $region108: #{text_vae_forward.1} parent=1 // pred_region
      %s4329 = ssub.s32 128, 128
      %4330 = vsyncadd [#allocation20], %s4329
      %s4332 = sshll.u32 [#allocation19], 4
      %s4333 = int_to_ptr.vmem [resolvable:$true] %s4332
      %4335 = dma.vmem_to_hbm [thread:$0]  %s4333, 128, %s17, [#allocation20]
    $region109: #{text_vae_forward.1} parent=1 // pred_fallthru
      _
    // Predicated region
    $region110: #{text_vae_forward.1} parent=1 // pred_check
      _
    $region111: #{text_vae_forward.1} parent=1 // pred_check_branch
      %4337 = sbr.rel (0) target = $region113
    $region112: #{text_vae_forward.1} parent=1 // pred_region
      _
    $region113: #{text_vae_forward.1} parent=1 // pred_fallthru
      _
    // Predicated region
    $region114: #{text_vae_forward.1} parent=1 // pred_check
      _
    $region115: #{text_vae_forward.1} parent=1 // pred_check_branch
      %4339 = sbr.rel (0) target = $region117
    $region116: #{text_vae_forward.1} parent=1 // pred_region
      %4340 = dma.done [#allocation5], 128
    $region117: #{text_vae_forward.1} parent=1 // pred_fallthru
      _
    // Predicated region
    $region118: #{text_vae_forward.1} parent=1 // pred_check
      _
    $region119: #{text_vae_forward.1} parent=1 // pred_check_branch
      %4342 = sbr.rel (0) target = $region121
    $region120: #{text_vae_forward.1} parent=1 // pred_region
      %4343 = dma.done [#allocation20], 128
    $region121: #{text_vae_forward.1} parent=1 // pred_fallthru
      _
    %4344 = vsyncpa [#allocation4], 1
    %4345 = vsyncpa [#allocation7], 1
    %4346 = vsyncpa [#allocation10], 1
    %4347 = vsyncpa [#allocation13], 1
    %4348 = vsyncpa [#allocation16], 1
    %4349 = vsyncpa [#allocation5], 1
    %4350 = vsyncpa [#allocation20], 1

</llo_original>
